<compile_context>
chip_gen: v7x
topology: tpu7x:2x2x1
jax: 0.10.0
libtpu: 0.0.40
codegen_flags: <defaults>
</compile_context>

<pallas_src>
import functools

import jax
import jax.numpy as jnp
from jax import lax
from jax.experimental import pallas as pl
from jax.experimental.pallas import tpu as pltpu

NEG_INF = -1e30
# Explicit scoped-VMEM cap: far above our tiled working sets (<6 MiB/call) and
# safely below v7x's 64 MiB physical VMEM; also lifts v5e's 16 MiB default.
VMEM_LIMIT_BYTES = 48 * 1024 * 1024


def _pick_tile(dim, pref, align):
    """Largest tile <= pref that divides `dim` and is a multiple of `align`.
    Falls back to the full dim (a full-extent block is always legal)."""
    if dim <= pref:
        return dim
    start = pref - (pref % align)
    for t in range(start, 0, -align):
        if dim % t == 0:
            return t
    return dim


def _default_attn_tkv():
    # v5e: 128-wide MXU + lowest HBM BW -> keep the score tile at 128 and win on traffic.
    # v6e/v7x: 256-wide MXU -> 256-wide score tile fills the systolic array.
    try:
        kind = jax.devices()[0].device_kind.lower()
    except Exception:
        return 256
    if "v5 lite" in kind or "v5e" in kind or "v5lite" in kind:
        return 128
    return 256


# --------------------------------------------------------------------------
# 1) Tiled GEMM + bias (used for the fused Q|K|V projection)
# --------------------------------------------------------------------------
def _matmul_bias_kernel(x_ref, w_ref, b_ref, o_ref, acc_ref):
    @pl.when(pl.program_id(2) == 0)
    def _init():
        acc_ref[...] = jnp.zeros_like(acc_ref)

    acc_ref[...] += jnp.dot(x_ref[...], w_ref[...],
                            preferred_element_type=jnp.float32)

    @pl.when(pl.program_id(2) == pl.num_programs(2) - 1)
    def _store():
        o_ref[...] = (acc_ref[...] + b_ref[...].astype(jnp.float32)).astype(o_ref.dtype)


def linear_bias(x, w, b, *, tm=512, tn=512, tk=512, out_dtype=jnp.bfloat16):
    """x: [T, K] bf16, w: [K, N] bf16, b: [1, N] f32 -> [T, N] out_dtype."""
    T, K = x.shape
    N = w.shape[1]
    tm = _pick_tile(T, tm, 16)      # bf16 packs 16 rows / vreg
    tn = _pick_tile(N, tn, 128)
    tk = _pick_tile(K, tk, 128)
    grid = (T // tm, N // tn, K // tk)
    # TODO(synk): on v5e the RMSNorm+RoPE epilogue could be fused into the last-k store here
    # to save one HBM round-trip of Q/K activations; kept separate for clarity/portability.
    cost = pl.CostEstimate(flops=int(2 * T * K * N), transcendentals=0,
                           bytes_accessed=int(2 * (T * K + K * N + T * N) + 4 * N))
    return pl.pallas_call(
        _matmul_bias_kernel,
        out_shape=jax.ShapeDtypeStruct((T, N), out_dtype),
        grid_spec=pltpu.PrefetchScalarGridSpec(
            num_scalar_prefetch=0,
            grid=grid,
            in_specs=[pl.BlockSpec((tm, tk), lambda i, j, k: (i, k)),
                      pl.BlockSpec((tk, tn), lambda i, j, k: (k, j)),
                      pl.BlockSpec((1, tn), lambda i, j, k: (0, j))],
            out_specs=pl.BlockSpec((tm, tn), lambda i, j, k: (i, j)),
            scratch_shapes=[pltpu.VMEM((tm, tn), jnp.float32)]),
        compiler_params=pltpu.CompilerParams(
            dimension_semantics=("parallel", "parallel", "arbitrary"),
            vmem_limit_bytes=VMEM_LIMIT_BYTES),
        cost_estimate=cost,
    )(x, w, b)


# --------------------------------------------------------------------------
# 2) Fused per-head RMSNorm + RoPE for Q/K heads, passthrough copy for V heads.
#    Reads head-columns of the packed QKV GEMM output and emits head-major
#    [H+2KV, T, D] so attention gets contiguous K *and* V slabs.
# --------------------------------------------------------------------------
def _qkv_norm_rope_kernel(x_ref, g_ref, cos_ref, sin_ref, o_ref, *, eps, num_rope_heads):
    h = pl.program_id(1)

    @pl.when(h < num_rope_heads)
    def _norm_rope():
        x = x_ref[...].astype(jnp.float32)          # [tt, D]
        g = g_ref[0].astype(jnp.float32)            # [1, D]
        var = jnp.mean(x * x, axis=-1, keepdims=True)
        xn = x * lax.rsqrt(var + eps) * g
        half = xn.shape[-1] // 2
        # rotate_half(x) == roll(x, d/2) with the sign already folded into sin_ref
        # (first half negated on the host), so no iota/compare/select here.
        rotated = pltpu.roll(xn, half, axis=1)
        o_ref[0] = (xn * cos_ref[...] + rotated * sin_ref[...]).astype(o_ref.dtype)

    @pl.when(h >= num_rope_heads)
    def _copy_v():
        o_ref[0] = x_ref[...].astype(o_ref.dtype)


def fused_qkv_norm_rope(qkv2d, gamma, cos_t, sin_signed, *, num_q_heads, num_kv_heads,
                        head_dim, eps, tt=512, out_dtype=jnp.bfloat16):
    """qkv2d: [T, (H+2KV)*D]; gamma: [H+2KV, 1, D]; cos_t/sin_signed: [T, D] f32.
    Returns head-major [H+2KV, T, D]: Q,K normed+roped, V copied through."""
    T = qkv2d.shape[0]
    D = head_dim
    n_heads = num_q_heads + 2 * num_kv_heads
    tt = _pick_tile(T, tt, 16)
    nt = T // tt
    return pl.pallas_call(
        functools.partial(_qkv_norm_rope_kernel, eps=eps,
                          num_rope_heads=num_q_heads + num_kv_heads),
        out_shape=jax.ShapeDtypeStruct((n_heads, T, D), out_dtype),
        grid_spec=pltpu.PrefetchScalarGridSpec(
            num_scalar_prefetch=0,
            grid=(nt, n_heads),                      # head fastest -> cos/sin blocks not refetched
            in_specs=[pl.BlockSpec((tt, D), lambda i, h: (i, h)),     # head-column of QKV
                      pl.BlockSpec((1, 1, D), lambda i, h: (h, 0, 0)),
                      pl.BlockSpec((tt, D), lambda i, h: (i, 0)),
                      pl.BlockSpec((tt, D), lambda i, h: (i, 0))],
            out_specs=pl.BlockSpec((1, tt, D), lambda i, h: (h, i, 0))),
        compiler_params=pltpu.CompilerParams(
            dimension_semantics=("parallel", "parallel"),
            vmem_limit_bytes=VMEM_LIMIT_BYTES),
    )(qkv2d, gamma, cos_t, sin_signed)


# --------------------------------------------------------------------------
# 3) Varlen causal flash attention, GQA-batched (all Q heads of a KV group per step)
# --------------------------------------------------------------------------
def _flash_attn_kernel(qmin_ref, qmax_ref, kmin_ref, kmax_ref, kvlo_ref,
                       q_ref, k_ref, v_ref, segq_ref, segk_ref,
                       o_ref, m_sc, l_sc, acc_sc, *, tq, tkv, groups):
    qi = pl.program_id(1)
    kv = pl.program_id(2)

    @pl.when(kv == 0)
    def _init():
        m_sc[...] = jnp.full_like(m_sc, NEG_INF)
        l_sc[...] = jnp.zeros_like(l_sc)
        acc_sc[...] = jnp.zeros_like(acc_sc)

    q_start = qi * tq
    q_end = q_start + tq - 1
    kv_start = kv * tkv
    kv_end = kv_start + tkv - 1

    # Skip KV tiles that are fully non-causal or lie in strictly earlier segments.
    relevant = jnp.logical_and(kv_start <= q_end, kmax_ref[kv] >= qmin_ref[qi])
    # Interior (no masking needed): strictly causal-past and one shared segment.
    uniform = jnp.logical_and(
        qmin_ref[qi] == qmax_ref[qi],
        jnp.logical_and(kmin_ref[kv] == kmax_ref[kv], kmin_ref[kv] == qmin_ref[qi]))
    interior = jnp.logical_and(kv_end <= q_start, uniform)

    def _scores():
        q = q_ref[...]                                       # [groups, tq, D] bf16
        q2 = q.reshape(groups * tq, q.shape[-1])
        return lax.dot_general(q2, k_ref[0], (((1,), (1,)), ((), ())),
                               preferred_element_type=jnp.float32)   # [groups*tq, tkv]

    def _update(s3, guard_dead_rows):
        # s3: [groups, tq, tkv] f32 (softmax scale already folded into Q gamma)
        m_prev = m_sc[...]
        m_new = jnp.maximum(m_prev, jnp.max(s3, axis=-1, keepdims=True))
        alpha = jnp.exp(m_prev - m_new)
        p = jnp.exp(s3 - m_new)
        if guard_dead_rows:
            # Rows fully masked in this tile keep m_new == NEG_INF; zero their p so
            # l/acc stay clean (robust even if NEG_INF were -inf).
            p = jnp.where(m_new > NEG_INF * 0.5, p, 0.0)
        l_sc[...] = alpha * l_sc[...] + jnp.sum(p, axis=-1, keepdims=True)
        pv = lax.dot_general(p.reshape(groups * tq, tkv).astype(v_ref.dtype), v_ref[0],
                             (((1,), (0,)), ((), ())),
                             preferred_element_type=jnp.float32)     # [groups*tq, D]
        acc_sc[...] = alpha * acc_sc[...] + pv.reshape(groups, tq, pv.shape[-1])
        m_sc[...] = m_new

    @pl.when(interior)
    def _fast():
        _update(_scores().reshape(groups, tq, tkv), guard_dead_rows=False)

    @pl.when(jnp.logical_and(relevant, jnp.logical_not(interior)))
    def _masked():
        s3 = _scores().reshape(groups, tq, tkv)
        seg_ok = segq_ref[...] == segk_ref[...]              # [tq,1]==[1,tkv] -> [tq,tkv]
        row = q_start + lax.broadcasted_iota(jnp.int32, (tq, tkv), 0)
        col = kv_start + lax.broadcasted_iota(jnp.int32, (tq, tkv), 1)
        keep = jnp.logical_and(seg_ok, row >= col)
        _update(jnp.where(keep[None], s3, NEG_INF), guard_dead_rows=True)

    @pl.when(kv == pl.num_programs(2) - 1)
    def _finalize():
        l = l_sc[...]
        l = jnp.where(l == 0.0, 1.0, l)                      # guard (never hit in practice)
        o_ref[...] = (acc_sc[...] * pl.reciprocal(l, approx=True)).astype(o_ref.dtype)


def varlen_flash_attention(qkv_hm, seg, cu_seqlens, *, num_heads, num_kv_heads, head_dim,
                           tq=256, tkv=None):
    """qkv_hm: [H+2KV, T, D] head-major (Q heads, K heads, V heads); seg: [T] int32
    segment ids; cu_seqlens: int32 cumulative sequence lengths. Returns [H, T, D]."""
    H, KV, D = num_heads, num_kv_heads, head_dim
    groups = H // KV
    T = qkv_hm.shape[1]
    if tkv is None:
        tkv = _default_attn_tkv()
    tq = _pick_tile(T, tq, 16)
    tkv = _pick_tile(T, tkv, 128)
    nq, nkv = T // tq, T // tkv

    seg = seg.astype(jnp.int32)
    seg_q = seg.reshape(T, 1)
    seg_k = seg.reshape(1, T)
    qmin_seg = seg[::tq]                  # segment id at the start of each q tile
    qmax_seg = seg[tq - 1::tq]            # segment id at the end of each q tile
    kmin_seg = seg[::tkv]                 # segment id at the start of each kv tile
    kmax_seg = seg[tkv - 1::tkv]          # segment id at the end of each kv tile
    # First kv tile that can contain tokens of the q tile's starting segment
    # (used to clamp K/V block indices so segment-dead tiles issue no DMA).
    kv_lo = (cu_seqlens.astype(jnp.int32)[qmin_seg] // tkv).astype(jnp.int32)

    def _kv_block(qi, kv, kvlo_r):
        causal_last = (qi * tq + tq - 1) // tkv
        return jnp.minimum(jnp.maximum(kv, kvlo_r[qi]), causal_last)

    def q_map(g, qi, kv, *_):
        return (g, qi, 0)

    def k_map(g, qi, kv, qmin_r, qmax_r, kmin_r, kmax_r, kvlo_r):
        return (H + g, _kv_block(qi, kv, kvlo_r), 0)

    def v_map(g, qi, kv, qmin_r, qmax_r, kmin_r, kmax_r, kvlo_r):
        return (H + KV + g, _kv_block(qi, kv, kvlo_r), 0)

    def segq_map(g, qi, kv, *_):
        return (qi, 0)

    def segk_map(g, qi, kv, qmin_r, qmax_r, kmin_r, kmax_r, kvlo_r):
        return (0, _kv_block(qi, kv, kvlo_r))

    kernel = functools.partial(_flash_attn_kernel, tq=tq, tkv=tkv, groups=groups)
    cost = pl.CostEstimate(
        flops=int(2 * H * T * T * D),                 # QK^T + PV, ~causal half
        transcendentals=int(H * T * T) // 2,
        bytes_accessed=int(4 * H * T * D + 4 * KV * T * D * nq))
    return pl.pallas_call(
        kernel,
        out_shape=jax.ShapeDtypeStruct((H, T, D), qkv_hm.dtype),
        grid_spec=pltpu.PrefetchScalarGridSpec(
            num_scalar_prefetch=5,
            grid=(KV, nq, nkv),
            in_specs=[pl.BlockSpec((groups, tq, D), q_map),
                      pl.BlockSpec((1, tkv, D), k_map),
                      pl.BlockSpec((1, tkv, D), v_map),
                      pl.BlockSpec((tq, 1), segq_map),
                      pl.BlockSpec((1, tkv), segk_map)],
            out_specs=pl.BlockSpec((groups, tq, D), lambda g, qi, kv, *_: (g, qi, 0)),
            scratch_shapes=[pltpu.VMEM((groups, tq, 1), jnp.float32),
                            pltpu.VMEM((groups, tq, 1), jnp.float32),
                            pltpu.VMEM((groups, tq, D), jnp.float32)]),
        compiler_params=pltpu.CompilerParams(
            dimension_semantics=("parallel", "parallel", "arbitrary"),
            vmem_limit_bytes=VMEM_LIMIT_BYTES),
        cost_estimate=cost,
    )(qmin_seg, qmax_seg, kmin_seg, kmax_seg, kv_lo, qkv_hm, qkv_hm, qkv_hm, seg_q, seg_k)


# --------------------------------------------------------------------------
# 4) o_proj: GEMM reducing over heads straight from [H, T, D] (2 heads / step)
# --------------------------------------------------------------------------
def _oproj_kernel(x_ref, w_ref, o_ref, acc_ref, *, hpb):
    @pl.when(pl.program_id(2) == 0)
    def _init():
        acc_ref[...] = jnp.zeros_like(acc_ref)

    acc = acc_ref[...]
    for h in range(hpb):
        acc = acc + jnp.dot(x_ref[h], w_ref[h], preferred_element_type=jnp.float32)
    acc_ref[...] = acc

    @pl.when(pl.program_id(2) == pl.num_programs(2) - 1)
    def _store():
        o_ref[...] = acc_ref[...].astype(o_ref.dtype)


def oproj_headsum(x_hm, w_heads, *, tm=512, tn=512, out_dtype=jnp.float32):
    """x_hm: [H, T, D]; w_heads: [H, D, N]; returns [T, N] = sum_h x[h] @ w[h]."""
    H, T, D = x_hm.shape
    N = w_heads.shape[2]
    tm = _pick_tile(T, tm, 16)
    tn = _pick_tile(N, tn, 128)
    hpb = 2 if H % 2 == 0 else 1
    grid = (T // tm, N // tn, H // hpb)
    cost = pl.CostEstimate(flops=int(2 * T * H * D * N), transcendentals=0,
                           bytes_accessed=int(2 * (H * T * D + H * D * N) + 4 * T * N))
    return pl.pallas_call(
        functools.partial(_oproj_kernel, hpb=hpb),
        out_shape=jax.ShapeDtypeStruct((T, N), out_dtype),
        grid_spec=pltpu.PrefetchScalarGridSpec(
            num_scalar_prefetch=0,
            grid=grid,
            in_specs=[pl.BlockSpec((hpb, tm, D), lambda i, j, h: (h, i, 0)),
                      pl.BlockSpec((hpb, D, tn), lambda i, j, h: (h, 0, j))],
            out_specs=pl.BlockSpec((tm, tn), lambda i, j, h: (i, j)),
            scratch_shapes=[pltpu.VMEM((tm, tn), jnp.float32)]),
        compiler_params=pltpu.CompilerParams(
            dimension_semantics=("parallel", "parallel", "arbitrary"),
            vmem_limit_bytes=VMEM_LIMIT_BYTES),
        cost_estimate=cost,
    )(x_hm, w_heads)


# --------------------------------------------------------------------------
# Module glue
# --------------------------------------------------------------------------
class Qwen3AttentionPallas:
    def __init__(self, key, hidden_size, num_attention_heads, num_key_value_heads,
                 head_dim, rms_norm_eps=1e-6, param_dtype=jnp.bfloat16):
        assert head_dim % 128 == 0, "kernels assume head_dim % 128 == 0 (Qwen3: head_dim=128)"
        assert num_attention_heads % num_key_value_heads == 0
        self.hidden_size = hidden_size
        self.num_attention_heads = num_attention_heads
        self.num_key_value_heads = num_key_value_heads
        self.num_key_value_groups = num_attention_heads // num_key_value_heads
        self.head_dim = head_dim
        self.eps = rms_norm_eps
        self.scaling = head_dim ** (-0.5)

        H, KV, D = num_attention_heads, num_key_value_heads, head_dim
        n_q, n_kv = H * D, KV * D
        n_tot = n_q + 2 * n_kv
        k_wqkv, k_bqkv, k_wo = jax.random.split(key, 3)
        # Fused q|k|v projection weight, stored [in, out] and cast to bf16 for the MXU.
        self.w_qkv = (0.02 * jax.random.normal(k_wqkv, (hidden_size, n_tot), jnp.float32)
                      ).astype(param_dtype)
        self.b_qkv = 0.02 * jax.random.normal(k_bqkv, (1, n_tot), jnp.float32)
        # o_proj (bias=False) stored per head: [H, D, hidden].
        self.w_o = (0.02 * jax.random.normal(k_wo, (n_q, hidden_size), jnp.float32)
                    ).reshape(H, D, hidden_size).astype(param_dtype)
        # RMSNorm weights (ones at init). Softmax scale is folded into the Q-head gamma
        # (commutes with RoPE) so the attention kernel does no per-step score scaling.
        self.q_norm_w = jnp.ones((D,), jnp.float32)
        self.k_norm_w = jnp.ones((D,), jnp.float32)
        gq = jnp.broadcast_to(self.q_norm_w * self.scaling, (H, D))
        gk = jnp.broadcast_to(self.k_norm_w, (KV, D))
        gv = jnp.ones((KV, D), jnp.float32)    # V heads pass through un-normed (gamma unused)
        self.gamma_qkv = jnp.concatenate([gq, gk, gv], axis=0).reshape(H + 2 * KV, 1, D)
        # TODO(synk): LoRA branch of ReplicatedLinear (lora_rank=0 in this config) not implemented.

    def __call__(self, hidden_states, position_embeddings, cu_seqlens, max_seqlen, position_ids):
        T, _ = hidden_states.shape
        H, KV, D = self.num_attention_heads, self.num_key_value_heads, self.head_dim

        # Fused Q|K|V projection (one bf16 GEMM, single read of the activations).
        x = hidden_states.astype(self.w_qkv.dtype)
        qkv = linear_bias(x, self.w_qkv, self.b_qkv, out_dtype=self.w_qkv.dtype)  # [T,(H+2KV)*D]

        # Rotary table gather by position_ids + sign-fold of sin (tiny XLA glue).
        cos, sin = position_embeddings
        cos_t = jnp.take(cos, position_ids, axis=0).astype(jnp.float32)
        sin_t = jnp.take(sin, position_ids, axis=0).astype(jnp.float32)
        half = D // 2
        sin_signed = jnp.concatenate([-sin_t[:, :half], sin_t[:, half:]], axis=-1)

        # Fused RMSNorm + RoPE (Q,K) and head-major copy of V -> [H+2KV, T, D].
        qkv_hm = fused_qkv_norm_rope(qkv, self.gamma_qkv, cos_t, sin_signed,
                                     num_q_heads=H, num_kv_heads=KV, head_dim=D, eps=self.eps,
                                     out_dtype=self.w_qkv.dtype)

        # Segment ids from cu_seqlens (tiny XLA glue).
        cu = cu_seqlens.astype(jnp.int32)
        seg = (jnp.searchsorted(cu, jnp.arange(T, dtype=jnp.int32), side='right') - 1
               ).astype(jnp.int32)

        # GQA-batched varlen flash attention (K/V contiguous, tile skipping via prefetch).
        o_hm = varlen_flash_attention(qkv_hm, seg, cu,
                                      num_heads=H, num_kv_heads=KV, head_dim=D)

        # Output projection, reducing over heads (no transpose of o_hm needed).
        attn_output = oproj_headsum(o_hm, self.w_o, out_dtype=hidden_states.dtype)
        return attn_output, None


def build_rope_table(max_positions, head_dim, theta=1e6):
    inv_freq = 1.0 / (theta ** (jnp.arange(0, head_dim, 2, dtype=jnp.float32) / head_dim))
    pos = jnp.arange(max_positions, dtype=jnp.float32)
    freqs = pos[:, None] * inv_freq[None, :]
    emb = jnp.concatenate([freqs, freqs], axis=-1)          # [max_positions, head_dim]
    return jnp.cos(emb), jnp.sin(emb)


# --------------------------------------------------------------------------
# Pure-JAX reference (same bf16 weights) for a loose numerical check
# --------------------------------------------------------------------------
def _reference_forward(mod, hidden_states, position_embeddings, cu_seqlens, position_ids):
    H, KV, D = mod.num_attention_heads, mod.num_key_value_heads, mod.head_dim
    G = mod.num_key_value_groups
    T = hidden_states.shape[0]
    x = hidden_states.astype(jnp.bfloat16).astype(jnp.float32)
    qkv = x @ mod.w_qkv.astype(jnp.float32) + mod.b_qkv.astype(jnp.float32)
    qkv = qkv.reshape(T, H + 2 * KV, D)
    q, k, v = qkv[:, :H], qkv[:, H:H + KV], qkv[:, H + KV:]

    def rms(t, g):
        var = jnp.mean(t * t, axis=-1, keepdims=True)
        return t * lax.rsqrt(var + mod.eps) * g

    q = rms(q, mod.q_norm_w[None, None, :])
    k = rms(k, mod.k_norm_w[None, None, :])
    cos_tab, sin_tab = position_embeddings
    cos = jnp.take(cos_tab, position_ids, axis=0).astype(jnp.float32)[:, None, :]
    sin = jnp.take(sin_tab, position_ids, axis=0).astype(jnp.float32)[:, None, :]

    def rope(t):
        h = D // 2
        rot = jnp.concatenate([-t[..., h:], t[..., :h]], axis=-1)
        return t * cos + rot * sin

    q, k = rope(q), rope(k)
    k = jnp.repeat(k, G, axis=1)
    v = jnp.repeat(v, G, axis=1)
    seg = jnp.searchsorted(cu_seqlens, jnp.arange(T, dtype=cu_seqlens.dtype), side='right') - 1
    mask = (seg[:, None] == seg[None, :]) & (jnp.arange(T)[:, None] >= jnp.arange(T)[None, :])
    s = jnp.einsum('thd,shd->hts', q, k) * mod.scaling
    s = jnp.where(mask[None], s, NEG_INF)
    p = jax.nn.softmax(s, axis=-1)
    o = jnp.einsum('hts,shd->thd', p, v).reshape(T, H * D)
    return o @ mod.w_o.reshape(H * D, -1).astype(jnp.float32)


if __name__ == "__main__":
    hidden_size = 256
    num_attention_heads = 4
    num_key_value_heads = 2
    head_dim = 128                        # Qwen3 uses head_dim = 128
    total_tokens = 1024                   # two packed sequences: lengths 640 and 384
    cu_seqlens = jnp.array([0, 640, 1024], dtype=jnp.int32)
    max_seqlen = 640

    key = jax.random.PRNGKey(0)
    k_params, k_x = jax.random.split(key)
    attn = Qwen3AttentionPallas(k_params, hidden_size, num_attention_heads,
                                num_key_value_heads, head_dim)

    hidden_states = jax.random.normal(k_x, (total_tokens, hidden_size), jnp.float32)
    seg = jnp.searchsorted(cu_seqlens, jnp.arange(total_tokens, dtype=jnp.int32),
                           side='right') - 1
    position_ids = (jnp.arange(total_tokens, dtype=jnp.int32) - cu_seqlens[seg]).astype(jnp.int32)
    position_embeddings = build_rope_table(max_seqlen, head_dim)

    out, _ = attn(hidden_states, position_embeddings, cu_seqlens, max_seqlen, position_ids)
    out = jax.block_until_ready(out)

    assert out.shape == (total_tokens, hidden_size)
    assert bool(jnp.all(jnp.isfinite(out)))

    ref = _reference_forward(attn, hidden_states, position_embeddings, cu_seqlens, position_ids)
    err = float(jnp.max(jnp.abs(out - ref)))
    assert bool(jnp.allclose(out, ref, atol=3e-2, rtol=3e-2)), err
    print("KERNEL_OK")
</pallas_src>

<mosaic_0001>
module attributes {stable_mosaic.version = 11 : i64} {
  func.func @_matmul_bias_kernel(%arg0: i32, %arg1: i32, %arg2: i32, %arg3: memref<512x256xbf16, #tpu.memory_space<vmem>>, %arg4: memref<256x512xbf16, #tpu.memory_space<vmem>>, %arg5: memref<1x512xf32, #tpu.memory_space<vmem>>, %arg6: memref<512x512xbf16, #tpu.memory_space<vmem>>, %arg7: memref<512x512xf32, #tpu.memory_space<vmem>>) attributes {dimension_semantics = [#tpu.dimension_semantics<parallel>, #tpu.dimension_semantics<parallel>, #tpu.dimension_semantics<arbitrary>], iteration_bounds = array<i64: 2, 2, 1>, scalar_prefetch = 0 : i64, scratch_operands = 1 : i64, tpu.core_type = #tpu.core_type<tc>, window_params = [{transform_indices = @transform_0, window_bounds = array<i64: 512, 256>}, {transform_indices = @transform_1, window_bounds = array<i64: 256, 512>}, {transform_indices = @transform_2, window_bounds = array<i64: 1, 512>}, {transform_indices = @transform_3, window_bounds = array<i64: 512, 512>}]} {
    %c0_i32 = arith.constant 0 : i32
    %0 = arith.cmpi eq, %arg2, %c0_i32 : i32
    %1 = arith.extui %0 : i1 to i32
    %c0_i32_0 = arith.constant 0 : i32
    %2 = arith.cmpi ne, %1, %c0_i32_0 : i32
    scf.if %2 {
      %cst_10 = arith.constant 0.000000e+00 : f32
      %12 = vector.broadcast %cst_10 : f32 to vector<512x512xf32>
      %c0_11 = arith.constant 0 : index
      %c0_12 = arith.constant 0 : index
      %13 = vector.load %arg7[%c0_11, %c0_12] : memref<512x512xf32, #tpu.memory_space<vmem>>, vector<512x512xf32>
      tpu.vector_store %arg7[%c0_11, %c0_12], %12 {strides = array<i32>} : memref<512x512xf32, #tpu.memory_space<vmem>>, vector<512x512xf32>,
    } else {
    }
    %c0 = arith.constant 0 : index
    %c0_1 = arith.constant 0 : index
    %3 = vector.load %arg7[%c0, %c0_1] : memref<512x512xf32, #tpu.memory_space<vmem>>, vector<512x512xf32>
    %c0_2 = arith.constant 0 : index
    %c0_3 = arith.constant 0 : index
    %4 = vector.load %arg3[%c0_2, %c0_3] : memref<512x256xbf16, #tpu.memory_space<vmem>>, vector<512x256xbf16>
    %c0_4 = arith.constant 0 : index
    %c0_5 = arith.constant 0 : index
    %5 = vector.load %arg4[%c0_4, %c0_5] : memref<256x512xbf16, #tpu.memory_space<vmem>>, vector<256x512xbf16>
    %cst = arith.constant dense<0.000000e+00> : vector<512x512xf32>
    %6 = tpu.matmul %4, %5, %cst {dimension_numbers = #tpu.dot_dimension_numbers<[1], [0], [0], [1], [0, 0, 1, 1], [], []>} : vector<512x256xbf16>, vector<256x512xbf16>, vector<512x512xf32> -> vector<512x512xf32>
    %7 = arith.addf %3, %6 : vector<512x512xf32>
    %c0_6 = arith.constant 0 : index
    %c0_7 = arith.constant 0 : index
    %8 = vector.load %arg7[%c0_6, %c0_7] : memref<512x512xf32, #tpu.memory_space<vmem>>, vector<512x512xf32>
    tpu.vector_store %arg7[%c0_6, %c0_7], %7 {strides = array<i32>} : memref<512x512xf32, #tpu.memory_space<vmem>>, vector<512x512xf32>,
    %c0_i32_8 = arith.constant 0 : i32
    %9 = arith.cmpi eq, %arg2, %c0_i32_8 : i32
    %10 = arith.extui %9 : i1 to i32
    %c0_i32_9 = arith.constant 0 : i32
    %11 = arith.cmpi ne, %10, %c0_i32_9 : i32
    scf.if %11 {
      %c0_10 = arith.constant 0 : index
      %c0_11 = arith.constant 0 : index
      %12 = vector.load %arg7[%c0_10, %c0_11] : memref<512x512xf32, #tpu.memory_space<vmem>>, vector<512x512xf32>
      %c0_12 = arith.constant 0 : index
      %c0_13 = arith.constant 0 : index
      %13 = vector.load %arg5[%c0_12, %c0_13] : memref<1x512xf32, #tpu.memory_space<vmem>>, vector<1x512xf32>
      %14 = vector.broadcast %13 : vector<1x512xf32> to vector<512x512xf32>
      %15 = arith.addf %12, %14 : vector<512x512xf32>
      %16 = arith.truncf %15 : vector<512x512xf32> to vector<512x512xbf16>
      %c0_14 = arith.constant 0 : index
      %c0_15 = arith.constant 0 : index
      %17 = vector.load %arg6[%c0_14, %c0_15] : memref<512x512xbf16, #tpu.memory_space<vmem>>, vector<512x512xbf16>
      tpu.vector_store %arg6[%c0_14, %c0_15], %16 {strides = array<i32>} : memref<512x512xbf16, #tpu.memory_space<vmem>>, vector<512x512xbf16>,
    } else {
    }
    return
  }
  func.func @transform_0(%arg0: i32, %arg1: i32, %arg2: i32) -> (i32, i32) {
    %c0_i32 = arith.constant 0 : i32
    return %arg0, %arg2 : i32, i32
  }
  func.func @transform_1(%arg0: i32, %arg1: i32, %arg2: i32) -> (i32, i32) {
    %c0_i32 = arith.constant 0 : i32
    return %arg2, %arg1 : i32, i32
  }
  func.func @transform_2(%arg0: i32, %arg1: i32, %arg2: i32) -> (i32, i32) {
    %c0_i32 = arith.constant 0 : i32
    %c0_i32_0 = arith.constant 0 : i32
    return %c0_i32, %arg1 : i32, i32
  }
  func.func @transform_3(%arg0: i32, %arg1: i32, %arg2: i32) -> (i32, i32) {
    %c0_i32 = arith.constant 0 : i32
    return %arg0, %arg1 : i32, i32
  }
}

</mosaic_0001>

<llo_original>
// kernel: tpu_custom_call.1
$region0: #{tpu_custom_call.1}
  #allocation0 [shape = 'u32[]', space=smem, size = 0x4, offset = 0x4, fixed_abs, tag = 'smem constant byte address 0x4 - core index']
  #allocation1 [shape = 'u32[144,128]{1,0:T(1,128)}', space=vmem, size = 0x12000, scoped, tag = 'internal scratch']
  #allocation2 [shape = 'f32[512,512]{1,0:T(8,128)}', space=vmem, size = 0x100000, scoped, tag = 'scratch operand']
  %s0 = inlined_call_operand.hbm [shape: bf16[1024,256], index: 0, kind: input, shape index: {}]
  %s1 = inlined_call_operand.hbm [shape: bf16[256,1024], index: 1, kind: input, shape index: {}]
  %s2 = inlined_call_operand.hbm [shape: f32[1,1024], index: 2, kind: input, shape index: {}]
  %s3 = inlined_call_operand.hbm [shape: bf16[1024,1024], index: 3, kind: output, shape index: {}]
  %s4 = sld [smem:[#allocation0]]
  $region65: #{tpu_custom_call.1} parent=0
    _
  %s6 = ssub.s32 1, %s4
  %s7 = scalar_select 0, %s6, %s4
  $region1: #{tpu_custom_call.1} parent=0
    #allocation3 [shape = 'u8[524288]{0}', space=vmem, size = 0x80000, scoped, tag = 'input window, operand 0']
    #allocation4 [shape = 's32[2]{0}', space=sflag, size = 0x8, scoped, tag = 'scoped memory for tpu_custom_call.1']
    #allocation5 [shape = 's32[2]{0}', space=sflag, size = 0x8, scoped, tag = 'scoped memory for tpu_custom_call.1']
    #allocation6 [shape = 'u8[524288]{0}', space=vmem, size = 0x80000, scoped, tag = 'input window, operand 1']
    #allocation7 [shape = 's32[2]{0}', space=sflag, size = 0x8, scoped, tag = 'scoped memory for tpu_custom_call.1']
    #allocation8 [shape = 'u8[4096]{0}', space=vmem, size = 0x1000, scoped, tag = 'input window, operand 2']
    #allocation9 [shape = 'u8[1048576]{0}', space=vmem, size = 0x100000, scoped, tag = 'output window, operand 0']
    %8 = vsyncpa [#allocation4], 0
    %s9 = scalar_lea.sflag [#allocation4], 1
    %10 = vsyncpa %s9, 0
    %11 = vsyncpa [#allocation7], 0
    %s12 = scalar_lea.sflag [#allocation7], 1
    %13 = vsyncpa %s12, 0
    %14 = vsyncpa [#allocation5], 0
    %s15 = scalar_lea.sflag [#allocation5], 1
    %16 = vsyncpa %s15, 0
    loop: start=0, step=1, limit=6
    $region2: #{tpu_custom_call.1} parent=1 // loop_pre_header
      _
    $region3: #{tpu_custom_call.1} parent=1 // loop_header
      %s18 = sphi 0, %s22
      %p19 = scmp.ge.s32.totalorder %s18, 6
      %s25 = sphi 0, %s44
      %s26 = sphi 0, %s40
      %s27 = sphi 0, %s36
      %s28 = sphi 0, %s25
      %s29 = sphi 0, %s26
      %s30 = sphi 0, %s27
      %s31 = sphi 0, %s28
      %s32 = sphi 0, %s29
      %s33 = sphi 0, %s30
      %s49 = sphi 0, %s51
      %s52 = sphi 0, %s49
      %s53 = sphi 0, %s52
      %s69 = sphi 0, %s53
      %s77 = sphi 0, %s79
      %s80 = sphi 0, %s77
      %s81 = sphi 0, %s80
      %s97 = sphi 0, %s81
      %s103 = sphi 0, %s105
      %s106 = sphi 0, %s103
      %s107 = sphi 0, %s106
      %s123 = sphi 0, %s107
      %s131 = sphi 0, %s133
      %s134 = sphi 0, %s131
      %s135 = sphi 0, %s134
      %s151 = sphi 0, %s135
    $region4: #{tpu_custom_call.1} parent=1 // loop_header_branch
      %21 = sbr.rel (%p19) target = $region8
    $region5: #{tpu_custom_call.1} parent=1 // loop_body
      %s23 = ssub.s32 %s18, 1
      %s24 = ssub.s32 %s18, 2
      %s34 = sadd.s32 1, %s27
      %p35 = scmp.ge.s32.totalorder %s34, 1
      %s36 = scalar_select %p35, 0, %s34
      %s37 = sadd.s32 1, %s26
      %s38 = scalar_select %p35, %s37, %s26
      %p39 = scmp.ge.s32.totalorder %s38, 2
      %s40 = scalar_select %p39, 0, %s38
      %s41 = sadd.s32 1, %s25
      %s42 = scalar_select %p39, %s41, %s25
      %p43 = scmp.ge.s32.totalorder %s42, 2
      %s44 = scalar_select %p43, 0, %s42
      %s45 = ssub.s32 %s25, %s44
      %s46 = ssub.s32 %s27, %s36
      %s47 = sor.u32 %s45, %s46
      %p48 = scmp.eq.s32.totalorder %s47, 0
      %s50 = sadd.s32 %s49, 1
      %s51 = scalar_select %p48, %s49, %s50
      %p54 = pneg %p48
      %p55 = scmp.eq.s32.totalorder %s18, 3
      %p56 = por %p54, %p55
      %p57 = scmp.ne.s32.totalorder %s49, %s52
      %p58 = scmp.eq.s32.totalorder %s18, 0
      %p59 = por %p57, %p58
      %p60 = scmp.ne.s32.totalorder %s49, %s52
      %p61 = scmp.eq.s32.totalorder %s23, 3
      %p62 = por %p60, %p61
      %p63 = scmp.ne.s32.totalorder %s52, %s53
      %p64 = scmp.eq.s32.totalorder %s23, 0
      %p65 = por %p63, %p64
      %p66 = scmp.ne.s32.totalorder %s52, %s53
      %p67 = scmp.eq.s32.totalorder %s24, 3
      %p68 = por %p66, %p67
      %p70 = scmp.ne.s32.totalorder %s53, %s69
      %p71 = scmp.eq.s32.totalorder %s24, 0
      %p72 = por %p70, %p71
      %s73 = ssub.s32 %s27, %s36
      %s74 = ssub.s32 %s26, %s40
      %s75 = sor.u32 %s73, %s74
      %p76 = scmp.eq.s32.totalorder %s75, 0
      %s78 = sadd.s32 %s77, 1
      %s79 = scalar_select %p76, %s77, %s78
      %p82 = pneg %p76
      %p83 = scmp.eq.s32.totalorder %s18, 3
      %p84 = por %p82, %p83
      %p85 = scmp.ne.s32.totalorder %s77, %s80
      %p86 = scmp.eq.s32.totalorder %s18, 0
      %p87 = por %p85, %p86
      %p88 = scmp.ne.s32.totalorder %s77, %s80
      %p89 = scmp.eq.s32.totalorder %s23, 3
      %p90 = por %p88, %p89
      %p91 = scmp.ne.s32.totalorder %s80, %s81
      %p92 = scmp.eq.s32.totalorder %s23, 0
      %p93 = por %p91, %p92
      %p94 = scmp.ne.s32.totalorder %s80, %s81
      %p95 = scmp.eq.s32.totalorder %s24, 3
      %p96 = por %p94, %p95
      %p98 = scmp.ne.s32.totalorder %s81, %s97
      %p99 = scmp.eq.s32.totalorder %s24, 0
      %p100 = por %p98, %p99
      %s101 = ssub.s32 %s26, %s40
      %p102 = scmp.eq.s32.totalorder %s101, 0
      %s104 = sadd.s32 %s103, 1
      %s105 = scalar_select %p102, %s103, %s104
      %p108 = pneg %p102
      %p109 = scmp.eq.s32.totalorder %s18, 3
      %p110 = por %p108, %p109
      %p111 = scmp.ne.s32.totalorder %s103, %s106
      %p112 = scmp.eq.s32.totalorder %s18, 0
      %p113 = por %p111, %p112
      %p114 = scmp.ne.s32.totalorder %s103, %s106
      %p115 = scmp.eq.s32.totalorder %s23, 3
      %p116 = por %p114, %p115
      %p117 = scmp.ne.s32.totalorder %s106, %s107
      %p118 = scmp.eq.s32.totalorder %s23, 0
      %p119 = por %p117, %p118
      %p120 = scmp.ne.s32.totalorder %s106, %s107
      %p121 = scmp.eq.s32.totalorder %s24, 3
      %p122 = por %p120, %p121
      %p124 = scmp.ne.s32.totalorder %s107, %s123
      %p125 = scmp.eq.s32.totalorder %s24, 0
      %p126 = por %p124, %p125
      %s127 = ssub.s32 %s25, %s44
      %s128 = ssub.s32 %s26, %s40
      %s129 = sor.u32 %s127, %s128
      %p130 = scmp.eq.s32.totalorder %s129, 0
      %s132 = sadd.s32 %s131, 1
      %s133 = scalar_select %p130, %s131, %s132
      %p136 = pneg %p130
      %p137 = scmp.eq.s32.totalorder %s18, 3
      %p138 = por %p136, %p137
      %p139 = scmp.ne.s32.totalorder %s131, %s134
      %p140 = scmp.eq.s32.totalorder %s18, 0
      %p141 = por %p139, %p140
      %p142 = scmp.ne.s32.totalorder %s131, %s134
      %p143 = scmp.eq.s32.totalorder %s23, 3
      %p144 = por %p142, %p143
      %p145 = scmp.ne.s32.totalorder %s134, %s135
      %p146 = scmp.eq.s32.totalorder %s23, 0
      %p147 = por %p145, %p146
      %p148 = scmp.ne.s32.totalorder %s134, %s135
      %p149 = scmp.eq.s32.totalorder %s24, 3
      %p150 = por %p148, %p149
      %p152 = scmp.ne.s32.totalorder %s135, %s151
      %p153 = scmp.eq.s32.totalorder %s24, 0
      %p154 = por %p152, %p153
      %p155 = scmp.le.s32.totalorder 1, %s18
      %p156 = scmp.lt.s32.totalorder %s18, 5
      %p157 = pnand %p155, %p156
      %p158 = pneg %p157
      // Predicated region
      $region9: #{tpu_custom_call.1} parent=5 // pred_check
        _
      $region10: #{tpu_custom_call.1} parent=5 // pred_check_branch
        %160 = sbr.rel (%p157) target = $region12
      $region11: #{tpu_custom_call.1} parent=5 // pred_region
        %s161 = ssub.s32 %s18, 1
      $region12: #{tpu_custom_call.1} parent=5 // pred_fallthru
        _
      %p162 = scmp.lt.s32.totalorder %s18, 4
      // Predicated region
      $region13: #{tpu_custom_call.1} parent=5 // pred_check
        %p163 = pneg %p162
      $region14: #{tpu_custom_call.1} parent=5 // pred_check_branch
        %165 = sbr.rel (%p163) target = $region16
      $region15: #{tpu_custom_call.1} parent=5 // pred_region
        // Predicated region
        $region17: #{tpu_custom_call.1} parent=15 // pred_check
          %p166 = pneg %p59
        $region18: #{tpu_custom_call.1} parent=15 // pred_check_branch
          %168 = sbr.rel (%p166) target = $region20
        $region19: #{tpu_custom_call.1} parent=15 // pred_region
          %s169 = sand.u32 %s49, 1
          %s170 = scalar_lea.sflag [#allocation4], %s169
          %s171 = sand.u32 %s49, 1
          %s172 = smul.addr %s171, 512
          %s173 = scalar_lea.vmem [#allocation3], %s172
          %s174 = smul.u32 64, %s25
          %s175 = smul.u32 2, %s27
          %s177 = ssub.s32 8192, 8192
          %178 = vsyncadd %s170, %s177
          %s179 = smul.addr %s174, 2
          %s180 = sadd.s32 %s175, %s179
          %s181 = smul.addr %s180, 64
          %s182 = scalar_lea.hbm %s0, %s181
          %s183 = sshll.u32 %s173, 4
          %s184 = int_to_ptr.vmem [resolvable:$true] %s183
          %189 = dma.hbm_to_vmem [thread:$0]  %s182, 8192, %s184, %s170, 128, 128, 8
        $region20: #{tpu_custom_call.1} parent=15 // pred_fallthru
          _
        // Predicated region
        $region21: #{tpu_custom_call.1} parent=15 // pred_check
          %p190 = pneg %p87
        $region22: #{tpu_custom_call.1} parent=15 // pred_check_branch
          %192 = sbr.rel (%p190) target = $region24
        $region23: #{tpu_custom_call.1} parent=15 // pred_region
          %s193 = sand.u32 %s18, 1
          %s194 = scalar_lea.sflag [#allocation7], %s193
          %s195 = sand.u32 %s77, 1
          %s196 = smul.addr %s195, 512
          %s197 = scalar_lea.vmem [#allocation6], %s196
          %s198 = smul.u32 32, %s27
          %s199 = smul.u32 4, %s26
          %s201 = ssub.s32 8192, 8192
          %202 = vsyncadd %s194, %s201
          %s203 = smul.addr %s198, 8
          %s204 = sadd.s32 %s199, %s203
          %s205 = smul.addr %s204, 64
          %s206 = scalar_lea.hbm %s1, %s205
          %s207 = sshll.u32 %s197, 4
          %s208 = int_to_ptr.vmem [resolvable:$true] %s207
          %213 = dma.hbm_to_vmem [thread:$0]  %s206, 8192, %s208, %s194, 512, 256, 16
        $region24: #{tpu_custom_call.1} parent=15 // pred_fallthru
          _
        // Predicated region
        $region25: #{tpu_custom_call.1} parent=15 // pred_check
          %p214 = pneg %p113
        $region26: #{tpu_custom_call.1} parent=15 // pred_check_branch
          %216 = sbr.rel (%p214) target = $region28
        $region27: #{tpu_custom_call.1} parent=15 // pred_region
          %s217 = sand.u32 %s18, 1
          %s218 = scalar_lea.sflag [#allocation7], %s217
          %s219 = sand.u32 %s103, 1
          %s220 = smul.addr %s219, 4
          %s221 = scalar_lea.vmem [#allocation8], %s220
          %s222 = smul.u32 4, %s26
          %s224 = ssub.s32 64, 64
          %225 = vsyncadd %s218, %s224
          %s226 = smul.addr %s222, 16
          %s227 = scalar_lea.hbm %s2, %s226
          %s229 = sshll.u32 %s221, 4
          %s230 = int_to_ptr.vmem [resolvable:$true] %s229
          %232 = dma.hbm_to_vmem [thread:$0]  %s227, 64, %s230, %s218
        $region28: #{tpu_custom_call.1} parent=15 // pred_fallthru
          _
      $region16: #{tpu_custom_call.1} parent=5 // pred_fallthru
        _
      %p233 = scmp.le.s32.totalorder 1, %s18
      %p234 = scmp.lt.s32.totalorder %s18, 5
      %p235 = pnand %p233, %p234
      %p236 = pneg %p235
      // Predicated region
      $region29: #{tpu_custom_call.1} parent=5 // pred_check
        _
      $region30: #{tpu_custom_call.1} parent=5 // pred_check_branch
        %238 = sbr.rel (%p235) target = $region32
      $region31: #{tpu_custom_call.1} parent=5 // pred_region
        %s239 = ssub.s32 %s18, 1
        %s240 = sand.u32 %s52, 1
        %s241 = scalar_lea.sflag [#allocation4], %s240
        %s242 = sand.u32 %s52, 1
        %s243 = smul.addr %s242, 512
        %s244 = scalar_lea.vmem [#allocation3], %s243
        // Predicated region
        $region33: #{tpu_custom_call.1} parent=31 // pred_check
          %p245 = pneg %p65
        $region34: #{tpu_custom_call.1} parent=31 // pred_check_branch
          %247 = sbr.rel (%p245) target = $region36
        $region35: #{tpu_custom_call.1} parent=31 // pred_region
          %248 = dma.done %s241, 8192
        $region36: #{tpu_custom_call.1} parent=31 // pred_fallthru
          _
        %s249 = sand.u32 %s23, 1
        %s250 = scalar_lea.sflag [#allocation7], %s249
        %s251 = sand.u32 %s80, 1
        %s252 = smul.addr %s251, 512
        %s253 = scalar_lea.vmem [#allocation6], %s252
        // Predicated region
        $region37: #{tpu_custom_call.1} parent=31 // pred_check
          %p254 = pneg %p93
        $region38: #{tpu_custom_call.1} parent=31 // pred_check_branch
          %256 = sbr.rel (%p254) target = $region40
        $region39: #{tpu_custom_call.1} parent=31 // pred_region
          %257 = dma.done %s250, 8192
        $region40: #{tpu_custom_call.1} parent=31 // pred_fallthru
          _
        %s258 = sand.u32 %s23, 1
        %s259 = scalar_lea.sflag [#allocation7], %s258
        %s260 = sand.u32 %s106, 1
        %s261 = smul.addr %s260, 4
        %s262 = scalar_lea.vmem [#allocation8], %s261
        // Predicated region
        $region41: #{tpu_custom_call.1} parent=31 // pred_check
          %p263 = pneg %p119
        $region42: #{tpu_custom_call.1} parent=31 // pred_check_branch
          %265 = sbr.rel (%p263) target = $region44
        $region43: #{tpu_custom_call.1} parent=31 // pred_region
          %266 = dma.done %s259, 64
        $region44: #{tpu_custom_call.1} parent=31 // pred_fallthru
          _
        %s267 = sand.u32 %s52, 1
        %s268 = scalar_lea.sflag [#allocation4], %s267
        %s269 = sand.u32 %s52, 1
        %s270 = smul.addr %s269, 512
        %s271 = scalar_lea.vmem [#allocation3], %s270
        %p272 = pneg %p65
        %p273 = pneg %p62
        %s274 = sand.u32 %s23, 1
        %s275 = scalar_lea.sflag [#allocation7], %s274
        %s276 = sand.u32 %s80, 1
        %s277 = smul.addr %s276, 512
        %s278 = scalar_lea.vmem [#allocation6], %s277
        %p279 = pneg %p93
        %p280 = pneg %p90
        %s281 = sand.u32 %s23, 1
        %s282 = scalar_lea.sflag [#allocation7], %s281
        %s283 = sand.u32 %s106, 1
        %s284 = smul.addr %s283, 4
        %s285 = scalar_lea.vmem [#allocation8], %s284
        %p286 = pneg %p119
        %p287 = pneg %p116
        %p288 = pneg %p147
        %p289 = pneg %p144
        %s290 = sand.u32 %s134, 1
        %s291 = scalar_lea.sflag [#allocation5], %s290
        %s292 = sand.u32 %s134, 1
        %s293 = smul.addr %s292, 1024
        %s294 = scalar_lea.vmem [#allocation9], %s293
        %s295 = smul.u32 64, %s28
        %s296 = smul.u32 2, %s30
        %s297 = smul.u32 32, %s30
        %s298 = smul.u32 4, %s29
        %s299 = smul.u32 4, %s29
        %s300 = smul.u32 64, %s28
        %s301 = smul.u32 4, %s29
        %p302 = scmp.eq.s32.totalorder %s30, 0
        // Predicated region
        $region45: #{tpu_custom_call.1} parent=31 // pred_check
          %p303 = pneg %p302
        $region46: #{tpu_custom_call.1} parent=31 // pred_check_branch
          %305 = sbr.rel (%p303) target = $region48
        $region47: #{tpu_custom_call.1} parent=31 // pred_region
          %306 = vst [vmem:[#allocation2] sm:$0xff] 0.0
          %307 = vst [vmem:[#allocation2 + $0x8] sm:$0xff] 0.0
          %308 = vst [vmem:[#allocation2 + $0x10] sm:$0xff] 0.0
          %309 = vst [vmem:[#allocation2 + $0x18] sm:$0xff] 0.0
          %310 = vst [vmem:[#allocation2 + $0x20] sm:$0xff] 0.0
          %311 = vst [vmem:[#allocation2 + $0x28] sm:$0xff] 0.0
          %312 = vst [vmem:[#allocation2 + $0x30] sm:$0xff] 0.0
          %313 = vst [vmem:[#allocation2 + $0x38] sm:$0xff] 0.0
          %314 = vst [vmem:[#allocation2 + $0x40] sm:$0xff] 0.0
          %315 = vst [vmem:[#allocation2 + $0x48] sm:$0xff] 0.0
          %316 = vst [vmem:[#allocation2 + $0x50] sm:$0xff] 0.0
          %317 = vst [vmem:[#allocation2 + $0x58] sm:$0xff] 0.0
          %318 = vst [vmem:[#allocation2 + $0x60] sm:$0xff] 0.0
          %319 = vst [vmem:[#allocation2 + $0x68] sm:$0xff] 0.0
          %320 = vst [vmem:[#allocation2 + $0x70] sm:$0xff] 0.0
          %321 = vst [vmem:[#allocation2 + $0x78] sm:$0xff] 0.0
          %322 = vst [vmem:[#allocation2 + $0x80] sm:$0xff] 0.0
          %323 = vst [vmem:[#allocation2 + $0x88] sm:$0xff] 0.0
          %324 = vst [vmem:[#allocation2 + $0x90] sm:$0xff] 0.0
          %325 = vst [vmem:[#allocation2 + $0x98] sm:$0xff] 0.0
          %326 = vst [vmem:[#allocation2 + $0xa0] sm:$0xff] 0.0
          %327 = vst [vmem:[#allocation2 + $0xa8] sm:$0xff] 0.0
          %328 = vst [vmem:[#allocation2 + $0xb0] sm:$0xff] 0.0
          %329 = vst [vmem:[#allocation2 + $0xb8] sm:$0xff] 0.0
          %330 = vst [vmem:[#allocation2 + $0xc0] sm:$0xff] 0.0
          %331 = vst [vmem:[#allocation2 + $0xc8] sm:$0xff] 0.0
          %332 = vst [vmem:[#allocation2 + $0xd0] sm:$0xff] 0.0
          %333 = vst [vmem:[#allocation2 + $0xd8] sm:$0xff] 0.0
          %334 = vst [vmem:[#allocation2 + $0xe0] sm:$0xff] 0.0
          %335 = vst [vmem:[#allocation2 + $0xe8] sm:$0xff] 0.0
          %336 = vst [vmem:[#allocation2 + $0xf0] sm:$0xff] 0.0
          %337 = vst [vmem:[#allocation2 + $0xf8] sm:$0xff] 0.0
          %338 = vst [vmem:[#allocation2 + $0x100] sm:$0xff] 0.0
          %339 = vst [vmem:[#allocation2 + $0x108] sm:$0xff] 0.0
          %340 = vst [vmem:[#allocation2 + $0x110] sm:$0xff] 0.0
          %341 = vst [vmem:[#allocation2 + $0x118] sm:$0xff] 0.0
          %342 = vst [vmem:[#allocation2 + $0x120] sm:$0xff] 0.0
          %343 = vst [vmem:[#allocation2 + $0x128] sm:$0xff] 0.0
          %344 = vst [vmem:[#allocation2 + $0x130] sm:$0xff] 0.0
          %345 = vst [vmem:[#allocation2 + $0x138] sm:$0xff] 0.0
          %346 = vst [vmem:[#allocation2 + $0x140] sm:$0xff] 0.0
          %347 = vst [vmem:[#allocation2 + $0x148] sm:$0xff] 0.0
          %348 = vst [vmem:[#allocation2 + $0x150] sm:$0xff] 0.0
          %349 = vst [vmem:[#allocation2 + $0x158] sm:$0xff] 0.0
          %350 = vst [vmem:[#allocation2 + $0x160] sm:$0xff] 0.0
          %351 = vst [vmem:[#allocation2 + $0x168] sm:$0xff] 0.0
          %352 = vst [vmem:[#allocation2 + $0x170] sm:$0xff] 0.0
          %353 = vst [vmem:[#allocation2 + $0x178] sm:$0xff] 0.0
          %354 = vst [vmem:[#allocation2 + $0x180] sm:$0xff] 0.0
          %355 = vst [vmem:[#allocation2 + $0x188] sm:$0xff] 0.0
          %356 = vst [vmem:[#allocation2 + $0x190] sm:$0xff] 0.0
          %357 = vst [vmem:[#allocation2 + $0x198] sm:$0xff] 0.0
          %358 = vst [vmem:[#allocation2 + $0x1a0] sm:$0xff] 0.0
          %359 = vst [vmem:[#allocation2 + $0x1a8] sm:$0xff] 0.0
          %360 = vst [vmem:[#allocation2 + $0x1b0] sm:$0xff] 0.0
          %361 = vst [vmem:[#allocation2 + $0x1b8] sm:$0xff] 0.0
          %362 = vst [vmem:[#allocation2 + $0x1c0] sm:$0xff] 0.0
          %363 = vst [vmem:[#allocation2 + $0x1c8] sm:$0xff] 0.0
          %364 = vst [vmem:[#allocation2 + $0x1d0] sm:$0xff] 0.0
          %365 = vst [vmem:[#allocation2 + $0x1d8] sm:$0xff] 0.0
          %366 = vst [vmem:[#allocation2 + $0x1e0] sm:$0xff] 0.0
          %367 = vst [vmem:[#allocation2 + $0x1e8] sm:$0xff] 0.0
          %368 = vst [vmem:[#allocation2 + $0x1f0] sm:$0xff] 0.0
          %369 = vst [vmem:[#allocation2 + $0x1f8] sm:$0xff] 0.0
          %370 = vst [vmem:[#allocation2 + $0x200] sm:$0xff] 0.0
          %371 = vst [vmem:[#allocation2 + $0x208] sm:$0xff] 0.0
          %372 = vst [vmem:[#allocation2 + $0x210] sm:$0xff] 0.0
          %373 = vst [vmem:[#allocation2 + $0x218] sm:$0xff] 0.0
          %374 = vst [vmem:[#allocation2 + $0x220] sm:$0xff] 0.0
          %375 = vst [vmem:[#allocation2 + $0x228] sm:$0xff] 0.0
          %376 = vst [vmem:[#allocation2 + $0x230] sm:$0xff] 0.0
          %377 = vst [vmem:[#allocation2 + $0x238] sm:$0xff] 0.0
          %378 = vst [vmem:[#allocation2 + $0x240] sm:$0xff] 0.0
          %379 = vst [vmem:[#allocation2 + $0x248] sm:$0xff] 0.0
          %380 = vst [vmem:[#allocation2 + $0x250] sm:$0xff] 0.0
          %381 = vst [vmem:[#allocation2 + $0x258] sm:$0xff] 0.0
          %382 = vst [vmem:[#allocation2 + $0x260] sm:$0xff] 0.0
          %383 = vst [vmem:[#allocation2 + $0x268] sm:$0xff] 0.0
          %384 = vst [vmem:[#allocation2 + $0x270] sm:$0xff] 0.0
          %385 = vst [vmem:[#allocation2 + $0x278] sm:$0xff] 0.0
          %386 = vst [vmem:[#allocation2 + $0x280] sm:$0xff] 0.0
          %387 = vst [vmem:[#allocation2 + $0x288] sm:$0xff] 0.0
          %388 = vst [vmem:[#allocation2 + $0x290] sm:$0xff] 0.0
          %389 = vst [vmem:[#allocation2 + $0x298] sm:$0xff] 0.0
          %390 = vst [vmem:[#allocation2 + $0x2a0] sm:$0xff] 0.0
          %391 = vst [vmem:[#allocation2 + $0x2a8] sm:$0xff] 0.0
          %392 = vst [vmem:[#allocation2 + $0x2b0] sm:$0xff] 0.0
          %393 = vst [vmem:[#allocation2 + $0x2b8] sm:$0xff] 0.0
          %394 = vst [vmem:[#allocation2 + $0x2c0] sm:$0xff] 0.0
          %395 = vst [vmem:[#allocation2 + $0x2c8] sm:$0xff] 0.0
          %396 = vst [vmem:[#allocation2 + $0x2d0] sm:$0xff] 0.0
          %397 = vst [vmem:[#allocation2 + $0x2d8] sm:$0xff] 0.0
          %398 = vst [vmem:[#allocation2 + $0x2e0] sm:$0xff] 0.0
          %399 = vst [vmem:[#allocation2 + $0x2e8] sm:$0xff] 0.0
          %400 = vst [vmem:[#allocation2 + $0x2f0] sm:$0xff] 0.0
          %401 = vst [vmem:[#allocation2 + $0x2f8] sm:$0xff] 0.0
          %402 = vst [vmem:[#allocation2 + $0x300] sm:$0xff] 0.0
          %403 = vst [vmem:[#allocation2 + $0x308] sm:$0xff] 0.0
          %404 = vst [vmem:[#allocation2 + $0x310] sm:$0xff] 0.0
          %405 = vst [vmem:[#allocation2 + $0x318] sm:$0xff] 0.0
          %406 = vst [vmem:[#allocation2 + $0x320] sm:$0xff] 0.0
          %407 = vst [vmem:[#allocation2 + $0x328] sm:$0xff] 0.0
          %408 = vst [vmem:[#allocation2 + $0x330] sm:$0xff] 0.0
          %409 = vst [vmem:[#allocation2 + $0x338] sm:$0xff] 0.0
          %410 = vst [vmem:[#allocation2 + $0x340] sm:$0xff] 0.0
          %411 = vst [vmem:[#allocation2 + $0x348] sm:$0xff] 0.0
          %412 = vst [vmem:[#allocation2 + $0x350] sm:$0xff] 0.0
          %413 = vst [vmem:[#allocation2 + $0x358] sm:$0xff] 0.0
          %414 = vst [vmem:[#allocation2 + $0x360] sm:$0xff] 0.0
          %415 = vst [vmem:[#allocation2 + $0x368] sm:$0xff] 0.0
          %416 = vst [vmem:[#allocation2 + $0x370] sm:$0xff] 0.0
          %417 = vst [vmem:[#allocation2 + $0x378] sm:$0xff] 0.0
          %418 = vst [vmem:[#allocation2 + $0x380] sm:$0xff] 0.0
          %419 = vst [vmem:[#allocation2 + $0x388] sm:$0xff] 0.0
          %420 = vst [vmem:[#allocation2 + $0x390] sm:$0xff] 0.0
          %421 = vst [vmem:[#allocation2 + $0x398] sm:$0xff] 0.0
          %422 = vst [vmem:[#allocation2 + $0x3a0] sm:$0xff] 0.0
          %423 = vst [vmem:[#allocation2 + $0x3a8] sm:$0xff] 0.0
          %424 = vst [vmem:[#allocation2 + $0x3b0] sm:$0xff] 0.0
          %425 = vst [vmem:[#allocation2 + $0x3b8] sm:$0xff] 0.0
          %426 = vst [vmem:[#allocation2 + $0x3c0] sm:$0xff] 0.0
          %427 = vst [vmem:[#allocation2 + $0x3c8] sm:$0xff] 0.0
          %428 = vst [vmem:[#allocation2 + $0x3d0] sm:$0xff] 0.0
          %429 = vst [vmem:[#allocation2 + $0x3d8] sm:$0xff] 0.0
          %430 = vst [vmem:[#allocation2 + $0x3e0] sm:$0xff] 0.0
          %431 = vst [vmem:[#allocation2 + $0x3e8] sm:$0xff] 0.0
          %432 = vst [vmem:[#allocation2 + $0x3f0] sm:$0xff] 0.0
          %433 = vst [vmem:[#allocation2 + $0x3f8] sm:$0xff] 0.0
          %434 = vst [vmem:[#allocation2 + $0x400] sm:$0xff] 0.0
          %435 = vst [vmem:[#allocation2 + $0x408] sm:$0xff] 0.0
          %436 = vst [vmem:[#allocation2 + $0x410] sm:$0xff] 0.0
          %437 = vst [vmem:[#allocation2 + $0x418] sm:$0xff] 0.0
          %438 = vst [vmem:[#allocation2 + $0x420] sm:$0xff] 0.0
          %439 = vst [vmem:[#allocation2 + $0x428] sm:$0xff] 0.0
          %440 = vst [vmem:[#allocation2 + $0x430] sm:$0xff] 0.0
          %441 = vst [vmem:[#allocation2 + $0x438] sm:$0xff] 0.0
          %442 = vst [vmem:[#allocation2 + $0x440] sm:$0xff] 0.0
          %443 = vst [vmem:[#allocation2 + $0x448] sm:$0xff] 0.0
          %444 = vst [vmem:[#allocation2 + $0x450] sm:$0xff] 0.0
          %445 = vst [vmem:[#allocation2 + $0x458] sm:$0xff] 0.0
          %446 = vst [vmem:[#allocation2 + $0x460] sm:$0xff] 0.0
          %447 = vst [vmem:[#allocation2 + $0x468] sm:$0xff] 0.0
          %448 = vst [vmem:[#allocation2 + $0x470] sm:$0xff] 0.0
          %449 = vst [vmem:[#allocation2 + $0x478] sm:$0xff] 0.0
          %450 = vst [vmem:[#allocation2 + $0x480] sm:$0xff] 0.0
          %451 = vst [vmem:[#allocation2 + $0x488] sm:$0xff] 0.0
          %452 = vst [vmem:[#allocation2 + $0x490] sm:$0xff] 0.0
          %453 = vst [vmem:[#allocation2 + $0x498] sm:$0xff] 0.0
          %454 = vst [vmem:[#allocation2 + $0x4a0] sm:$0xff] 0.0
          %455 = vst [vmem:[#allocation2 + $0x4a8] sm:$0xff] 0.0
          %456 = vst [vmem:[#allocation2 + $0x4b0] sm:$0xff] 0.0
          %457 = vst [vmem:[#allocation2 + $0x4b8] sm:$0xff] 0.0
          %458 = vst [vmem:[#allocation2 + $0x4c0] sm:$0xff] 0.0
          %459 = vst [vmem:[#allocation2 + $0x4c8] sm:$0xff] 0.0
          %460 = vst [vmem:[#allocation2 + $0x4d0] sm:$0xff] 0.0
          %461 = vst [vmem:[#allocation2 + $0x4d8] sm:$0xff] 0.0
          %462 = vst [vmem:[#allocation2 + $0x4e0] sm:$0xff] 0.0
          %463 = vst [vmem:[#allocation2 + $0x4e8] sm:$0xff] 0.0
          %464 = vst [vmem:[#allocation2 + $0x4f0] sm:$0xff] 0.0
          %465 = vst [vmem:[#allocation2 + $0x4f8] sm:$0xff] 0.0
          %466 = vst [vmem:[#allocation2 + $0x500] sm:$0xff] 0.0
          %467 = vst [vmem:[#allocation2 + $0x508] sm:$0xff] 0.0
          %468 = vst [vmem:[#allocation2 + $0x510] sm:$0xff] 0.0
          %469 = vst [vmem:[#allocation2 + $0x518] sm:$0xff] 0.0
          %470 = vst [vmem:[#allocation2 + $0x520] sm:$0xff] 0.0
          %471 = vst [vmem:[#allocation2 + $0x528] sm:$0xff] 0.0
          %472 = vst [vmem:[#allocation2 + $0x530] sm:$0xff] 0.0
          %473 = vst [vmem:[#allocation2 + $0x538] sm:$0xff] 0.0
          %474 = vst [vmem:[#allocation2 + $0x540] sm:$0xff] 0.0
          %475 = vst [vmem:[#allocation2 + $0x548] sm:$0xff] 0.0
          %476 = vst [vmem:[#allocation2 + $0x550] sm:$0xff] 0.0
          %477 = vst [vmem:[#allocation2 + $0x558] sm:$0xff] 0.0
          %478 = vst [vmem:[#allocation2 + $0x560] sm:$0xff] 0.0
          %479 = vst [vmem:[#allocation2 + $0x568] sm:$0xff] 0.0
          %480 = vst [vmem:[#allocation2 + $0x570] sm:$0xff] 0.0
          %481 = vst [vmem:[#allocation2 + $0x578] sm:$0xff] 0.0
          %482 = vst [vmem:[#allocation2 + $0x580] sm:$0xff] 0.0
          %483 = vst [vmem:[#allocation2 + $0x588] sm:$0xff] 0.0
          %484 = vst [vmem:[#allocation2 + $0x590] sm:$0xff] 0.0
          %485 = vst [vmem:[#allocation2 + $0x598] sm:$0xff] 0.0
          %486 = vst [vmem:[#allocation2 + $0x5a0] sm:$0xff] 0.0
          %487 = vst [vmem:[#allocation2 + $0x5a8] sm:$0xff] 0.0
          %488 = vst [vmem:[#allocation2 + $0x5b0] sm:$0xff] 0.0
          %489 = vst [vmem:[#allocation2 + $0x5b8] sm:$0xff] 0.0
          %490 = vst [vmem:[#allocation2 + $0x5c0] sm:$0xff] 0.0
          %491 = vst [vmem:[#allocation2 + $0x5c8] sm:$0xff] 0.0
          %492 = vst [vmem:[#allocation2 + $0x5d0] sm:$0xff] 0.0
          %493 = vst [vmem:[#allocation2 + $0x5d8] sm:$0xff] 0.0
          %494 = vst [vmem:[#allocation2 + $0x5e0] sm:$0xff] 0.0
          %495 = vst [vmem:[#allocation2 + $0x5e8] sm:$0xff] 0.0
          %496 = vst [vmem:[#allocation2 + $0x5f0] sm:$0xff] 0.0
          %497 = vst [vmem:[#allocation2 + $0x5f8] sm:$0xff] 0.0
          %498 = vst [vmem:[#allocation2 + $0x600] sm:$0xff] 0.0
          %499 = vst [vmem:[#allocation2 + $0x608] sm:$0xff] 0.0
          %500 = vst [vmem:[#allocation2 + $0x610] sm:$0xff] 0.0
          %501 = vst [vmem:[#allocation2 + $0x618] sm:$0xff] 0.0
          %502 = vst [vmem:[#allocation2 + $0x620] sm:$0xff] 0.0
          %503 = vst [vmem:[#allocation2 + $0x628] sm:$0xff] 0.0
          %504 = vst [vmem:[#allocation2 + $0x630] sm:$0xff] 0.0
          %505 = vst [vmem:[#allocation2 + $0x638] sm:$0xff] 0.0
          %506 = vst [vmem:[#allocation2 + $0x640] sm:$0xff] 0.0
          %507 = vst [vmem:[#allocation2 + $0x648] sm:$0xff] 0.0
          %508 = vst [vmem:[#allocation2 + $0x650] sm:$0xff] 0.0
          %509 = vst [vmem:[#allocation2 + $0x658] sm:$0xff] 0.0
          %510 = vst [vmem:[#allocation2 + $0x660] sm:$0xff] 0.0
          %511 = vst [vmem:[#allocation2 + $0x668] sm:$0xff] 0.0
          %512 = vst [vmem:[#allocation2 + $0x670] sm:$0xff] 0.0
          %513 = vst [vmem:[#allocation2 + $0x678] sm:$0xff] 0.0
          %514 = vst [vmem:[#allocation2 + $0x680] sm:$0xff] 0.0
          %515 = vst [vmem:[#allocation2 + $0x688] sm:$0xff] 0.0
          %516 = vst [vmem:[#allocation2 + $0x690] sm:$0xff] 0.0
          %517 = vst [vmem:[#allocation2 + $0x698] sm:$0xff] 0.0
          %518 = vst [vmem:[#allocation2 + $0x6a0] sm:$0xff] 0.0
          %519 = vst [vmem:[#allocation2 + $0x6a8] sm:$0xff] 0.0
          %520 = vst [vmem:[#allocation2 + $0x6b0] sm:$0xff] 0.0
          %521 = vst [vmem:[#allocation2 + $0x6b8] sm:$0xff] 0.0
          %522 = vst [vmem:[#allocation2 + $0x6c0] sm:$0xff] 0.0
          %523 = vst [vmem:[#allocation2 + $0x6c8] sm:$0xff] 0.0
          %524 = vst [vmem:[#allocation2 + $0x6d0] sm:$0xff] 0.0
          %525 = vst [vmem:[#allocation2 + $0x6d8] sm:$0xff] 0.0
          %526 = vst [vmem:[#allocation2 + $0x6e0] sm:$0xff] 0.0
          %527 = vst [vmem:[#allocation2 + $0x6e8] sm:$0xff] 0.0
          %528 = vst [vmem:[#allocation2 + $0x6f0] sm:$0xff] 0.0
          %529 = vst [vmem:[#allocation2 + $0x6f8] sm:$0xff] 0.0
          %530 = vst [vmem:[#allocation2 + $0x700] sm:$0xff] 0.0
          %531 = vst [vmem:[#allocation2 + $0x708] sm:$0xff] 0.0
          %532 = vst [vmem:[#allocation2 + $0x710] sm:$0xff] 0.0
          %533 = vst [vmem:[#allocation2 + $0x718] sm:$0xff] 0.0
          %534 = vst [vmem:[#allocation2 + $0x720] sm:$0xff] 0.0
          %535 = vst [vmem:[#allocation2 + $0x728] sm:$0xff] 0.0
          %536 = vst [vmem:[#allocation2 + $0x730] sm:$0xff] 0.0
          %537 = vst [vmem:[#allocation2 + $0x738] sm:$0xff] 0.0
          %538 = vst [vmem:[#allocation2 + $0x740] sm:$0xff] 0.0
          %539 = vst [vmem:[#allocation2 + $0x748] sm:$0xff] 0.0
          %540 = vst [vmem:[#allocation2 + $0x750] sm:$0xff] 0.0
          %541 = vst [vmem:[#allocation2 + $0x758] sm:$0xff] 0.0
          %542 = vst [vmem:[#allocation2 + $0x760] sm:$0xff] 0.0
          %543 = vst [vmem:[#allocation2 + $0x768] sm:$0xff] 0.0
          %544 = vst [vmem:[#allocation2 + $0x770] sm:$0xff] 0.0
          %545 = vst [vmem:[#allocation2 + $0x778] sm:$0xff] 0.0
          %546 = vst [vmem:[#allocation2 + $0x780] sm:$0xff] 0.0
          %547 = vst [vmem:[#allocation2 + $0x788] sm:$0xff] 0.0
          %548 = vst [vmem:[#allocation2 + $0x790] sm:$0xff] 0.0
          %549 = vst [vmem:[#allocation2 + $0x798] sm:$0xff] 0.0
          %550 = vst [vmem:[#allocation2 + $0x7a0] sm:$0xff] 0.0
          %551 = vst [vmem:[#allocation2 + $0x7a8] sm:$0xff] 0.0
          %552 = vst [vmem:[#allocation2 + $0x7b0] sm:$0xff] 0.0
          %553 = vst [vmem:[#allocation2 + $0x7b8] sm:$0xff] 0.0
          %554 = vst [vmem:[#allocation2 + $0x7c0] sm:$0xff] 0.0
          %555 = vst [vmem:[#allocation2 + $0x7c8] sm:$0xff] 0.0
          %556 = vst [vmem:[#allocation2 + $0x7d0] sm:$0xff] 0.0
          %557 = vst [vmem:[#allocation2 + $0x7d8] sm:$0xff] 0.0
          %558 = vst [vmem:[#allocation2 + $0x7e0] sm:$0xff] 0.0
          %559 = vst [vmem:[#allocation2 + $0x7e8] sm:$0xff] 0.0
          %560 = vst [vmem:[#allocation2 + $0x7f0] sm:$0xff] 0.0
          %561 = vst [vmem:[#allocation2 + $0x7f8] sm:$0xff] 0.0
        $region48: #{tpu_custom_call.1} parent=31 // pred_fallthru
          _
        %v562 = vld [vmem:[#allocation2] sm:$0xff]
        %v563 = vld [vmem:[#allocation2 + $0x8] sm:$0xff]
        %v564 = vld [vmem:[#allocation2 + $0x10] sm:$0xff]
        %v565 = vld [vmem:[#allocation2 + $0x18] sm:$0xff]
        %v566 = vld [vmem:[#allocation2 + $0x20] sm:$0xff]
        %v567 = vld [vmem:[#allocation2 + $0x28] sm:$0xff]
        %v568 = vld [vmem:[#allocation2 + $0x30] sm:$0xff]
        %v569 = vld [vmem:[#allocation2 + $0x38] sm:$0xff]
        %v570 = vld [vmem:[#allocation2 + $0x40] sm:$0xff]
        %v571 = vld [vmem:[#allocation2 + $0x48] sm:$0xff]
        %v572 = vld [vmem:[#allocation2 + $0x50] sm:$0xff]
        %v573 = vld [vmem:[#allocation2 + $0x58] sm:$0xff]
        %v574 = vld [vmem:[#allocation2 + $0x60] sm:$0xff]
        %v575 = vld [vmem:[#allocation2 + $0x68] sm:$0xff]
        %v576 = vld [vmem:[#allocation2 + $0x70] sm:$0xff]
        %v577 = vld [vmem:[#allocation2 + $0x78] sm:$0xff]
        %v578 = vld [vmem:[#allocation2 + $0x80] sm:$0xff]
        %v579 = vld [vmem:[#allocation2 + $0x88] sm:$0xff]
        %v580 = vld [vmem:[#allocation2 + $0x90] sm:$0xff]
        %v581 = vld [vmem:[#allocation2 + $0x98] sm:$0xff]
        %v582 = vld [vmem:[#allocation2 + $0xa0] sm:$0xff]
        %v583 = vld [vmem:[#allocation2 + $0xa8] sm:$0xff]
        %v584 = vld [vmem:[#allocation2 + $0xb0] sm:$0xff]
        %v585 = vld [vmem:[#allocation2 + $0xb8] sm:$0xff]
        %v586 = vld [vmem:[#allocation2 + $0xc0] sm:$0xff]
        %v587 = vld [vmem:[#allocation2 + $0xc8] sm:$0xff]
        %v588 = vld [vmem:[#allocation2 + $0xd0] sm:$0xff]
        %v589 = vld [vmem:[#allocation2 + $0xd8] sm:$0xff]
        %v590 = vld [vmem:[#allocation2 + $0xe0] sm:$0xff]
        %v591 = vld [vmem:[#allocation2 + $0xe8] sm:$0xff]
        %v592 = vld [vmem:[#allocation2 + $0xf0] sm:$0xff]
        %v593 = vld [vmem:[#allocation2 + $0xf8] sm:$0xff]
        %v594 = vld [vmem:[#allocation2 + $0x100] sm:$0xff]
        %v595 = vld [vmem:[#allocation2 + $0x108] sm:$0xff]
        %v596 = vld [vmem:[#allocation2 + $0x110] sm:$0xff]
        %v597 = vld [vmem:[#allocation2 + $0x118] sm:$0xff]
        %v598 = vld [vmem:[#allocation2 + $0x120] sm:$0xff]
        %v599 = vld [vmem:[#allocation2 + $0x128] sm:$0xff]
        %v600 = vld [vmem:[#allocation2 + $0x130] sm:$0xff]
        %v601 = vld [vmem:[#allocation2 + $0x138] sm:$0xff]
        %v602 = vld [vmem:[#allocation2 + $0x140] sm:$0xff]
        %v603 = vld [vmem:[#allocation2 + $0x148] sm:$0xff]
        %v604 = vld [vmem:[#allocation2 + $0x150] sm:$0xff]
        %v605 = vld [vmem:[#allocation2 + $0x158] sm:$0xff]
        %v606 = vld [vmem:[#allocation2 + $0x160] sm:$0xff]
        %v607 = vld [vmem:[#allocation2 + $0x168] sm:$0xff]
        %v608 = vld [vmem:[#allocation2 + $0x170] sm:$0xff]
        %v609 = vld [vmem:[#allocation2 + $0x178] sm:$0xff]
        %v610 = vld [vmem:[#allocation2 + $0x180] sm:$0xff]
        %v611 = vld [vmem:[#allocation2 + $0x188] sm:$0xff]
        %v612 = vld [vmem:[#allocation2 + $0x190] sm:$0xff]
        %v613 = vld [vmem:[#allocation2 + $0x198] sm:$0xff]
        %v614 = vld [vmem:[#allocation2 + $0x1a0] sm:$0xff]
        %v615 = vld [vmem:[#allocation2 + $0x1a8] sm:$0xff]
        %v616 = vld [vmem:[#allocation2 + $0x1b0] sm:$0xff]
        %v617 = vld [vmem:[#allocation2 + $0x1b8] sm:$0xff]
        %v618 = vld [vmem:[#allocation2 + $0x1c0] sm:$0xff]
        %v619 = vld [vmem:[#allocation2 + $0x1c8] sm:$0xff]
        %v620 = vld [vmem:[#allocation2 + $0x1d0] sm:$0xff]
        %v621 = vld [vmem:[#allocation2 + $0x1d8] sm:$0xff]
        %v622 = vld [vmem:[#allocation2 + $0x1e0] sm:$0xff]
        %v623 = vld [vmem:[#allocation2 + $0x1e8] sm:$0xff]
        %v624 = vld [vmem:[#allocation2 + $0x1f0] sm:$0xff]
        %v625 = vld [vmem:[#allocation2 + $0x1f8] sm:$0xff]
        %v626 = vld [vmem:[#allocation2 + $0x200] sm:$0xff]
        %v627 = vld [vmem:[#allocation2 + $0x208] sm:$0xff]
        %v628 = vld [vmem:[#allocation2 + $0x210] sm:$0xff]
        %v629 = vld [vmem:[#allocation2 + $0x218] sm:$0xff]
        %v630 = vld [vmem:[#allocation2 + $0x220] sm:$0xff]
        %v631 = vld [vmem:[#allocation2 + $0x228] sm:$0xff]
        %v632 = vld [vmem:[#allocation2 + $0x230] sm:$0xff]
        %v633 = vld [vmem:[#allocation2 + $0x238] sm:$0xff]
        %v634 = vld [vmem:[#allocation2 + $0x240] sm:$0xff]
        %v635 = vld [vmem:[#allocation2 + $0x248] sm:$0xff]
        %v636 = vld [vmem:[#allocation2 + $0x250] sm:$0xff]
        %v637 = vld [vmem:[#allocation2 + $0x258] sm:$0xff]
        %v638 = vld [vmem:[#allocation2 + $0x260] sm:$0xff]
        %v639 = vld [vmem:[#allocation2 + $0x268] sm:$0xff]
        %v640 = vld [vmem:[#allocation2 + $0x270] sm:$0xff]
        %v641 = vld [vmem:[#allocation2 + $0x278] sm:$0xff]
        %v642 = vld [vmem:[#allocation2 + $0x280] sm:$0xff]
        %v643 = vld [vmem:[#allocation2 + $0x288] sm:$0xff]
        %v644 = vld [vmem:[#allocation2 + $0x290] sm:$0xff]
        %v645 = vld [vmem:[#allocation2 + $0x298] sm:$0xff]
        %v646 = vld [vmem:[#allocation2 + $0x2a0] sm:$0xff]
        %v647 = vld [vmem:[#allocation2 + $0x2a8] sm:$0xff]
        %v648 = vld [vmem:[#allocation2 + $0x2b0] sm:$0xff]
        %v649 = vld [vmem:[#allocation2 + $0x2b8] sm:$0xff]
        %v650 = vld [vmem:[#allocation2 + $0x2c0] sm:$0xff]
        %v651 = vld [vmem:[#allocation2 + $0x2c8] sm:$0xff]
        %v652 = vld [vmem:[#allocation2 + $0x2d0] sm:$0xff]
        %v653 = vld [vmem:[#allocation2 + $0x2d8] sm:$0xff]
        %v654 = vld [vmem:[#allocation2 + $0x2e0] sm:$0xff]
        %v655 = vld [vmem:[#allocation2 + $0x2e8] sm:$0xff]
        %v656 = vld [vmem:[#allocation2 + $0x2f0] sm:$0xff]
        %v657 = vld [vmem:[#allocation2 + $0x2f8] sm:$0xff]
        %v658 = vld [vmem:[#allocation2 + $0x300] sm:$0xff]
        %v659 = vld [vmem:[#allocation2 + $0x308] sm:$0xff]
        %v660 = vld [vmem:[#allocation2 + $0x310] sm:$0xff]
        %v661 = vld [vmem:[#allocation2 + $0x318] sm:$0xff]
        %v662 = vld [vmem:[#allocation2 + $0x320] sm:$0xff]
        %v663 = vld [vmem:[#allocation2 + $0x328] sm:$0xff]
        %v664 = vld [vmem:[#allocation2 + $0x330] sm:$0xff]
        %v665 = vld [vmem:[#allocation2 + $0x338] sm:$0xff]
        %v666 = vld [vmem:[#allocation2 + $0x340] sm:$0xff]
        %v667 = vld [vmem:[#allocation2 + $0x348] sm:$0xff]
        %v668 = vld [vmem:[#allocation2 + $0x350] sm:$0xff]
        %v669 = vld [vmem:[#allocation2 + $0x358] sm:$0xff]
        %v670 = vld [vmem:[#allocation2 + $0x360] sm:$0xff]
        %v671 = vld [vmem:[#allocation2 + $0x368] sm:$0xff]
        %v672 = vld [vmem:[#allocation2 + $0x370] sm:$0xff]
        %v673 = vld [vmem:[#allocation2 + $0x378] sm:$0xff]
        %v674 = vld [vmem:[#allocation2 + $0x380] sm:$0xff]
        %v675 = vld [vmem:[#allocation2 + $0x388] sm:$0xff]
        %v676 = vld [vmem:[#allocation2 + $0x390] sm:$0xff]
        %v677 = vld [vmem:[#allocation2 + $0x398] sm:$0xff]
        %v678 = vld [vmem:[#allocation2 + $0x3a0] sm:$0xff]
        %v679 = vld [vmem:[#allocation2 + $0x3a8] sm:$0xff]
        %v680 = vld [vmem:[#allocation2 + $0x3b0] sm:$0xff]
        %v681 = vld [vmem:[#allocation2 + $0x3b8] sm:$0xff]
        %v682 = vld [vmem:[#allocation2 + $0x3c0] sm:$0xff]
        %v683 = vld [vmem:[#allocation2 + $0x3c8] sm:$0xff]
        %v684 = vld [vmem:[#allocation2 + $0x3d0] sm:$0xff]
        %v685 = vld [vmem:[#allocation2 + $0x3d8] sm:$0xff]
        %v686 = vld [vmem:[#allocation2 + $0x3e0] sm:$0xff]
        %v687 = vld [vmem:[#allocation2 + $0x3e8] sm:$0xff]
        %v688 = vld [vmem:[#allocation2 + $0x3f0] sm:$0xff]
        %v689 = vld [vmem:[#allocation2 + $0x3f8] sm:$0xff]
        %v690 = vld [vmem:[#allocation2 + $0x400] sm:$0xff]
        %v691 = vld [vmem:[#allocation2 + $0x408] sm:$0xff]
        %v692 = vld [vmem:[#allocation2 + $0x410] sm:$0xff]
        %v693 = vld [vmem:[#allocation2 + $0x418] sm:$0xff]
        %v694 = vld [vmem:[#allocation2 + $0x420] sm:$0xff]
        %v695 = vld [vmem:[#allocation2 + $0x428] sm:$0xff]
        %v696 = vld [vmem:[#allocation2 + $0x430] sm:$0xff]
        %v697 = vld [vmem:[#allocation2 + $0x438] sm:$0xff]
        %v698 = vld [vmem:[#allocation2 + $0x440] sm:$0xff]
        %v699 = vld [vmem:[#allocation2 + $0x448] sm:$0xff]
        %v700 = vld [vmem:[#allocation2 + $0x450] sm:$0xff]
        %v701 = vld [vmem:[#allocation2 + $0x458] sm:$0xff]
        %v702 = vld [vmem:[#allocation2 + $0x460] sm:$0xff]
        %v703 = vld [vmem:[#allocation2 + $0x468] sm:$0xff]
        %v704 = vld [vmem:[#allocation2 + $0x470] sm:$0xff]
        %v705 = vld [vmem:[#allocation2 + $0x478] sm:$0xff]
        %v706 = vld [vmem:[#allocation2 + $0x480] sm:$0xff]
        %v707 = vld [vmem:[#allocation2 + $0x488] sm:$0xff]
        %v708 = vld [vmem:[#allocation2 + $0x490] sm:$0xff]
        %v709 = vld [vmem:[#allocation2 + $0x498] sm:$0xff]
        %v710 = vld [vmem:[#allocation2 + $0x4a0] sm:$0xff]
        %v711 = vld [vmem:[#allocation2 + $0x4a8] sm:$0xff]
        %v712 = vld [vmem:[#allocation2 + $0x4b0] sm:$0xff]
        %v713 = vld [vmem:[#allocation2 + $0x4b8] sm:$0xff]
        %v714 = vld [vmem:[#allocation2 + $0x4c0] sm:$0xff]
        %v715 = vld [vmem:[#allocation2 + $0x4c8] sm:$0xff]
        %v716 = vld [vmem:[#allocation2 + $0x4d0] sm:$0xff]
        %v717 = vld [vmem:[#allocation2 + $0x4d8] sm:$0xff]
        %v718 = vld [vmem:[#allocation2 + $0x4e0] sm:$0xff]
        %v719 = vld [vmem:[#allocation2 + $0x4e8] sm:$0xff]
        %v720 = vld [vmem:[#allocation2 + $0x4f0] sm:$0xff]
        %v721 = vld [vmem:[#allocation2 + $0x4f8] sm:$0xff]
        %v722 = vld [vmem:[#allocation2 + $0x500] sm:$0xff]
        %v723 = vld [vmem:[#allocation2 + $0x508] sm:$0xff]
        %v724 = vld [vmem:[#allocation2 + $0x510] sm:$0xff]
        %v725 = vld [vmem:[#allocation2 + $0x518] sm:$0xff]
        %v726 = vld [vmem:[#allocation2 + $0x520] sm:$0xff]
        %v727 = vld [vmem:[#allocation2 + $0x528] sm:$0xff]
        %v728 = vld [vmem:[#allocation2 + $0x530] sm:$0xff]
        %v729 = vld [vmem:[#allocation2 + $0x538] sm:$0xff]
        %v730 = vld [vmem:[#allocation2 + $0x540] sm:$0xff]
        %v731 = vld [vmem:[#allocation2 + $0x548] sm:$0xff]
        %v732 = vld [vmem:[#allocation2 + $0x550] sm:$0xff]
        %v733 = vld [vmem:[#allocation2 + $0x558] sm:$0xff]
        %v734 = vld [vmem:[#allocation2 + $0x560] sm:$0xff]
        %v735 = vld [vmem:[#allocation2 + $0x568] sm:$0xff]
        %v736 = vld [vmem:[#allocation2 + $0x570] sm:$0xff]
        %v737 = vld [vmem:[#allocation2 + $0x578] sm:$0xff]
        %v738 = vld [vmem:[#allocation2 + $0x580] sm:$0xff]
        %v739 = vld [vmem:[#allocation2 + $0x588] sm:$0xff]
        %v740 = vld [vmem:[#allocation2 + $0x590] sm:$0xff]
        %v741 = vld [vmem:[#allocation2 + $0x598] sm:$0xff]
        %v742 = vld [vmem:[#allocation2 + $0x5a0] sm:$0xff]
        %v743 = vld [vmem:[#allocation2 + $0x5a8] sm:$0xff]
        %v744 = vld [vmem:[#allocation2 + $0x5b0] sm:$0xff]
        %v745 = vld [vmem:[#allocation2 + $0x5b8] sm:$0xff]
        %v746 = vld [vmem:[#allocation2 + $0x5c0] sm:$0xff]
        %v747 = vld [vmem:[#allocation2 + $0x5c8] sm:$0xff]
        %v748 = vld [vmem:[#allocation2 + $0x5d0] sm:$0xff]
        %v749 = vld [vmem:[#allocation2 + $0x5d8] sm:$0xff]
        %v750 = vld [vmem:[#allocation2 + $0x5e0] sm:$0xff]
        %v751 = vld [vmem:[#allocation2 + $0x5e8] sm:$0xff]
        %v752 = vld [vmem:[#allocation2 + $0x5f0] sm:$0xff]
        %v753 = vld [vmem:[#allocation2 + $0x5f8] sm:$0xff]
        %v754 = vld [vmem:[#allocation2 + $0x600] sm:$0xff]
        %v755 = vld [vmem:[#allocation2 + $0x608] sm:$0xff]
        %v756 = vld [vmem:[#allocation2 + $0x610] sm:$0xff]
        %v757 = vld [vmem:[#allocation2 + $0x618] sm:$0xff]
        %v758 = vld [vmem:[#allocation2 + $0x620] sm:$0xff]
        %v759 = vld [vmem:[#allocation2 + $0x628] sm:$0xff]
        %v760 = vld [vmem:[#allocation2 + $0x630] sm:$0xff]
        %v761 = vld [vmem:[#allocation2 + $0x638] sm:$0xff]
        %v762 = vld [vmem:[#allocation2 + $0x640] sm:$0xff]
        %v763 = vld [vmem:[#allocation2 + $0x648] sm:$0xff]
        %v764 = vld [vmem:[#allocation2 + $0x650] sm:$0xff]
        %v765 = vld [vmem:[#allocation2 + $0x658] sm:$0xff]
        %v766 = vld [vmem:[#allocation2 + $0x660] sm:$0xff]
        %v767 = vld [vmem:[#allocation2 + $0x668] sm:$0xff]
        %v768 = vld [vmem:[#allocation2 + $0x670] sm:$0xff]
        %v769 = vld [vmem:[#allocation2 + $0x678] sm:$0xff]
        %v770 = vld [vmem:[#allocation2 + $0x680] sm:$0xff]
        %v771 = vld [vmem:[#allocation2 + $0x688] sm:$0xff]
        %v772 = vld [vmem:[#allocation2 + $0x690] sm:$0xff]
        %v773 = vld [vmem:[#allocation2 + $0x698] sm:$0xff]
        %v774 = vld [vmem:[#allocation2 + $0x6a0] sm:$0xff]
        %v775 = vld [vmem:[#allocation2 + $0x6a8] sm:$0xff]
        %v776 = vld [vmem:[#allocation2 + $0x6b0] sm:$0xff]
        %v777 = vld [vmem:[#allocation2 + $0x6b8] sm:$0xff]
        %v778 = vld [vmem:[#allocation2 + $0x6c0] sm:$0xff]
        %v779 = vld [vmem:[#allocation2 + $0x6c8] sm:$0xff]
        %v780 = vld [vmem:[#allocation2 + $0x6d0] sm:$0xff]
        %v781 = vld [vmem:[#allocation2 + $0x6d8] sm:$0xff]
        %v782 = vld [vmem:[#allocation2 + $0x6e0] sm:$0xff]
        %v783 = vld [vmem:[#allocation2 + $0x6e8] sm:$0xff]
        %v784 = vld [vmem:[#allocation2 + $0x6f0] sm:$0xff]
        %v785 = vld [vmem:[#allocation2 + $0x6f8] sm:$0xff]
        %v786 = vld [vmem:[#allocation2 + $0x700] sm:$0xff]
        %v787 = vld [vmem:[#allocation2 + $0x708] sm:$0xff]
        %v788 = vld [vmem:[#allocation2 + $0x710] sm:$0xff]
        %v789 = vld [vmem:[#allocation2 + $0x718] sm:$0xff]
        %v790 = vld [vmem:[#allocation2 + $0x720] sm:$0xff]
        %v791 = vld [vmem:[#allocation2 + $0x728] sm:$0xff]
        %v792 = vld [vmem:[#allocation2 + $0x730] sm:$0xff]
        %v793 = vld [vmem:[#allocation2 + $0x738] sm:$0xff]
        %v794 = vld [vmem:[#allocation2 + $0x740] sm:$0xff]
        %v795 = vld [vmem:[#allocation2 + $0x748] sm:$0xff]
        %v796 = vld [vmem:[#allocation2 + $0x750] sm:$0xff]
        %v797 = vld [vmem:[#allocation2 + $0x758] sm:$0xff]
        %v798 = vld [vmem:[#allocation2 + $0x760] sm:$0xff]
        %v799 = vld [vmem:[#allocation2 + $0x768] sm:$0xff]
        %v800 = vld [vmem:[#allocation2 + $0x770] sm:$0xff]
        %v801 = vld [vmem:[#allocation2 + $0x778] sm:$0xff]
        %v802 = vld [vmem:[#allocation2 + $0x780] sm:$0xff]
        %v803 = vld [vmem:[#allocation2 + $0x788] sm:$0xff]
        %v804 = vld [vmem:[#allocation2 + $0x790] sm:$0xff]
        %v805 = vld [vmem:[#allocation2 + $0x798] sm:$0xff]
        %v806 = vld [vmem:[#allocation2 + $0x7a0] sm:$0xff]
        %v807 = vld [vmem:[#allocation2 + $0x7a8] sm:$0xff]
        %v808 = vld [vmem:[#allocation2 + $0x7b0] sm:$0xff]
        %v809 = vld [vmem:[#allocation2 + $0x7b8] sm:$0xff]
        %v810 = vld [vmem:[#allocation2 + $0x7c0] sm:$0xff]
        %v811 = vld [vmem:[#allocation2 + $0x7c8] sm:$0xff]
        %v812 = vld [vmem:[#allocation2 + $0x7d0] sm:$0xff]
        %v813 = vld [vmem:[#allocation2 + $0x7d8] sm:$0xff]
        %v814 = vld [vmem:[#allocation2 + $0x7e0] sm:$0xff]
        %v815 = vld [vmem:[#allocation2 + $0x7e8] sm:$0xff]
        %v816 = vld [vmem:[#allocation2 + $0x7f0] sm:$0xff]
        %v817 = vld [vmem:[#allocation2 + $0x7f8] sm:$0xff]
        %v818 = vld [vmem:[%s244] sm:$0xff]
        %v819 = vld [vmem:[%s244 + $0x8] sm:$0xff]
        %v820 = vld [vmem:[%s244 + $0x10] sm:$0xff]
        %v821 = vld [vmem:[%s244 + $0x18] sm:$0xff]
        %v822 = vld [vmem:[%s244 + $0x20] sm:$0xff]
        %v823 = vld [vmem:[%s244 + $0x28] sm:$0xff]
        %v824 = vld [vmem:[%s244 + $0x30] sm:$0xff]
        %v825 = vld [vmem:[%s244 + $0x38] sm:$0xff]
        %v826 = vld [vmem:[%s244 + $0x40] sm:$0xff]
        %v827 = vld [vmem:[%s244 + $0x48] sm:$0xff]
        %v828 = vld [vmem:[%s244 + $0x50] sm:$0xff]
        %v829 = vld [vmem:[%s244 + $0x58] sm:$0xff]
        %v830 = vld [vmem:[%s244 + $0x60] sm:$0xff]
        %v831 = vld [vmem:[%s244 + $0x68] sm:$0xff]
        %v832 = vld [vmem:[%s244 + $0x70] sm:$0xff]
        %v833 = vld [vmem:[%s244 + $0x78] sm:$0xff]
        %v834 = vld [vmem:[%s244 + $0x80] sm:$0xff]
        %v835 = vld [vmem:[%s244 + $0x88] sm:$0xff]
        %v836 = vld [vmem:[%s244 + $0x90] sm:$0xff]
        %v837 = vld [vmem:[%s244 + $0x98] sm:$0xff]
        %v838 = vld [vmem:[%s244 + $0xa0] sm:$0xff]
        %v839 = vld [vmem:[%s244 + $0xa8] sm:$0xff]
        %v840 = vld [vmem:[%s244 + $0xb0] sm:$0xff]
        %v841 = vld [vmem:[%s244 + $0xb8] sm:$0xff]
        %v842 = vld [vmem:[%s244 + $0xc0] sm:$0xff]
        %v843 = vld [vmem:[%s244 + $0xc8] sm:$0xff]
        %v844 = vld [vmem:[%s244 + $0xd0] sm:$0xff]
        %v845 = vld [vmem:[%s244 + $0xd8] sm:$0xff]
        %v846 = vld [vmem:[%s244 + $0xe0] sm:$0xff]
        %v847 = vld [vmem:[%s244 + $0xe8] sm:$0xff]
        %v848 = vld [vmem:[%s244 + $0xf0] sm:$0xff]
        %v849 = vld [vmem:[%s244 + $0xf8] sm:$0xff]
        %v850 = vld [vmem:[%s244 + $0x100] sm:$0xff]
        %v851 = vld [vmem:[%s244 + $0x108] sm:$0xff]
        %v852 = vld [vmem:[%s244 + $0x110] sm:$0xff]
        %v853 = vld [vmem:[%s244 + $0x118] sm:$0xff]
        %v854 = vld [vmem:[%s244 + $0x120] sm:$0xff]
        %v855 = vld [vmem:[%s244 + $0x128] sm:$0xff]
        %v856 = vld [vmem:[%s244 + $0x130] sm:$0xff]
        %v857 = vld [vmem:[%s244 + $0x138] sm:$0xff]
        %v858 = vld [vmem:[%s244 + $0x140] sm:$0xff]
        %v859 = vld [vmem:[%s244 + $0x148] sm:$0xff]
        %v860 = vld [vmem:[%s244 + $0x150] sm:$0xff]
        %v861 = vld [vmem:[%s244 + $0x158] sm:$0xff]
        %v862 = vld [vmem:[%s244 + $0x160] sm:$0xff]
        %v863 = vld [vmem:[%s244 + $0x168] sm:$0xff]
        %v864 = vld [vmem:[%s244 + $0x170] sm:$0xff]
        %v865 = vld [vmem:[%s244 + $0x178] sm:$0xff]
        %v866 = vld [vmem:[%s244 + $0x180] sm:$0xff]
        %v867 = vld [vmem:[%s244 + $0x188] sm:$0xff]
        %v868 = vld [vmem:[%s244 + $0x190] sm:$0xff]
        %v869 = vld [vmem:[%s244 + $0x198] sm:$0xff]
        %v870 = vld [vmem:[%s244 + $0x1a0] sm:$0xff]
        %v871 = vld [vmem:[%s244 + $0x1a8] sm:$0xff]
        %v872 = vld [vmem:[%s244 + $0x1b0] sm:$0xff]
        %v873 = vld [vmem:[%s244 + $0x1b8] sm:$0xff]
        %v874 = vld [vmem:[%s244 + $0x1c0] sm:$0xff]
        %v875 = vld [vmem:[%s244 + $0x1c8] sm:$0xff]
        %v876 = vld [vmem:[%s244 + $0x1d0] sm:$0xff]
        %v877 = vld [vmem:[%s244 + $0x1d8] sm:$0xff]
        %v878 = vld [vmem:[%s244 + $0x1e0] sm:$0xff]
        %v879 = vld [vmem:[%s244 + $0x1e8] sm:$0xff]
        %v880 = vld [vmem:[%s244 + $0x1f0] sm:$0xff]
        %v881 = vld [vmem:[%s244 + $0x1f8] sm:$0xff]
        %v882 = vld [vmem:[%s253] sm:$0xff]
        %v883 = vld [vmem:[%s253 + $0x8] sm:$0xff]
        %v884 = vld [vmem:[%s253 + $0x10] sm:$0xff]
        %v885 = vld [vmem:[%s253 + $0x18] sm:$0xff]
        %v886 = vld [vmem:[%s253 + $0x20] sm:$0xff]
        %v887 = vld [vmem:[%s253 + $0x28] sm:$0xff]
        %v888 = vld [vmem:[%s253 + $0x30] sm:$0xff]
        %v889 = vld [vmem:[%s253 + $0x38] sm:$0xff]
        %v890 = vld [vmem:[%s253 + $0x40] sm:$0xff]
        %v891 = vld [vmem:[%s253 + $0x48] sm:$0xff]
        %v892 = vld [vmem:[%s253 + $0x50] sm:$0xff]
        %v893 = vld [vmem:[%s253 + $0x58] sm:$0xff]
        %v894 = vld [vmem:[%s253 + $0x60] sm:$0xff]
        %v895 = vld [vmem:[%s253 + $0x68] sm:$0xff]
        %v896 = vld [vmem:[%s253 + $0x70] sm:$0xff]
        %v897 = vld [vmem:[%s253 + $0x78] sm:$0xff]
        %v898 = vld [vmem:[%s253 + $0x80] sm:$0xff]
        %v899 = vld [vmem:[%s253 + $0x88] sm:$0xff]
        %v900 = vld [vmem:[%s253 + $0x90] sm:$0xff]
        %v901 = vld [vmem:[%s253 + $0x98] sm:$0xff]
        %v902 = vld [vmem:[%s253 + $0xa0] sm:$0xff]
        %v903 = vld [vmem:[%s253 + $0xa8] sm:$0xff]
        %v904 = vld [vmem:[%s253 + $0xb0] sm:$0xff]
        %v905 = vld [vmem:[%s253 + $0xb8] sm:$0xff]
        %v906 = vld [vmem:[%s253 + $0xc0] sm:$0xff]
        %v907 = vld [vmem:[%s253 + $0xc8] sm:$0xff]
        %v908 = vld [vmem:[%s253 + $0xd0] sm:$0xff]
        %v909 = vld [vmem:[%s253 + $0xd8] sm:$0xff]
        %v910 = vld [vmem:[%s253 + $0xe0] sm:$0xff]
        %v911 = vld [vmem:[%s253 + $0xe8] sm:$0xff]
        %v912 = vld [vmem:[%s253 + $0xf0] sm:$0xff]
        %v913 = vld [vmem:[%s253 + $0xf8] sm:$0xff]
        %v914 = vld [vmem:[%s253 + $0x100] sm:$0xff]
        %v915 = vld [vmem:[%s253 + $0x108] sm:$0xff]
        %v916 = vld [vmem:[%s253 + $0x110] sm:$0xff]
        %v917 = vld [vmem:[%s253 + $0x118] sm:$0xff]
        %v918 = vld [vmem:[%s253 + $0x120] sm:$0xff]
        %v919 = vld [vmem:[%s253 + $0x128] sm:$0xff]
        %v920 = vld [vmem:[%s253 + $0x130] sm:$0xff]
        %v921 = vld [vmem:[%s253 + $0x138] sm:$0xff]
        %v922 = vld [vmem:[%s253 + $0x140] sm:$0xff]
        %v923 = vld [vmem:[%s253 + $0x148] sm:$0xff]
        %v924 = vld [vmem:[%s253 + $0x150] sm:$0xff]
        %v925 = vld [vmem:[%s253 + $0x158] sm:$0xff]
        %v926 = vld [vmem:[%s253 + $0x160] sm:$0xff]
        %v927 = vld [vmem:[%s253 + $0x168] sm:$0xff]
        %v928 = vld [vmem:[%s253 + $0x170] sm:$0xff]
        %v929 = vld [vmem:[%s253 + $0x178] sm:$0xff]
        %v930 = vld [vmem:[%s253 + $0x180] sm:$0xff]
        %v931 = vld [vmem:[%s253 + $0x188] sm:$0xff]
        %v932 = vld [vmem:[%s253 + $0x190] sm:$0xff]
        %v933 = vld [vmem:[%s253 + $0x198] sm:$0xff]
        %v934 = vld [vmem:[%s253 + $0x1a0] sm:$0xff]
        %v935 = vld [vmem:[%s253 + $0x1a8] sm:$0xff]
        %v936 = vld [vmem:[%s253 + $0x1b0] sm:$0xff]
        %v937 = vld [vmem:[%s253 + $0x1b8] sm:$0xff]
        %v938 = vld [vmem:[%s253 + $0x1c0] sm:$0xff]
        %v939 = vld [vmem:[%s253 + $0x1c8] sm:$0xff]
        %v940 = vld [vmem:[%s253 + $0x1d0] sm:$0xff]
        %v941 = vld [vmem:[%s253 + $0x1d8] sm:$0xff]
        %v942 = vld [vmem:[%s253 + $0x1e0] sm:$0xff]
        %v943 = vld [vmem:[%s253 + $0x1e8] sm:$0xff]
        %v944 = vld [vmem:[%s253 + $0x1f0] sm:$0xff]
        %v945 = vld [vmem:[%s253 + $0x1f8] sm:$0xff]
        %v1010 = vunpack.c.l.b16 %v818
        %v1011 = vunpack.c.h.b16 %v818
        %v1012 = vunpack.c.l.b16 %v819
        %v1013 = vunpack.c.h.b16 %v819
        %v1014 = vunpack.c.l.b16 %v820
        %v1015 = vunpack.c.h.b16 %v820
        %v1016 = vunpack.c.l.b16 %v821
        %v1017 = vunpack.c.h.b16 %v821
        %v1018 = vunpack.c.l.b16 %v822
        %v1019 = vunpack.c.h.b16 %v822
        %v1020 = vunpack.c.l.b16 %v823
        %v1021 = vunpack.c.h.b16 %v823
        %v1022 = vunpack.c.l.b16 %v824
        %v1023 = vunpack.c.h.b16 %v824
        %v1024 = vunpack.c.l.b16 %v825
        %v1025 = vunpack.c.h.b16 %v825
        %v1026 = vunpack.c.l.b16 %v826
        %v1027 = vunpack.c.h.b16 %v826
        %v1028 = vunpack.c.l.b16 %v827
        %v1029 = vunpack.c.h.b16 %v827
        %v1030 = vunpack.c.l.b16 %v828
        %v1031 = vunpack.c.h.b16 %v828
        %v1032 = vunpack.c.l.b16 %v829
        %v1033 = vunpack.c.h.b16 %v829
        %v1034 = vunpack.c.l.b16 %v830
        %v1035 = vunpack.c.h.b16 %v830
        %v1036 = vunpack.c.l.b16 %v831
        %v1037 = vunpack.c.h.b16 %v831
        %v1038 = vunpack.c.l.b16 %v832
        %v1039 = vunpack.c.h.b16 %v832
        %v1040 = vunpack.c.l.b16 %v833
        %v1041 = vunpack.c.h.b16 %v833
        %v1042 = vunpack.c.l.b16 %v834
        %v1043 = vunpack.c.h.b16 %v834
        %v1044 = vunpack.c.l.b16 %v835
        %v1045 = vunpack.c.h.b16 %v835
        %v1046 = vunpack.c.l.b16 %v836
        %v1047 = vunpack.c.h.b16 %v836
        %v1048 = vunpack.c.l.b16 %v837
        %v1049 = vunpack.c.h.b16 %v837
        %v1050 = vunpack.c.l.b16 %v838
        %v1051 = vunpack.c.h.b16 %v838
        %v1052 = vunpack.c.l.b16 %v839
        %v1053 = vunpack.c.h.b16 %v839
        %v1054 = vunpack.c.l.b16 %v840
        %v1055 = vunpack.c.h.b16 %v840
        %v1056 = vunpack.c.l.b16 %v841
        %v1057 = vunpack.c.h.b16 %v841
        %v1058 = vunpack.c.l.b16 %v842
        %v1059 = vunpack.c.h.b16 %v842
        %v1060 = vunpack.c.l.b16 %v843
        %v1061 = vunpack.c.h.b16 %v843
        %v1062 = vunpack.c.l.b16 %v844
        %v1063 = vunpack.c.h.b16 %v844
        %v1064 = vunpack.c.l.b16 %v845
        %v1065 = vunpack.c.h.b16 %v845
        %v1066 = vunpack.c.l.b16 %v846
        %v1067 = vunpack.c.h.b16 %v846
        %v1068 = vunpack.c.l.b16 %v847
        %v1069 = vunpack.c.h.b16 %v847
        %v1070 = vunpack.c.l.b16 %v848
        %v1071 = vunpack.c.h.b16 %v848
        %v1072 = vunpack.c.l.b16 %v849
        %v1073 = vunpack.c.h.b16 %v849
        %v1074 = vunpack.c.l.b16 %v850
        %v1075 = vunpack.c.h.b16 %v850
        %v1076 = vunpack.c.l.b16 %v851
        %v1077 = vunpack.c.h.b16 %v851
        %v1078 = vunpack.c.l.b16 %v852
        %v1079 = vunpack.c.h.b16 %v852
        %v1080 = vunpack.c.l.b16 %v853
        %v1081 = vunpack.c.h.b16 %v853
        %v1082 = vunpack.c.l.b16 %v854
        %v1083 = vunpack.c.h.b16 %v854
        %v1084 = vunpack.c.l.b16 %v855
        %v1085 = vunpack.c.h.b16 %v855
        %v1086 = vunpack.c.l.b16 %v856
        %v1087 = vunpack.c.h.b16 %v856
        %v1088 = vunpack.c.l.b16 %v857
        %v1089 = vunpack.c.h.b16 %v857
        %v1090 = vunpack.c.l.b16 %v858
        %v1091 = vunpack.c.h.b16 %v858
        %v1092 = vunpack.c.l.b16 %v859
        %v1093 = vunpack.c.h.b16 %v859
        %v1094 = vunpack.c.l.b16 %v860
        %v1095 = vunpack.c.h.b16 %v860
        %v1096 = vunpack.c.l.b16 %v861
        %v1097 = vunpack.c.h.b16 %v861
        %v1098 = vunpack.c.l.b16 %v862
        %v1099 = vunpack.c.h.b16 %v862
        %v1100 = vunpack.c.l.b16 %v863
        %v1101 = vunpack.c.h.b16 %v863
        %v1102 = vunpack.c.l.b16 %v864
        %v1103 = vunpack.c.h.b16 %v864
        %v1104 = vunpack.c.l.b16 %v865
        %v1105 = vunpack.c.h.b16 %v865
        %v1106 = vunpack.c.l.b16 %v866
        %v1107 = vunpack.c.h.b16 %v866
        %v1108 = vunpack.c.l.b16 %v867
        %v1109 = vunpack.c.h.b16 %v867
        %v1110 = vunpack.c.l.b16 %v868
        %v1111 = vunpack.c.h.b16 %v868
        %v1112 = vunpack.c.l.b16 %v869
        %v1113 = vunpack.c.h.b16 %v869
        %v1114 = vunpack.c.l.b16 %v870
        %v1115 = vunpack.c.h.b16 %v870
        %v1116 = vunpack.c.l.b16 %v871
        %v1117 = vunpack.c.h.b16 %v871
        %v1118 = vunpack.c.l.b16 %v872
        %v1119 = vunpack.c.h.b16 %v872
        %v1120 = vunpack.c.l.b16 %v873
        %v1121 = vunpack.c.h.b16 %v873
        %v1122 = vunpack.c.l.b16 %v874
        %v1123 = vunpack.c.h.b16 %v874
        %v1124 = vunpack.c.l.b16 %v875
        %v1125 = vunpack.c.h.b16 %v875
        %v1126 = vunpack.c.l.b16 %v876
        %v1127 = vunpack.c.h.b16 %v876
        %v1128 = vunpack.c.l.b16 %v877
        %v1129 = vunpack.c.h.b16 %v877
        %v1130 = vunpack.c.l.b16 %v878
        %v1131 = vunpack.c.h.b16 %v878
        %v1132 = vunpack.c.l.b16 %v879
        %v1133 = vunpack.c.h.b16 %v879
        %v1134 = vunpack.c.l.b16 %v880
        %v1135 = vunpack.c.h.b16 %v880
        %v1136 = vunpack.c.l.b16 %v881
        %v1137 = vunpack.c.h.b16 %v881
        %v1138 = vpack.c.b16 %v1012, %v1010
        %v1139 = vpack.c.b16 %v1013, %v1011
        %v1140 = vpack.c.b16 %v1016, %v1014
        %v1141 = vpack.c.b16 %v1017, %v1015
        %v1142 = vpack.c.b16 %v1020, %v1018
        %v1143 = vpack.c.b16 %v1021, %v1019
        %v1144 = vpack.c.b16 %v1024, %v1022
        %v1145 = vpack.c.b16 %v1025, %v1023
        %v1146 = vpack.c.b16 %v1028, %v1026
        %v1147 = vpack.c.b16 %v1029, %v1027
        %v1148 = vpack.c.b16 %v1032, %v1030
        %v1149 = vpack.c.b16 %v1033, %v1031
        %v1150 = vpack.c.b16 %v1036, %v1034
        %v1151 = vpack.c.b16 %v1037, %v1035
        %v1152 = vpack.c.b16 %v1040, %v1038
        %v1153 = vpack.c.b16 %v1041, %v1039
        %v1154 = vpack.c.b16 %v1044, %v1042
        %v1155 = vpack.c.b16 %v1045, %v1043
        %v1156 = vpack.c.b16 %v1048, %v1046
        %v1157 = vpack.c.b16 %v1049, %v1047
        %v1158 = vpack.c.b16 %v1052, %v1050
        %v1159 = vpack.c.b16 %v1053, %v1051
        %v1160 = vpack.c.b16 %v1056, %v1054
        %v1161 = vpack.c.b16 %v1057, %v1055
        %v1162 = vpack.c.b16 %v1060, %v1058
        %v1163 = vpack.c.b16 %v1061, %v1059
        %v1164 = vpack.c.b16 %v1064, %v1062
        %v1165 = vpack.c.b16 %v1065, %v1063
        %v1166 = vpack.c.b16 %v1068, %v1066
        %v1167 = vpack.c.b16 %v1069, %v1067
        %v1168 = vpack.c.b16 %v1072, %v1070
        %v1169 = vpack.c.b16 %v1073, %v1071
        %v1170 = vpack.c.b16 %v1076, %v1074
        %v1171 = vpack.c.b16 %v1077, %v1075
        %v1172 = vpack.c.b16 %v1080, %v1078
        %v1173 = vpack.c.b16 %v1081, %v1079
        %v1174 = vpack.c.b16 %v1084, %v1082
        %v1175 = vpack.c.b16 %v1085, %v1083
        %v1176 = vpack.c.b16 %v1088, %v1086
        %v1177 = vpack.c.b16 %v1089, %v1087
        %v1178 = vpack.c.b16 %v1092, %v1090
        %v1179 = vpack.c.b16 %v1093, %v1091
        %v1180 = vpack.c.b16 %v1096, %v1094
        %v1181 = vpack.c.b16 %v1097, %v1095
        %v1182 = vpack.c.b16 %v1100, %v1098
        %v1183 = vpack.c.b16 %v1101, %v1099
        %v1184 = vpack.c.b16 %v1104, %v1102
        %v1185 = vpack.c.b16 %v1105, %v1103
        %v1186 = vpack.c.b16 %v1108, %v1106
        %v1187 = vpack.c.b16 %v1109, %v1107
        %v1188 = vpack.c.b16 %v1112, %v1110
        %v1189 = vpack.c.b16 %v1113, %v1111
        %v1190 = vpack.c.b16 %v1116, %v1114
        %v1191 = vpack.c.b16 %v1117, %v1115
        %v1192 = vpack.c.b16 %v1120, %v1118
        %v1193 = vpack.c.b16 %v1121, %v1119
        %v1194 = vpack.c.b16 %v1124, %v1122
        %v1195 = vpack.c.b16 %v1125, %v1123
        %v1196 = vpack.c.b16 %v1128, %v1126
        %v1197 = vpack.c.b16 %v1129, %v1127
        %v1198 = vpack.c.b16 %v1132, %v1130
        %v1199 = vpack.c.b16 %v1133, %v1131
        %v1200 = vpack.c.b16 %v1136, %v1134
        %v1201 = vpack.c.b16 %v1137, %v1135
        %v1330 = vunpack.c.l.b16 %v882
        %v1331 = vunpack.c.h.b16 %v882
        %v1332 = vunpack.c.l.b16 %v883
        %v1333 = vunpack.c.h.b16 %v883
        %v1334 = vunpack.c.l.b16 %v884
        %v1335 = vunpack.c.h.b16 %v884
        %v1336 = vunpack.c.l.b16 %v885
        %v1337 = vunpack.c.h.b16 %v885
        %v1338 = vunpack.c.l.b16 %v886
        %v1339 = vunpack.c.h.b16 %v886
        %v1340 = vunpack.c.l.b16 %v887
        %v1341 = vunpack.c.h.b16 %v887
        %v1342 = vunpack.c.l.b16 %v888
        %v1343 = vunpack.c.h.b16 %v888
        %v1344 = vunpack.c.l.b16 %v889
        %v1345 = vunpack.c.h.b16 %v889
        %v1346 = vunpack.c.l.b16 %v890
        %v1347 = vunpack.c.h.b16 %v890
        %v1348 = vunpack.c.l.b16 %v891
        %v1349 = vunpack.c.h.b16 %v891
        %v1350 = vunpack.c.l.b16 %v892
        %v1351 = vunpack.c.h.b16 %v892
        %v1352 = vunpack.c.l.b16 %v893
        %v1353 = vunpack.c.h.b16 %v893
        %v1354 = vunpack.c.l.b16 %v894
        %v1355 = vunpack.c.h.b16 %v894
        %v1356 = vunpack.c.l.b16 %v895
        %v1357 = vunpack.c.h.b16 %v895
        %v1358 = vunpack.c.l.b16 %v896
        %v1359 = vunpack.c.h.b16 %v896
        %v1360 = vunpack.c.l.b16 %v897
        %v1361 = vunpack.c.h.b16 %v897
        %v1362 = vunpack.c.l.b16 %v898
        %v1363 = vunpack.c.h.b16 %v898
        %v1364 = vunpack.c.l.b16 %v899
        %v1365 = vunpack.c.h.b16 %v899
        %v1366 = vunpack.c.l.b16 %v900
        %v1367 = vunpack.c.h.b16 %v900
        %v1368 = vunpack.c.l.b16 %v901
        %v1369 = vunpack.c.h.b16 %v901
        %v1370 = vunpack.c.l.b16 %v902
        %v1371 = vunpack.c.h.b16 %v902
        %v1372 = vunpack.c.l.b16 %v903
        %v1373 = vunpack.c.h.b16 %v903
        %v1374 = vunpack.c.l.b16 %v904
        %v1375 = vunpack.c.h.b16 %v904
        %v1376 = vunpack.c.l.b16 %v905
        %v1377 = vunpack.c.h.b16 %v905
        %v1378 = vunpack.c.l.b16 %v906
        %v1379 = vunpack.c.h.b16 %v906
        %v1380 = vunpack.c.l.b16 %v907
        %v1381 = vunpack.c.h.b16 %v907
        %v1382 = vunpack.c.l.b16 %v908
        %v1383 = vunpack.c.h.b16 %v908
        %v1384 = vunpack.c.l.b16 %v909
        %v1385 = vunpack.c.h.b16 %v909
        %v1386 = vunpack.c.l.b16 %v910
        %v1387 = vunpack.c.h.b16 %v910
        %v1388 = vunpack.c.l.b16 %v911
        %v1389 = vunpack.c.h.b16 %v911
        %v1390 = vunpack.c.l.b16 %v912
        %v1391 = vunpack.c.h.b16 %v912
        %v1392 = vunpack.c.l.b16 %v913
        %v1393 = vunpack.c.h.b16 %v913
        %v1394 = vunpack.c.l.b16 %v914
        %v1395 = vunpack.c.h.b16 %v914
        %v1396 = vunpack.c.l.b16 %v915
        %v1397 = vunpack.c.h.b16 %v915
        %v1398 = vunpack.c.l.b16 %v916
        %v1399 = vunpack.c.h.b16 %v916
        %v1400 = vunpack.c.l.b16 %v917
        %v1401 = vunpack.c.h.b16 %v917
        %v1402 = vunpack.c.l.b16 %v918
        %v1403 = vunpack.c.h.b16 %v918
        %v1404 = vunpack.c.l.b16 %v919
        %v1405 = vunpack.c.h.b16 %v919
        %v1406 = vunpack.c.l.b16 %v920
        %v1407 = vunpack.c.h.b16 %v920
        %v1408 = vunpack.c.l.b16 %v921
        %v1409 = vunpack.c.h.b16 %v921
        %v1410 = vunpack.c.l.b16 %v922
        %v1411 = vunpack.c.h.b16 %v922
        %v1412 = vunpack.c.l.b16 %v923
        %v1413 = vunpack.c.h.b16 %v923
        %v1414 = vunpack.c.l.b16 %v924
        %v1415 = vunpack.c.h.b16 %v924
        %v1416 = vunpack.c.l.b16 %v925
        %v1417 = vunpack.c.h.b16 %v925
        %v1418 = vunpack.c.l.b16 %v926
        %v1419 = vunpack.c.h.b16 %v926
        %v1420 = vunpack.c.l.b16 %v927
        %v1421 = vunpack.c.h.b16 %v927
        %v1422 = vunpack.c.l.b16 %v928
        %v1423 = vunpack.c.h.b16 %v928
        %v1424 = vunpack.c.l.b16 %v929
        %v1425 = vunpack.c.h.b16 %v929
        %v1426 = vunpack.c.l.b16 %v930
        %v1427 = vunpack.c.h.b16 %v930
        %v1428 = vunpack.c.l.b16 %v931
        %v1429 = vunpack.c.h.b16 %v931
        %v1430 = vunpack.c.l.b16 %v932
        %v1431 = vunpack.c.h.b16 %v932
        %v1432 = vunpack.c.l.b16 %v933
        %v1433 = vunpack.c.h.b16 %v933
        %v1434 = vunpack.c.l.b16 %v934
        %v1435 = vunpack.c.h.b16 %v934
        %v1436 = vunpack.c.l.b16 %v935
        %v1437 = vunpack.c.h.b16 %v935
        %v1438 = vunpack.c.l.b16 %v936
        %v1439 = vunpack.c.h.b16 %v936
        %v1440 = vunpack.c.l.b16 %v937
        %v1441 = vunpack.c.h.b16 %v937
        %v1442 = vunpack.c.l.b16 %v938
        %v1443 = vunpack.c.h.b16 %v938
        %v1444 = vunpack.c.l.b16 %v939
        %v1445 = vunpack.c.h.b16 %v939
        %v1446 = vunpack.c.l.b16 %v940
        %v1447 = vunpack.c.h.b16 %v940
        %v1448 = vunpack.c.l.b16 %v941
        %v1449 = vunpack.c.h.b16 %v941
        %v1450 = vunpack.c.l.b16 %v942
        %v1451 = vunpack.c.h.b16 %v942
        %v1452 = vunpack.c.l.b16 %v943
        %v1453 = vunpack.c.h.b16 %v943
        %v1454 = vunpack.c.l.b16 %v944
        %v1455 = vunpack.c.h.b16 %v944
        %v1456 = vunpack.c.l.b16 %v945
        %v1457 = vunpack.c.h.b16 %v945
        %v1458 = vpack.c.b16 %v1334, %v1330
        %v1459 = vpack.c.b16 %v1335, %v1331
        %v1460 = vpack.c.b16 %v1336, %v1332
        %v1461 = vpack.c.b16 %v1337, %v1333
        %v1462 = vpack.c.b16 %v1342, %v1338
        %v1463 = vpack.c.b16 %v1343, %v1339
        %v1464 = vpack.c.b16 %v1344, %v1340
        %v1465 = vpack.c.b16 %v1345, %v1341
        %v1466 = vpack.c.b16 %v1350, %v1346
        %v1467 = vpack.c.b16 %v1351, %v1347
        %v1468 = vpack.c.b16 %v1352, %v1348
        %v1469 = vpack.c.b16 %v1353, %v1349
        %v1470 = vpack.c.b16 %v1358, %v1354
        %v1471 = vpack.c.b16 %v1359, %v1355
        %v1472 = vpack.c.b16 %v1360, %v1356
        %v1473 = vpack.c.b16 %v1361, %v1357
        %v1474 = vpack.c.b16 %v1366, %v1362
        %v1475 = vpack.c.b16 %v1367, %v1363
        %v1476 = vpack.c.b16 %v1368, %v1364
        %v1477 = vpack.c.b16 %v1369, %v1365
        %v1478 = vpack.c.b16 %v1374, %v1370
        %v1479 = vpack.c.b16 %v1375, %v1371
        %v1480 = vpack.c.b16 %v1376, %v1372
        %v1481 = vpack.c.b16 %v1377, %v1373
        %v1482 = vpack.c.b16 %v1382, %v1378
        %v1483 = vpack.c.b16 %v1383, %v1379
        %v1484 = vpack.c.b16 %v1384, %v1380
        %v1485 = vpack.c.b16 %v1385, %v1381
        %v1486 = vpack.c.b16 %v1390, %v1386
        %v1487 = vpack.c.b16 %v1391, %v1387
        %v1488 = vpack.c.b16 %v1392, %v1388
        %v1489 = vpack.c.b16 %v1393, %v1389
        %v1490 = vpack.c.b16 %v1398, %v1394
        %v1491 = vpack.c.b16 %v1399, %v1395
        %v1492 = vpack.c.b16 %v1400, %v1396
        %v1493 = vpack.c.b16 %v1401, %v1397
        %v1494 = vpack.c.b16 %v1406, %v1402
        %v1495 = vpack.c.b16 %v1407, %v1403
        %v1496 = vpack.c.b16 %v1408, %v1404
        %v1497 = vpack.c.b16 %v1409, %v1405
        %v1498 = vpack.c.b16 %v1414, %v1410
        %v1499 = vpack.c.b16 %v1415, %v1411
        %v1500 = vpack.c.b16 %v1416, %v1412
        %v1501 = vpack.c.b16 %v1417, %v1413
        %v1502 = vpack.c.b16 %v1422, %v1418
        %v1503 = vpack.c.b16 %v1423, %v1419
        %v1504 = vpack.c.b16 %v1424, %v1420
        %v1505 = vpack.c.b16 %v1425, %v1421
        %v1506 = vpack.c.b16 %v1430, %v1426
        %v1507 = vpack.c.b16 %v1431, %v1427
        %v1508 = vpack.c.b16 %v1432, %v1428
        %v1509 = vpack.c.b16 %v1433, %v1429
        %v1510 = vpack.c.b16 %v1438, %v1434
        %v1511 = vpack.c.b16 %v1439, %v1435
        %v1512 = vpack.c.b16 %v1440, %v1436
        %v1513 = vpack.c.b16 %v1441, %v1437
        %v1514 = vpack.c.b16 %v1446, %v1442
        %v1515 = vpack.c.b16 %v1447, %v1443
        %v1516 = vpack.c.b16 %v1448, %v1444
        %v1517 = vpack.c.b16 %v1449, %v1445
        %v1518 = vpack.c.b16 %v1454, %v1450
        %v1519 = vpack.c.b16 %v1455, %v1451
        %v1520 = vpack.c.b16 %v1456, %v1452
        %v1521 = vpack.c.b16 %v1457, %v1453
        %1586 = vmatprep.subr.bf16.mxu0 %v1459
        %1587 = vmatpush1.bf16.msra.mxu0 %v1458
        %1588 = vmatprep.subr.bf16.mxu0 %v1463
        %1589 = vmatpush1.bf16.msra.mxu0 %v1462
        %1590 = vmatprep.subr.bf16.mxu0 %v1467
        %1591 = vmatpush1.bf16.msra.mxu0 %v1466
        %1592 = vmatprep.subr.bf16.mxu0 %v1471
        %1593 = vmatpush1.bf16.msra.mxu0 %v1470
        %1594 = vmatprep.subr.bf16.mxu0 %v1475
        %1595 = vmatpush1.bf16.msra.mxu0 %v1474
        %1596 = vmatprep.subr.bf16.mxu0 %v1479
        %1597 = vmatpush1.bf16.msra.mxu0 %v1478
        %1598 = vmatprep.subr.bf16.mxu0 %v1483
        %1599 = vmatpush1.bf16.msra.mxu0 %v1482
        %1600 = vmatprep.subr.bf16.mxu0 %v1487
        %1601 = vmatpush1.bf16.msra.mxu0 %v1486
        %1602 = vmatprep.subr.bf16.mxu0 %v1491
        %1603 = vmatpush1.bf16.msra.mxu0 %v1490
        %1604 = vmatprep.subr.bf16.mxu0 %v1495
        %1605 = vmatpush1.bf16.msra.mxu0 %v1494
        %1606 = vmatprep.subr.bf16.mxu0 %v1499
        %1607 = vmatpush1.bf16.msra.mxu0 %v1498
        %1608 = vmatprep.subr.bf16.mxu0 %v1503
        %1609 = vmatpush1.bf16.msra.mxu0 %v1502
        %1610 = vmatprep.subr.bf16.mxu0 %v1507
        %1611 = vmatpush1.bf16.msra.mxu0 %v1506
        %1612 = vmatprep.subr.bf16.mxu0 %v1511
        %1613 = vmatpush1.bf16.msra.mxu0 %v1510
        %1614 = vmatprep.subr.bf16.mxu0 %v1515
        %1615 = vmatpush1.bf16.msra.mxu0 %v1514
        %1616 = vmatprep.subr.bf16.mxu0 %v1519
        %1617 = vmatpush1.bf16.msra.mxu0 %v1518
        %1618 = vmatprep.mubr.bf16.mxu0 %v1139
        %1619 = vmatmul.mubr.bf16.gmra.mrb[0].mxu0 %v1138
        %v1620 = vpop.f32.mrb[0].mxu0
        %v1621 = vadd.f32 0.0, %v1620
        %v1622 = vpop.f32.mrb[0].mxu0
        %v1623 = vadd.f32 0.0, %v1622
        %v1624 = vpop.f32.mrb[0].mxu0
        %v1625 = vadd.f32 0.0, %v1624
        %v1626 = vpop.f32.mrb[0].mxu0
        %v1627 = vadd.f32 0.0, %v1626
        %1628 = vmatprep.mubr.bf16.mxu0 %v1141
        %1629 = vmatmul.mubr.bf16.gmra.mrb[0].mxu0 %v1140
        %v1630 = vpop.f32.mrb[0].mxu0
        %v1631 = vadd.f32 0.0, %v1630
        %v1632 = vpop.f32.mrb[0].mxu0
        %v1633 = vadd.f32 0.0, %v1632
        %v1634 = vpop.f32.mrb[0].mxu0
        %v1635 = vadd.f32 0.0, %v1634
        %v1636 = vpop.f32.mrb[0].mxu0
        %v1637 = vadd.f32 0.0, %v1636
        %1638 = vmatprep.mubr.bf16.mxu0 %v1143
        %1639 = vmatmul.mubr.bf16.gmra.mrb[0].mxu0 %v1142
        %v1640 = vpop.f32.mrb[0].mxu0
        %v1641 = vadd.f32 0.0, %v1640
        %v1642 = vpop.f32.mrb[0].mxu0
        %v1643 = vadd.f32 0.0, %v1642
        %v1644 = vpop.f32.mrb[0].mxu0
        %v1645 = vadd.f32 0.0, %v1644
        %v1646 = vpop.f32.mrb[0].mxu0
        %v1647 = vadd.f32 0.0, %v1646
        %1648 = vmatprep.mubr.bf16.mxu0 %v1145
        %1649 = vmatmul.mubr.bf16.gmra.mrb[0].mxu0 %v1144
        %v1650 = vpop.f32.mrb[0].mxu0
        %v1651 = vadd.f32 0.0, %v1650
        %v1652 = vpop.f32.mrb[0].mxu0
        %v1653 = vadd.f32 0.0, %v1652
        %v1654 = vpop.f32.mrb[0].mxu0
        %v1655 = vadd.f32 0.0, %v1654
        %v1656 = vpop.f32.mrb[0].mxu0
        %v1657 = vadd.f32 0.0, %v1656
        %1658 = vmatprep.mubr.bf16.mxu0 %v1147
        %1659 = vmatmul.mubr.bf16.gmra.mrb[0].mxu0 %v1146
        %v1660 = vpop.f32.mrb[0].mxu0
        %v1661 = vadd.f32 0.0, %v1660
        %v1662 = vpop.f32.mrb[0].mxu0
        %v1663 = vadd.f32 0.0, %v1662
        %v1664 = vpop.f32.mrb[0].mxu0
        %v1665 = vadd.f32 0.0, %v1664
        %v1666 = vpop.f32.mrb[0].mxu0
        %v1667 = vadd.f32 0.0, %v1666
        %1668 = vmatprep.mubr.bf16.mxu0 %v1149
        %1669 = vmatmul.mubr.bf16.gmra.mrb[0].mxu0 %v1148
        %v1670 = vpop.f32.mrb[0].mxu0
        %v1671 = vadd.f32 0.0, %v1670
        %v1672 = vpop.f32.mrb[0].mxu0
        %v1673 = vadd.f32 0.0, %v1672
        %v1674 = vpop.f32.mrb[0].mxu0
        %v1675 = vadd.f32 0.0, %v1674
        %v1676 = vpop.f32.mrb[0].mxu0
        %v1677 = vadd.f32 0.0, %v1676
        %1678 = vmatprep.mubr.bf16.mxu0 %v1151
        %1679 = vmatmul.mubr.bf16.gmra.mrb[0].mxu0 %v1150
        %v1680 = vpop.f32.mrb[0].mxu0
        %v1681 = vadd.f32 0.0, %v1680
        %v1682 = vpop.f32.mrb[0].mxu0
        %v1683 = vadd.f32 0.0, %v1682
        %v1684 = vpop.f32.mrb[0].mxu0
        %v1685 = vadd.f32 0.0, %v1684
        %v1686 = vpop.f32.mrb[0].mxu0
        %v1687 = vadd.f32 0.0, %v1686
        %1688 = vmatprep.mubr.bf16.mxu0 %v1153
        %1689 = vmatmul.mubr.bf16.gmra.mrb[0].mxu0 %v1152
        %v1690 = vpop.f32.mrb[0].mxu0
        %v1691 = vadd.f32 0.0, %v1690
        %v1692 = vpop.f32.mrb[0].mxu0
        %v1693 = vadd.f32 0.0, %v1692
        %v1694 = vpop.f32.mrb[0].mxu0
        %v1695 = vadd.f32 0.0, %v1694
        %v1696 = vpop.f32.mrb[0].mxu0
        %v1697 = vadd.f32 0.0, %v1696
        %1698 = vmatprep.mubr.bf16.mxu0 %v1155
        %1699 = vmatmul.mubr.bf16.gmra.mrb[0].mxu0 %v1154
        %v1700 = vpop.f32.mrb[0].mxu0
        %v1701 = vadd.f32 0.0, %v1700
        %v1702 = vpop.f32.mrb[0].mxu0
        %v1703 = vadd.f32 0.0, %v1702
        %v1704 = vpop.f32.mrb[0].mxu0
        %v1705 = vadd.f32 0.0, %v1704
        %v1706 = vpop.f32.mrb[0].mxu0
        %v1707 = vadd.f32 0.0, %v1706
        %1708 = vmatprep.mubr.bf16.mxu0 %v1157
        %1709 = vmatmul.mubr.bf16.gmra.mrb[0].mxu0 %v1156
        %v1710 = vpop.f32.mrb[0].mxu0
        %v1711 = vadd.f32 0.0, %v1710
        %v1712 = vpop.f32.mrb[0].mxu0
        %v1713 = vadd.f32 0.0, %v1712
        %v1714 = vpop.f32.mrb[0].mxu0
        %v1715 = vadd.f32 0.0, %v1714
        %v1716 = vpop.f32.mrb[0].mxu0
        %v1717 = vadd.f32 0.0, %v1716
        %1718 = vmatprep.mubr.bf16.mxu0 %v1159
        %1719 = vmatmul.mubr.bf16.gmra.mrb[0].mxu0 %v1158
        %v1720 = vpop.f32.mrb[0].mxu0
        %v1721 = vadd.f32 0.0, %v1720
        %v1722 = vpop.f32.mrb[0].mxu0
        %v1723 = vadd.f32 0.0, %v1722
        %v1724 = vpop.f32.mrb[0].mxu0
        %v1725 = vadd.f32 0.0, %v1724
        %v1726 = vpop.f32.mrb[0].mxu0
        %v1727 = vadd.f32 0.0, %v1726
        %1728 = vmatprep.mubr.bf16.mxu0 %v1161
        %1729 = vmatmul.mubr.bf16.gmra.mrb[0].mxu0 %v1160
        %v1730 = vpop.f32.mrb[0].mxu0
        %v1731 = vadd.f32 0.0, %v1730
        %v1732 = vpop.f32.mrb[0].mxu0
        %v1733 = vadd.f32 0.0, %v1732
        %v1734 = vpop.f32.mrb[0].mxu0
        %v1735 = vadd.f32 0.0, %v1734
        %v1736 = vpop.f32.mrb[0].mxu0
        %v1737 = vadd.f32 0.0, %v1736
        %1738 = vmatprep.mubr.bf16.mxu0 %v1163
        %1739 = vmatmul.mubr.bf16.gmra.mrb[0].mxu0 %v1162
        %v1740 = vpop.f32.mrb[0].mxu0
        %v1741 = vadd.f32 0.0, %v1740
        %v1742 = vpop.f32.mrb[0].mxu0
        %v1743 = vadd.f32 0.0, %v1742
        %v1744 = vpop.f32.mrb[0].mxu0
        %v1745 = vadd.f32 0.0, %v1744
        %v1746 = vpop.f32.mrb[0].mxu0
        %v1747 = vadd.f32 0.0, %v1746
        %1748 = vmatprep.mubr.bf16.mxu0 %v1165
        %1749 = vmatmul.mubr.bf16.gmra.mrb[0].mxu0 %v1164
        %v1750 = vpop.f32.mrb[0].mxu0
        %v1751 = vadd.f32 0.0, %v1750
        %v1752 = vpop.f32.mrb[0].mxu0
        %v1753 = vadd.f32 0.0, %v1752
        %v1754 = vpop.f32.mrb[0].mxu0
        %v1755 = vadd.f32 0.0, %v1754
        %v1756 = vpop.f32.mrb[0].mxu0
        %v1757 = vadd.f32 0.0, %v1756
        %1758 = vmatprep.mubr.bf16.mxu0 %v1167
        %1759 = vmatmul.mubr.bf16.gmra.mrb[0].mxu0 %v1166
        %v1760 = vpop.f32.mrb[0].mxu0
        %v1761 = vadd.f32 0.0, %v1760
        %v1762 = vpop.f32.mrb[0].mxu0
        %v1763 = vadd.f32 0.0, %v1762
        %v1764 = vpop.f32.mrb[0].mxu0
        %v1765 = vadd.f32 0.0, %v1764
        %v1766 = vpop.f32.mrb[0].mxu0
        %v1767 = vadd.f32 0.0, %v1766
        %1768 = vmatprep.mubr.bf16.mxu0 %v1169
        %1769 = vmatmul.mubr.bf16.gmra.mrb[0].mxu0 %v1168
        %v1770 = vpop.f32.mrb[0].mxu0
        %v1771 = vadd.f32 0.0, %v1770
        %v1772 = vpop.f32.mrb[0].mxu0
        %v1773 = vadd.f32 0.0, %v1772
        %v1774 = vpop.f32.mrb[0].mxu0
        %v1775 = vadd.f32 0.0, %v1774
        %v1776 = vpop.f32.mrb[0].mxu0
        %v1777 = vadd.f32 0.0, %v1776
        %1778 = vmatprep.mubr.bf16.mxu0 %v1171
        %1779 = vmatmul.mubr.bf16.gmra.mrb[0].mxu0 %v1170
        %v1780 = vpop.f32.mrb[0].mxu0
        %v1781 = vadd.f32 0.0, %v1780
        %v1782 = vpop.f32.mrb[0].mxu0
        %v1783 = vadd.f32 0.0, %v1782
        %v1784 = vpop.f32.mrb[0].mxu0
        %v1785 = vadd.f32 0.0, %v1784
        %v1786 = vpop.f32.mrb[0].mxu0
        %v1787 = vadd.f32 0.0, %v1786
        %1788 = vmatprep.mubr.bf16.mxu0 %v1173
        %1789 = vmatmul.mubr.bf16.gmra.mrb[0].mxu0 %v1172
        %v1790 = vpop.f32.mrb[0].mxu0
        %v1791 = vadd.f32 0.0, %v1790
        %v1792 = vpop.f32.mrb[0].mxu0
        %v1793 = vadd.f32 0.0, %v1792
        %v1794 = vpop.f32.mrb[0].mxu0
        %v1795 = vadd.f32 0.0, %v1794
        %v1796 = vpop.f32.mrb[0].mxu0
        %v1797 = vadd.f32 0.0, %v1796
        %1798 = vmatprep.mubr.bf16.mxu0 %v1175
        %1799 = vmatmul.mubr.bf16.gmra.mrb[0].mxu0 %v1174
        %v1800 = vpop.f32.mrb[0].mxu0
        %v1801 = vadd.f32 0.0, %v1800
        %v1802 = vpop.f32.mrb[0].mxu0
        %v1803 = vadd.f32 0.0, %v1802
        %v1804 = vpop.f32.mrb[0].mxu0
        %v1805 = vadd.f32 0.0, %v1804
        %v1806 = vpop.f32.mrb[0].mxu0
        %v1807 = vadd.f32 0.0, %v1806
        %1808 = vmatprep.mubr.bf16.mxu0 %v1177
        %1809 = vmatmul.mubr.bf16.gmra.mrb[0].mxu0 %v1176
        %v1810 = vpop.f32.mrb[0].mxu0
        %v1811 = vadd.f32 0.0, %v1810
        %v1812 = vpop.f32.mrb[0].mxu0
        %v1813 = vadd.f32 0.0, %v1812
        %v1814 = vpop.f32.mrb[0].mxu0
        %v1815 = vadd.f32 0.0, %v1814
        %v1816 = vpop.f32.mrb[0].mxu0
        %v1817 = vadd.f32 0.0, %v1816
        %1818 = vmatprep.mubr.bf16.mxu0 %v1179
        %1819 = vmatmul.mubr.bf16.gmra.mrb[0].mxu0 %v1178
        %v1820 = vpop.f32.mrb[0].mxu0
        %v1821 = vadd.f32 0.0, %v1820
        %v1822 = vpop.f32.mrb[0].mxu0
        %v1823 = vadd.f32 0.0, %v1822
        %v1824 = vpop.f32.mrb[0].mxu0
        %v1825 = vadd.f32 0.0, %v1824
        %v1826 = vpop.f32.mrb[0].mxu0
        %v1827 = vadd.f32 0.0, %v1826
        %1828 = vmatprep.mubr.bf16.mxu0 %v1181
        %1829 = vmatmul.mubr.bf16.gmra.mrb[0].mxu0 %v1180
        %v1830 = vpop.f32.mrb[0].mxu0
        %v1831 = vadd.f32 0.0, %v1830
        %v1832 = vpop.f32.mrb[0].mxu0
        %v1833 = vadd.f32 0.0, %v1832
        %v1834 = vpop.f32.mrb[0].mxu0
        %v1835 = vadd.f32 0.0, %v1834
        %v1836 = vpop.f32.mrb[0].mxu0
        %v1837 = vadd.f32 0.0, %v1836
        %1838 = vmatprep.mubr.bf16.mxu0 %v1183
        %1839 = vmatmul.mubr.bf16.gmra.mrb[0].mxu0 %v1182
        %v1840 = vpop.f32.mrb[0].mxu0
        %v1841 = vadd.f32 0.0, %v1840
        %v1842 = vpop.f32.mrb[0].mxu0
        %v1843 = vadd.f32 0.0, %v1842
        %v1844 = vpop.f32.mrb[0].mxu0
        %v1845 = vadd.f32 0.0, %v1844
        %v1846 = vpop.f32.mrb[0].mxu0
        %v1847 = vadd.f32 0.0, %v1846
        %1848 = vmatprep.mubr.bf16.mxu0 %v1185
        %1849 = vmatmul.mubr.bf16.gmra.mrb[0].mxu0 %v1184
        %v1850 = vpop.f32.mrb[0].mxu0
        %v1851 = vadd.f32 0.0, %v1850
        %v1852 = vpop.f32.mrb[0].mxu0
        %v1853 = vadd.f32 0.0, %v1852
        %v1854 = vpop.f32.mrb[0].mxu0
        %v1855 = vadd.f32 0.0, %v1854
        %v1856 = vpop.f32.mrb[0].mxu0
        %v1857 = vadd.f32 0.0, %v1856
        %1858 = vmatprep.mubr.bf16.mxu0 %v1187
        %1859 = vmatmul.mubr.bf16.gmra.mrb[0].mxu0 %v1186
        %v1860 = vpop.f32.mrb[0].mxu0
        %v1861 = vadd.f32 0.0, %v1860
        %v1862 = vpop.f32.mrb[0].mxu0
        %v1863 = vadd.f32 0.0, %v1862
        %v1864 = vpop.f32.mrb[0].mxu0
        %v1865 = vadd.f32 0.0, %v1864
        %v1866 = vpop.f32.mrb[0].mxu0
        %v1867 = vadd.f32 0.0, %v1866
        %1868 = vmatprep.mubr.bf16.mxu0 %v1189
        %1869 = vmatmul.mubr.bf16.gmra.mrb[0].mxu0 %v1188
        %v1870 = vpop.f32.mrb[0].mxu0
        %v1871 = vadd.f32 0.0, %v1870
        %v1872 = vpop.f32.mrb[0].mxu0
        %v1873 = vadd.f32 0.0, %v1872
        %v1874 = vpop.f32.mrb[0].mxu0
        %v1875 = vadd.f32 0.0, %v1874
        %v1876 = vpop.f32.mrb[0].mxu0
        %v1877 = vadd.f32 0.0, %v1876
        %1878 = vmatprep.mubr.bf16.mxu0 %v1191
        %1879 = vmatmul.mubr.bf16.gmra.mrb[0].mxu0 %v1190
        %v1880 = vpop.f32.mrb[0].mxu0
        %v1881 = vadd.f32 0.0, %v1880
        %v1882 = vpop.f32.mrb[0].mxu0
        %v1883 = vadd.f32 0.0, %v1882
        %v1884 = vpop.f32.mrb[0].mxu0
        %v1885 = vadd.f32 0.0, %v1884
        %v1886 = vpop.f32.mrb[0].mxu0
        %v1887 = vadd.f32 0.0, %v1886
        %1888 = vmatprep.mubr.bf16.mxu0 %v1193
        %1889 = vmatmul.mubr.bf16.gmra.mrb[0].mxu0 %v1192
        %v1890 = vpop.f32.mrb[0].mxu0
        %v1891 = vadd.f32 0.0, %v1890
        %v1892 = vpop.f32.mrb[0].mxu0
        %v1893 = vadd.f32 0.0, %v1892
        %v1894 = vpop.f32.mrb[0].mxu0
        %v1895 = vadd.f32 0.0, %v1894
        %v1896 = vpop.f32.mrb[0].mxu0
        %v1897 = vadd.f32 0.0, %v1896
        %1898 = vmatprep.mubr.bf16.mxu0 %v1195
        %1899 = vmatmul.mubr.bf16.gmra.mrb[0].mxu0 %v1194
        %v1900 = vpop.f32.mrb[0].mxu0
        %v1901 = vadd.f32 0.0, %v1900
        %v1902 = vpop.f32.mrb[0].mxu0
        %v1903 = vadd.f32 0.0, %v1902
        %v1904 = vpop.f32.mrb[0].mxu0
        %v1905 = vadd.f32 0.0, %v1904
        %v1906 = vpop.f32.mrb[0].mxu0
        %v1907 = vadd.f32 0.0, %v1906
        %1908 = vmatprep.mubr.bf16.mxu0 %v1197
        %1909 = vmatmul.mubr.bf16.gmra.mrb[0].mxu0 %v1196
        %v1910 = vpop.f32.mrb[0].mxu0
        %v1911 = vadd.f32 0.0, %v1910
        %v1912 = vpop.f32.mrb[0].mxu0
        %v1913 = vadd.f32 0.0, %v1912
        %v1914 = vpop.f32.mrb[0].mxu0
        %v1915 = vadd.f32 0.0, %v1914
        %v1916 = vpop.f32.mrb[0].mxu0
        %v1917 = vadd.f32 0.0, %v1916
        %1918 = vmatprep.mubr.bf16.mxu0 %v1199
        %1919 = vmatmul.mubr.bf16.gmra.mrb[0].mxu0 %v1198
        %v1920 = vpop.f32.mrb[0].mxu0
        %v1921 = vadd.f32 0.0, %v1920
        %v1922 = vpop.f32.mrb[0].mxu0
        %v1923 = vadd.f32 0.0, %v1922
        %v1924 = vpop.f32.mrb[0].mxu0
        %v1925 = vadd.f32 0.0, %v1924
        %v1926 = vpop.f32.mrb[0].mxu0
        %v1927 = vadd.f32 0.0, %v1926
        %1928 = vmatprep.mubr.bf16.mxu0 %v1201
        %1929 = vmatmul.mubr.bf16.gmra.mrb[0].mxu0 %v1200
        %v1930 = vpop.f32.mrb[0].mxu0
        %v1931 = vadd.f32 0.0, %v1930
        %v1932 = vpop.f32.mrb[0].mxu0
        %v1933 = vadd.f32 0.0, %v1932
        %v1934 = vpop.f32.mrb[0].mxu0
        %v1935 = vadd.f32 0.0, %v1934
        %v1936 = vpop.f32.mrb[0].mxu0
        %v1937 = vadd.f32 0.0, %v1936
        %1938 = vdwg.mxu0
        %1939 = vmatprep.subr.bf16.mxu0 %v1461
        %1940 = vmatpush1.bf16.msra.mxu0 %v1460
        %1941 = vmatprep.subr.bf16.mxu0 %v1465
        %1942 = vmatpush1.bf16.msra.mxu0 %v1464
        %1943 = vmatprep.subr.bf16.mxu0 %v1469
        %1944 = vmatpush1.bf16.msra.mxu0 %v1468
        %1945 = vmatprep.subr.bf16.mxu0 %v1473
        %1946 = vmatpush1.bf16.msra.mxu0 %v1472
        %1947 = vmatprep.subr.bf16.mxu0 %v1477
        %1948 = vmatpush1.bf16.msra.mxu0 %v1476
        %1949 = vmatprep.subr.bf16.mxu0 %v1481
        %1950 = vmatpush1.bf16.msra.mxu0 %v1480
        %1951 = vmatprep.subr.bf16.mxu0 %v1485
        %1952 = vmatpush1.bf16.msra.mxu0 %v1484
        %1953 = vmatprep.subr.bf16.mxu0 %v1489
        %1954 = vmatpush1.bf16.msra.mxu0 %v1488
        %1955 = vmatprep.subr.bf16.mxu0 %v1493
        %1956 = vmatpush1.bf16.msra.mxu0 %v1492
        %1957 = vmatprep.subr.bf16.mxu0 %v1497
        %1958 = vmatpush1.bf16.msra.mxu0 %v1496
        %1959 = vmatprep.subr.bf16.mxu0 %v1501
        %1960 = vmatpush1.bf16.msra.mxu0 %v1500
        %1961 = vmatprep.subr.bf16.mxu0 %v1505
        %1962 = vmatpush1.bf16.msra.mxu0 %v1504
        %1963 = vmatprep.subr.bf16.mxu0 %v1509
        %1964 = vmatpush1.bf16.msra.mxu0 %v1508
        %1965 = vmatprep.subr.bf16.mxu0 %v1513
        %1966 = vmatpush1.bf16.msra.mxu0 %v1512
        %1967 = vmatprep.subr.bf16.mxu0 %v1517
        %1968 = vmatpush1.bf16.msra.mxu0 %v1516
        %1969 = vmatprep.subr.bf16.mxu0 %v1521
        %1970 = vmatpush1.bf16.msra.mxu0 %v1520
        %1971 = vmatprep.mubr.bf16.mxu0 %v1139
        %1972 = vmatmul.mubr.bf16.gmra.mrb[0].mxu0 %v1138
        %v1973 = vpop.f32.mrb[0].mxu0
        %v1974 = vadd.f32 0.0, %v1973
        %v1975 = vpop.f32.mrb[0].mxu0
        %v1976 = vadd.f32 0.0, %v1975
        %v1977 = vpop.f32.mrb[0].mxu0
        %v1978 = vadd.f32 0.0, %v1977
        %v1979 = vpop.f32.mrb[0].mxu0
        %v1980 = vadd.f32 0.0, %v1979
        %1981 = vmatprep.mubr.bf16.mxu0 %v1141
        %1982 = vmatmul.mubr.bf16.gmra.mrb[0].mxu0 %v1140
        %v1983 = vpop.f32.mrb[0].mxu0
        %v1984 = vadd.f32 0.0, %v1983
        %v1985 = vpop.f32.mrb[0].mxu0
        %v1986 = vadd.f32 0.0, %v1985
        %v1987 = vpop.f32.mrb[0].mxu0
        %v1988 = vadd.f32 0.0, %v1987
        %v1989 = vpop.f32.mrb[0].mxu0
        %v1990 = vadd.f32 0.0, %v1989
        %1991 = vmatprep.mubr.bf16.mxu0 %v1143
        %1992 = vmatmul.mubr.bf16.gmra.mrb[0].mxu0 %v1142
        %v1993 = vpop.f32.mrb[0].mxu0
        %v1994 = vadd.f32 0.0, %v1993
        %v1995 = vpop.f32.mrb[0].mxu0
        %v1996 = vadd.f32 0.0, %v1995
        %v1997 = vpop.f32.mrb[0].mxu0
        %v1998 = vadd.f32 0.0, %v1997
        %v1999 = vpop.f32.mrb[0].mxu0
        %v2000 = vadd.f32 0.0, %v1999
        %2001 = vmatprep.mubr.bf16.mxu0 %v1145
        %2002 = vmatmul.mubr.bf16.gmra.mrb[0].mxu0 %v1144
        %v2003 = vpop.f32.mrb[0].mxu0
        %v2004 = vadd.f32 0.0, %v2003
        %v2005 = vpop.f32.mrb[0].mxu0
        %v2006 = vadd.f32 0.0, %v2005
        %v2007 = vpop.f32.mrb[0].mxu0
        %v2008 = vadd.f32 0.0, %v2007
        %v2009 = vpop.f32.mrb[0].mxu0
        %v2010 = vadd.f32 0.0, %v2009
        %2011 = vmatprep.mubr.bf16.mxu0 %v1147
        %2012 = vmatmul.mubr.bf16.gmra.mrb[0].mxu0 %v1146
        %v2013 = vpop.f32.mrb[0].mxu0
        %v2014 = vadd.f32 0.0, %v2013
        %v2015 = vpop.f32.mrb[0].mxu0
        %v2016 = vadd.f32 0.0, %v2015
        %v2017 = vpop.f32.mrb[0].mxu0
        %v2018 = vadd.f32 0.0, %v2017
        %v2019 = vpop.f32.mrb[0].mxu0
        %v2020 = vadd.f32 0.0, %v2019
        %2021 = vmatprep.mubr.bf16.mxu0 %v1149
        %2022 = vmatmul.mubr.bf16.gmra.mrb[0].mxu0 %v1148
        %v2023 = vpop.f32.mrb[0].mxu0
        %v2024 = vadd.f32 0.0, %v2023
        %v2025 = vpop.f32.mrb[0].mxu0
        %v2026 = vadd.f32 0.0, %v2025
        %v2027 = vpop.f32.mrb[0].mxu0
        %v2028 = vadd.f32 0.0, %v2027
        %v2029 = vpop.f32.mrb[0].mxu0
        %v2030 = vadd.f32 0.0, %v2029
        %2031 = vmatprep.mubr.bf16.mxu0 %v1151
        %2032 = vmatmul.mubr.bf16.gmra.mrb[0].mxu0 %v1150
        %v2033 = vpop.f32.mrb[0].mxu0
        %v2034 = vadd.f32 0.0, %v2033
        %v2035 = vpop.f32.mrb[0].mxu0
        %v2036 = vadd.f32 0.0, %v2035
        %v2037 = vpop.f32.mrb[0].mxu0
        %v2038 = vadd.f32 0.0, %v2037
        %v2039 = vpop.f32.mrb[0].mxu0
        %v2040 = vadd.f32 0.0, %v2039
        %2041 = vmatprep.mubr.bf16.mxu0 %v1153
        %2042 = vmatmul.mubr.bf16.gmra.mrb[0].mxu0 %v1152
        %v2043 = vpop.f32.mrb[0].mxu0
        %v2044 = vadd.f32 0.0, %v2043
        %v2045 = vpop.f32.mrb[0].mxu0
        %v2046 = vadd.f32 0.0, %v2045
        %v2047 = vpop.f32.mrb[0].mxu0
        %v2048 = vadd.f32 0.0, %v2047
        %v2049 = vpop.f32.mrb[0].mxu0
        %v2050 = vadd.f32 0.0, %v2049
        %2051 = vmatprep.mubr.bf16.mxu0 %v1155
        %2052 = vmatmul.mubr.bf16.gmra.mrb[0].mxu0 %v1154
        %v2053 = vpop.f32.mrb[0].mxu0
        %v2054 = vadd.f32 0.0, %v2053
        %v2055 = vpop.f32.mrb[0].mxu0
        %v2056 = vadd.f32 0.0, %v2055
        %v2057 = vpop.f32.mrb[0].mxu0
        %v2058 = vadd.f32 0.0, %v2057
        %v2059 = vpop.f32.mrb[0].mxu0
        %v2060 = vadd.f32 0.0, %v2059
        %2061 = vmatprep.mubr.bf16.mxu0 %v1157
        %2062 = vmatmul.mubr.bf16.gmra.mrb[0].mxu0 %v1156
        %v2063 = vpop.f32.mrb[0].mxu0
        %v2064 = vadd.f32 0.0, %v2063
        %v2065 = vpop.f32.mrb[0].mxu0
        %v2066 = vadd.f32 0.0, %v2065
        %v2067 = vpop.f32.mrb[0].mxu0
        %v2068 = vadd.f32 0.0, %v2067
        %v2069 = vpop.f32.mrb[0].mxu0
        %v2070 = vadd.f32 0.0, %v2069
        %2071 = vmatprep.mubr.bf16.mxu0 %v1159
        %2072 = vmatmul.mubr.bf16.gmra.mrb[0].mxu0 %v1158
        %v2073 = vpop.f32.mrb[0].mxu0
        %v2074 = vadd.f32 0.0, %v2073
        %v2075 = vpop.f32.mrb[0].mxu0
        %v2076 = vadd.f32 0.0, %v2075
        %v2077 = vpop.f32.mrb[0].mxu0
        %v2078 = vadd.f32 0.0, %v2077
        %v2079 = vpop.f32.mrb[0].mxu0
        %v2080 = vadd.f32 0.0, %v2079
        %2081 = vmatprep.mubr.bf16.mxu0 %v1161
        %2082 = vmatmul.mubr.bf16.gmra.mrb[0].mxu0 %v1160
        %v2083 = vpop.f32.mrb[0].mxu0
        %v2084 = vadd.f32 0.0, %v2083
        %v2085 = vpop.f32.mrb[0].mxu0
        %v2086 = vadd.f32 0.0, %v2085
        %v2087 = vpop.f32.mrb[0].mxu0
        %v2088 = vadd.f32 0.0, %v2087
        %v2089 = vpop.f32.mrb[0].mxu0
        %v2090 = vadd.f32 0.0, %v2089
        %2091 = vmatprep.mubr.bf16.mxu0 %v1163
        %2092 = vmatmul.mubr.bf16.gmra.mrb[0].mxu0 %v1162
        %v2093 = vpop.f32.mrb[0].mxu0
        %v2094 = vadd.f32 0.0, %v2093
        %v2095 = vpop.f32.mrb[0].mxu0
        %v2096 = vadd.f32 0.0, %v2095
        %v2097 = vpop.f32.mrb[0].mxu0
        %v2098 = vadd.f32 0.0, %v2097
        %v2099 = vpop.f32.mrb[0].mxu0
        %v2100 = vadd.f32 0.0, %v2099
        %2101 = vmatprep.mubr.bf16.mxu0 %v1165
        %2102 = vmatmul.mubr.bf16.gmra.mrb[0].mxu0 %v1164
        %v2103 = vpop.f32.mrb[0].mxu0
        %v2104 = vadd.f32 0.0, %v2103
        %v2105 = vpop.f32.mrb[0].mxu0
        %v2106 = vadd.f32 0.0, %v2105
        %v2107 = vpop.f32.mrb[0].mxu0
        %v2108 = vadd.f32 0.0, %v2107
        %v2109 = vpop.f32.mrb[0].mxu0
        %v2110 = vadd.f32 0.0, %v2109
        %2111 = vmatprep.mubr.bf16.mxu0 %v1167
        %2112 = vmatmul.mubr.bf16.gmra.mrb[0].mxu0 %v1166
        %v2113 = vpop.f32.mrb[0].mxu0
        %v2114 = vadd.f32 0.0, %v2113
        %v2115 = vpop.f32.mrb[0].mxu0
        %v2116 = vadd.f32 0.0, %v2115
        %v2117 = vpop.f32.mrb[0].mxu0
        %v2118 = vadd.f32 0.0, %v2117
        %v2119 = vpop.f32.mrb[0].mxu0
        %v2120 = vadd.f32 0.0, %v2119
        %2121 = vmatprep.mubr.bf16.mxu0 %v1169
        %2122 = vmatmul.mubr.bf16.gmra.mrb[0].mxu0 %v1168
        %v2123 = vpop.f32.mrb[0].mxu0
        %v2124 = vadd.f32 0.0, %v2123
        %v2125 = vpop.f32.mrb[0].mxu0
        %v2126 = vadd.f32 0.0, %v2125
        %v2127 = vpop.f32.mrb[0].mxu0
        %v2128 = vadd.f32 0.0, %v2127
        %v2129 = vpop.f32.mrb[0].mxu0
        %v2130 = vadd.f32 0.0, %v2129
        %2131 = vmatprep.mubr.bf16.mxu0 %v1171
        %2132 = vmatmul.mubr.bf16.gmra.mrb[0].mxu0 %v1170
        %v2133 = vpop.f32.mrb[0].mxu0
        %v2134 = vadd.f32 0.0, %v2133
        %v2135 = vpop.f32.mrb[0].mxu0
        %v2136 = vadd.f32 0.0, %v2135
        %v2137 = vpop.f32.mrb[0].mxu0
        %v2138 = vadd.f32 0.0, %v2137
        %v2139 = vpop.f32.mrb[0].mxu0
        %v2140 = vadd.f32 0.0, %v2139
        %2141 = vmatprep.mubr.bf16.mxu0 %v1173
        %2142 = vmatmul.mubr.bf16.gmra.mrb[0].mxu0 %v1172
        %v2143 = vpop.f32.mrb[0].mxu0
        %v2144 = vadd.f32 0.0, %v2143
        %v2145 = vpop.f32.mrb[0].mxu0
        %v2146 = vadd.f32 0.0, %v2145
        %v2147 = vpop.f32.mrb[0].mxu0
        %v2148 = vadd.f32 0.0, %v2147
        %v2149 = vpop.f32.mrb[0].mxu0
        %v2150 = vadd.f32 0.0, %v2149
        %2151 = vmatprep.mubr.bf16.mxu0 %v1175
        %2152 = vmatmul.mubr.bf16.gmra.mrb[0].mxu0 %v1174
        %v2153 = vpop.f32.mrb[0].mxu0
        %v2154 = vadd.f32 0.0, %v2153
        %v2155 = vpop.f32.mrb[0].mxu0
        %v2156 = vadd.f32 0.0, %v2155
        %v2157 = vpop.f32.mrb[0].mxu0
        %v2158 = vadd.f32 0.0, %v2157
        %v2159 = vpop.f32.mrb[0].mxu0
        %v2160 = vadd.f32 0.0, %v2159
        %2161 = vmatprep.mubr.bf16.mxu0 %v1177
        %2162 = vmatmul.mubr.bf16.gmra.mrb[0].mxu0 %v1176
        %v2163 = vpop.f32.mrb[0].mxu0
        %v2164 = vadd.f32 0.0, %v2163
        %v2165 = vpop.f32.mrb[0].mxu0
        %v2166 = vadd.f32 0.0, %v2165
        %v2167 = vpop.f32.mrb[0].mxu0
        %v2168 = vadd.f32 0.0, %v2167
        %v2169 = vpop.f32.mrb[0].mxu0
        %v2170 = vadd.f32 0.0, %v2169
        %2171 = vmatprep.mubr.bf16.mxu0 %v1179
        %2172 = vmatmul.mubr.bf16.gmra.mrb[0].mxu0 %v1178
        %v2173 = vpop.f32.mrb[0].mxu0
        %v2174 = vadd.f32 0.0, %v2173
        %v2175 = vpop.f32.mrb[0].mxu0
        %v2176 = vadd.f32 0.0, %v2175
        %v2177 = vpop.f32.mrb[0].mxu0
        %v2178 = vadd.f32 0.0, %v2177
        %v2179 = vpop.f32.mrb[0].mxu0
        %v2180 = vadd.f32 0.0, %v2179
        %2181 = vmatprep.mubr.bf16.mxu0 %v1181
        %2182 = vmatmul.mubr.bf16.gmra.mrb[0].mxu0 %v1180
        %v2183 = vpop.f32.mrb[0].mxu0
        %v2184 = vadd.f32 0.0, %v2183
        %v2185 = vpop.f32.mrb[0].mxu0
        %v2186 = vadd.f32 0.0, %v2185
        %v2187 = vpop.f32.mrb[0].mxu0
        %v2188 = vadd.f32 0.0, %v2187
        %v2189 = vpop.f32.mrb[0].mxu0
        %v2190 = vadd.f32 0.0, %v2189
        %2191 = vmatprep.mubr.bf16.mxu0 %v1183
        %2192 = vmatmul.mubr.bf16.gmra.mrb[0].mxu0 %v1182
        %v2193 = vpop.f32.mrb[0].mxu0
        %v2194 = vadd.f32 0.0, %v2193
        %v2195 = vpop.f32.mrb[0].mxu0
        %v2196 = vadd.f32 0.0, %v2195
        %v2197 = vpop.f32.mrb[0].mxu0
        %v2198 = vadd.f32 0.0, %v2197
        %v2199 = vpop.f32.mrb[0].mxu0
        %v2200 = vadd.f32 0.0, %v2199
        %2201 = vmatprep.mubr.bf16.mxu0 %v1185
        %2202 = vmatmul.mubr.bf16.gmra.mrb[0].mxu0 %v1184
        %v2203 = vpop.f32.mrb[0].mxu0
        %v2204 = vadd.f32 0.0, %v2203
        %v2205 = vpop.f32.mrb[0].mxu0
        %v2206 = vadd.f32 0.0, %v2205
        %v2207 = vpop.f32.mrb[0].mxu0
        %v2208 = vadd.f32 0.0, %v2207
        %v2209 = vpop.f32.mrb[0].mxu0
        %v2210 = vadd.f32 0.0, %v2209
        %2211 = vmatprep.mubr.bf16.mxu0 %v1187
        %2212 = vmatmul.mubr.bf16.gmra.mrb[0].mxu0 %v1186
        %v2213 = vpop.f32.mrb[0].mxu0
        %v2214 = vadd.f32 0.0, %v2213
        %v2215 = vpop.f32.mrb[0].mxu0
        %v2216 = vadd.f32 0.0, %v2215
        %v2217 = vpop.f32.mrb[0].mxu0
        %v2218 = vadd.f32 0.0, %v2217
        %v2219 = vpop.f32.mrb[0].mxu0
        %v2220 = vadd.f32 0.0, %v2219
        %2221 = vmatprep.mubr.bf16.mxu0 %v1189
        %2222 = vmatmul.mubr.bf16.gmra.mrb[0].mxu0 %v1188
        %v2223 = vpop.f32.mrb[0].mxu0
        %v2224 = vadd.f32 0.0, %v2223
        %v2225 = vpop.f32.mrb[0].mxu0
        %v2226 = vadd.f32 0.0, %v2225
        %v2227 = vpop.f32.mrb[0].mxu0
        %v2228 = vadd.f32 0.0, %v2227
        %v2229 = vpop.f32.mrb[0].mxu0
        %v2230 = vadd.f32 0.0, %v2229
        %2231 = vmatprep.mubr.bf16.mxu0 %v1191
        %2232 = vmatmul.mubr.bf16.gmra.mrb[0].mxu0 %v1190
        %v2233 = vpop.f32.mrb[0].mxu0
        %v2234 = vadd.f32 0.0, %v2233
        %v2235 = vpop.f32.mrb[0].mxu0
        %v2236 = vadd.f32 0.0, %v2235
        %v2237 = vpop.f32.mrb[0].mxu0
        %v2238 = vadd.f32 0.0, %v2237
        %v2239 = vpop.f32.mrb[0].mxu0
        %v2240 = vadd.f32 0.0, %v2239
        %2241 = vmatprep.mubr.bf16.mxu0 %v1193
        %2242 = vmatmul.mubr.bf16.gmra.mrb[0].mxu0 %v1192
        %v2243 = vpop.f32.mrb[0].mxu0
        %v2244 = vadd.f32 0.0, %v2243
        %v2245 = vpop.f32.mrb[0].mxu0
        %v2246 = vadd.f32 0.0, %v2245
        %v2247 = vpop.f32.mrb[0].mxu0
        %v2248 = vadd.f32 0.0, %v2247
        %v2249 = vpop.f32.mrb[0].mxu0
        %v2250 = vadd.f32 0.0, %v2249
        %2251 = vmatprep.mubr.bf16.mxu0 %v1195
        %2252 = vmatmul.mubr.bf16.gmra.mrb[0].mxu0 %v1194
        %v2253 = vpop.f32.mrb[0].mxu0
        %v2254 = vadd.f32 0.0, %v2253
        %v2255 = vpop.f32.mrb[0].mxu0
        %v2256 = vadd.f32 0.0, %v2255
        %v2257 = vpop.f32.mrb[0].mxu0
        %v2258 = vadd.f32 0.0, %v2257
        %v2259 = vpop.f32.mrb[0].mxu0
        %v2260 = vadd.f32 0.0, %v2259
        %2261 = vmatprep.mubr.bf16.mxu0 %v1197
        %2262 = vmatmul.mubr.bf16.gmra.mrb[0].mxu0 %v1196
        %v2263 = vpop.f32.mrb[0].mxu0
        %v2264 = vadd.f32 0.0, %v2263
        %v2265 = vpop.f32.mrb[0].mxu0
        %v2266 = vadd.f32 0.0, %v2265
        %v2267 = vpop.f32.mrb[0].mxu0
        %v2268 = vadd.f32 0.0, %v2267
        %v2269 = vpop.f32.mrb[0].mxu0
        %v2270 = vadd.f32 0.0, %v2269
        %2271 = vmatprep.mubr.bf16.mxu0 %v1199
        %2272 = vmatmul.mubr.bf16.gmra.mrb[0].mxu0 %v1198
        %v2273 = vpop.f32.mrb[0].mxu0
        %v2274 = vadd.f32 0.0, %v2273
        %v2275 = vpop.f32.mrb[0].mxu0
        %v2276 = vadd.f32 0.0, %v2275
        %v2277 = vpop.f32.mrb[0].mxu0
        %v2278 = vadd.f32 0.0, %v2277
        %v2279 = vpop.f32.mrb[0].mxu0
        %v2280 = vadd.f32 0.0, %v2279
        %2281 = vmatprep.mubr.bf16.mxu0 %v1201
        %2282 = vmatmul.mubr.bf16.gmra.mrb[0].mxu0 %v1200
        %v2283 = vpop.f32.mrb[0].mxu0
        %v2284 = vadd.f32 0.0, %v2283
        %v2285 = vpop.f32.mrb[0].mxu0
        %v2286 = vadd.f32 0.0, %v2285
        %v2287 = vpop.f32.mrb[0].mxu0
        %v2288 = vadd.f32 0.0, %v2287
        %v2289 = vpop.f32.mrb[0].mxu0
        %v2290 = vadd.f32 0.0, %v2289
        %2291 = vdwg.mxu0
        %v2292 = vadd.f32 %v562, %v1621
        %v2293 = vadd.f32 %v563, %v1623
        %v2294 = vadd.f32 %v564, %v1974
        %v2295 = vadd.f32 %v565, %v1976
        %v2296 = vadd.f32 %v566, %v1625
        %v2297 = vadd.f32 %v567, %v1627
        %v2298 = vadd.f32 %v568, %v1978
        %v2299 = vadd.f32 %v569, %v1980
        %v2300 = vadd.f32 %v570, %v1631
        %v2301 = vadd.f32 %v571, %v1633
        %v2302 = vadd.f32 %v572, %v1984
        %v2303 = vadd.f32 %v573, %v1986
        %v2304 = vadd.f32 %v574, %v1635
        %v2305 = vadd.f32 %v575, %v1637
        %v2306 = vadd.f32 %v576, %v1988
        %v2307 = vadd.f32 %v577, %v1990
        %v2308 = vadd.f32 %v578, %v1641
        %v2309 = vadd.f32 %v579, %v1643
        %v2310 = vadd.f32 %v580, %v1994
        %v2311 = vadd.f32 %v581, %v1996
        %v2312 = vadd.f32 %v582, %v1645
        %v2313 = vadd.f32 %v583, %v1647
        %v2314 = vadd.f32 %v584, %v1998
        %v2315 = vadd.f32 %v585, %v2000
        %v2316 = vadd.f32 %v586, %v1651
        %v2317 = vadd.f32 %v587, %v1653
        %v2318 = vadd.f32 %v588, %v2004
        %v2319 = vadd.f32 %v589, %v2006
        %v2320 = vadd.f32 %v590, %v1655
        %v2321 = vadd.f32 %v591, %v1657
        %v2322 = vadd.f32 %v592, %v2008
        %v2323 = vadd.f32 %v593, %v2010
        %v2324 = vadd.f32 %v594, %v1661
        %v2325 = vadd.f32 %v595, %v1663
        %v2326 = vadd.f32 %v596, %v2014
        %v2327 = vadd.f32 %v597, %v2016
        %v2328 = vadd.f32 %v598, %v1665
        %v2329 = vadd.f32 %v599, %v1667
        %v2330 = vadd.f32 %v600, %v2018
        %v2331 = vadd.f32 %v601, %v2020
        %v2332 = vadd.f32 %v602, %v1671
        %v2333 = vadd.f32 %v603, %v1673
        %v2334 = vadd.f32 %v604, %v2024
        %v2335 = vadd.f32 %v605, %v2026
        %v2336 = vadd.f32 %v606, %v1675
        %v2337 = vadd.f32 %v607, %v1677
        %v2338 = vadd.f32 %v608, %v2028
        %v2339 = vadd.f32 %v609, %v2030
        %v2340 = vadd.f32 %v610, %v1681
        %v2341 = vadd.f32 %v611, %v1683
        %v2342 = vadd.f32 %v612, %v2034
        %v2343 = vadd.f32 %v613, %v2036
        %v2344 = vadd.f32 %v614, %v1685
        %v2345 = vadd.f32 %v615, %v1687
        %v2346 = vadd.f32 %v616, %v2038
        %v2347 = vadd.f32 %v617, %v2040
        %v2348 = vadd.f32 %v618, %v1691
        %v2349 = vadd.f32 %v619, %v1693
        %v2350 = vadd.f32 %v620, %v2044
        %v2351 = vadd.f32 %v621, %v2046
        %v2352 = vadd.f32 %v622, %v1695
        %v2353 = vadd.f32 %v623, %v1697
        %v2354 = vadd.f32 %v624, %v2048
        %v2355 = vadd.f32 %v625, %v2050
        %v2356 = vadd.f32 %v626, %v1701
        %v2357 = vadd.f32 %v627, %v1703
        %v2358 = vadd.f32 %v628, %v2054
        %v2359 = vadd.f32 %v629, %v2056
        %v2360 = vadd.f32 %v630, %v1705
        %v2361 = vadd.f32 %v631, %v1707
        %v2362 = vadd.f32 %v632, %v2058
        %v2363 = vadd.f32 %v633, %v2060
        %v2364 = vadd.f32 %v634, %v1711
        %v2365 = vadd.f32 %v635, %v1713
        %v2366 = vadd.f32 %v636, %v2064
        %v2367 = vadd.f32 %v637, %v2066
        %v2368 = vadd.f32 %v638, %v1715
        %v2369 = vadd.f32 %v639, %v1717
        %v2370 = vadd.f32 %v640, %v2068
        %v2371 = vadd.f32 %v641, %v2070
        %v2372 = vadd.f32 %v642, %v1721
        %v2373 = vadd.f32 %v643, %v1723
        %v2374 = vadd.f32 %v644, %v2074
        %v2375 = vadd.f32 %v645, %v2076
        %v2376 = vadd.f32 %v646, %v1725
        %v2377 = vadd.f32 %v647, %v1727
        %v2378 = vadd.f32 %v648, %v2078
        %v2379 = vadd.f32 %v649, %v2080
        %v2380 = vadd.f32 %v650, %v1731
        %v2381 = vadd.f32 %v651, %v1733
        %v2382 = vadd.f32 %v652, %v2084
        %v2383 = vadd.f32 %v653, %v2086
        %v2384 = vadd.f32 %v654, %v1735
        %v2385 = vadd.f32 %v655, %v1737
        %v2386 = vadd.f32 %v656, %v2088
        %v2387 = vadd.f32 %v657, %v2090
        %v2388 = vadd.f32 %v658, %v1741
        %v2389 = vadd.f32 %v659, %v1743
        %v2390 = vadd.f32 %v660, %v2094
        %v2391 = vadd.f32 %v661, %v2096
        %v2392 = vadd.f32 %v662, %v1745
        %v2393 = vadd.f32 %v663, %v1747
        %v2394 = vadd.f32 %v664, %v2098
        %v2395 = vadd.f32 %v665, %v2100
        %v2396 = vadd.f32 %v666, %v1751
        %v2397 = vadd.f32 %v667, %v1753
        %v2398 = vadd.f32 %v668, %v2104
        %v2399 = vadd.f32 %v669, %v2106
        %v2400 = vadd.f32 %v670, %v1755
        %v2401 = vadd.f32 %v671, %v1757
        %v2402 = vadd.f32 %v672, %v2108
        %v2403 = vadd.f32 %v673, %v2110
        %v2404 = vadd.f32 %v674, %v1761
        %v2405 = vadd.f32 %v675, %v1763
        %v2406 = vadd.f32 %v676, %v2114
        %v2407 = vadd.f32 %v677, %v2116
        %v2408 = vadd.f32 %v678, %v1765
        %v2409 = vadd.f32 %v679, %v1767
        %v2410 = vadd.f32 %v680, %v2118
        %v2411 = vadd.f32 %v681, %v2120
        %v2412 = vadd.f32 %v682, %v1771
        %v2413 = vadd.f32 %v683, %v1773
        %v2414 = vadd.f32 %v684, %v2124
        %v2415 = vadd.f32 %v685, %v2126
        %v2416 = vadd.f32 %v686, %v1775
        %v2417 = vadd.f32 %v687, %v1777
        %v2418 = vadd.f32 %v688, %v2128
        %v2419 = vadd.f32 %v689, %v2130
        %v2420 = vadd.f32 %v690, %v1781
        %v2421 = vadd.f32 %v691, %v1783
        %v2422 = vadd.f32 %v692, %v2134
        %v2423 = vadd.f32 %v693, %v2136
        %v2424 = vadd.f32 %v694, %v1785
        %v2425 = vadd.f32 %v695, %v1787
        %v2426 = vadd.f32 %v696, %v2138
        %v2427 = vadd.f32 %v697, %v2140
        %v2428 = vadd.f32 %v698, %v1791
        %v2429 = vadd.f32 %v699, %v1793
        %v2430 = vadd.f32 %v700, %v2144
        %v2431 = vadd.f32 %v701, %v2146
        %v2432 = vadd.f32 %v702, %v1795
        %v2433 = vadd.f32 %v703, %v1797
        %v2434 = vadd.f32 %v704, %v2148
        %v2435 = vadd.f32 %v705, %v2150
        %v2436 = vadd.f32 %v706, %v1801
        %v2437 = vadd.f32 %v707, %v1803
        %v2438 = vadd.f32 %v708, %v2154
        %v2439 = vadd.f32 %v709, %v2156
        %v2440 = vadd.f32 %v710, %v1805
        %v2441 = vadd.f32 %v711, %v1807
        %v2442 = vadd.f32 %v712, %v2158
        %v2443 = vadd.f32 %v713, %v2160
        %v2444 = vadd.f32 %v714, %v1811
        %v2445 = vadd.f32 %v715, %v1813
        %v2446 = vadd.f32 %v716, %v2164
        %v2447 = vadd.f32 %v717, %v2166
        %v2448 = vadd.f32 %v718, %v1815
        %v2449 = vadd.f32 %v719, %v1817
        %v2450 = vadd.f32 %v720, %v2168
        %v2451 = vadd.f32 %v721, %v2170
        %v2452 = vadd.f32 %v722, %v1821
        %v2453 = vadd.f32 %v723, %v1823
        %v2454 = vadd.f32 %v724, %v2174
        %v2455 = vadd.f32 %v725, %v2176
        %v2456 = vadd.f32 %v726, %v1825
        %v2457 = vadd.f32 %v727, %v1827
        %v2458 = vadd.f32 %v728, %v2178
        %v2459 = vadd.f32 %v729, %v2180
        %v2460 = vadd.f32 %v730, %v1831
        %v2461 = vadd.f32 %v731, %v1833
        %v2462 = vadd.f32 %v732, %v2184
        %v2463 = vadd.f32 %v733, %v2186
        %v2464 = vadd.f32 %v734, %v1835
        %v2465 = vadd.f32 %v735, %v1837
        %v2466 = vadd.f32 %v736, %v2188
        %v2467 = vadd.f32 %v737, %v2190
        %v2468 = vadd.f32 %v738, %v1841
        %v2469 = vadd.f32 %v739, %v1843
        %v2470 = vadd.f32 %v740, %v2194
        %v2471 = vadd.f32 %v741, %v2196
        %v2472 = vadd.f32 %v742, %v1845
        %v2473 = vadd.f32 %v743, %v1847
        %v2474 = vadd.f32 %v744, %v2198
        %v2475 = vadd.f32 %v745, %v2200
        %v2476 = vadd.f32 %v746, %v1851
        %v2477 = vadd.f32 %v747, %v1853
        %v2478 = vadd.f32 %v748, %v2204
        %v2479 = vadd.f32 %v749, %v2206
        %v2480 = vadd.f32 %v750, %v1855
        %v2481 = vadd.f32 %v751, %v1857
        %v2482 = vadd.f32 %v752, %v2208
        %v2483 = vadd.f32 %v753, %v2210
        %v2484 = vadd.f32 %v754, %v1861
        %v2485 = vadd.f32 %v755, %v1863
        %v2486 = vadd.f32 %v756, %v2214
        %v2487 = vadd.f32 %v757, %v2216
        %v2488 = vadd.f32 %v758, %v1865
        %v2489 = vadd.f32 %v759, %v1867
        %v2490 = vadd.f32 %v760, %v2218
        %v2491 = vadd.f32 %v761, %v2220
        %v2492 = vadd.f32 %v762, %v1871
        %v2493 = vadd.f32 %v763, %v1873
        %v2494 = vadd.f32 %v764, %v2224
        %v2495 = vadd.f32 %v765, %v2226
        %v2496 = vadd.f32 %v766, %v1875
        %v2497 = vadd.f32 %v767, %v1877
        %v2498 = vadd.f32 %v768, %v2228
        %v2499 = vadd.f32 %v769, %v2230
        %v2500 = vadd.f32 %v770, %v1881
        %v2501 = vadd.f32 %v771, %v1883
        %v2502 = vadd.f32 %v772, %v2234
        %v2503 = vadd.f32 %v773, %v2236
        %v2504 = vadd.f32 %v774, %v1885
        %v2505 = vadd.f32 %v775, %v1887
        %v2506 = vadd.f32 %v776, %v2238
        %v2507 = vadd.f32 %v777, %v2240
        %v2508 = vadd.f32 %v778, %v1891
        %v2509 = vadd.f32 %v779, %v1893
        %v2510 = vadd.f32 %v780, %v2244
        %v2511 = vadd.f32 %v781, %v2246
        %v2512 = vadd.f32 %v782, %v1895
        %v2513 = vadd.f32 %v783, %v1897
        %v2514 = vadd.f32 %v784, %v2248
        %v2515 = vadd.f32 %v785, %v2250
        %v2516 = vadd.f32 %v786, %v1901
        %v2517 = vadd.f32 %v787, %v1903
        %v2518 = vadd.f32 %v788, %v2254
        %v2519 = vadd.f32 %v789, %v2256
        %v2520 = vadd.f32 %v790, %v1905
        %v2521 = vadd.f32 %v791, %v1907
        %v2522 = vadd.f32 %v792, %v2258
        %v2523 = vadd.f32 %v793, %v2260
        %v2524 = vadd.f32 %v794, %v1911
        %v2525 = vadd.f32 %v795, %v1913
        %v2526 = vadd.f32 %v796, %v2264
        %v2527 = vadd.f32 %v797, %v2266
        %v2528 = vadd.f32 %v798, %v1915
        %v2529 = vadd.f32 %v799, %v1917
        %v2530 = vadd.f32 %v800, %v2268
        %v2531 = vadd.f32 %v801, %v2270
        %v2532 = vadd.f32 %v802, %v1921
        %v2533 = vadd.f32 %v803, %v1923
        %v2534 = vadd.f32 %v804, %v2274
        %v2535 = vadd.f32 %v805, %v2276
        %v2536 = vadd.f32 %v806, %v1925
        %v2537 = vadd.f32 %v807, %v1927
        %v2538 = vadd.f32 %v808, %v2278
        %v2539 = vadd.f32 %v809, %v2280
        %v2540 = vadd.f32 %v810, %v1931
        %v2541 = vadd.f32 %v811, %v1933
        %v2542 = vadd.f32 %v812, %v2284
        %v2543 = vadd.f32 %v813, %v2286
        %v2544 = vadd.f32 %v814, %v1935
        %v2545 = vadd.f32 %v815, %v1937
        %v2546 = vadd.f32 %v816, %v2288
        %v2547 = vadd.f32 %v817, %v2290
        %2548 = vst [vmem:[#allocation2] sm:$0xff] %v2292
        %2549 = vst [vmem:[#allocation2 + $0x8] sm:$0xff] %v2293
        %2550 = vst [vmem:[#allocation2 + $0x10] sm:$0xff] %v2294
        %2551 = vst [vmem:[#allocation2 + $0x18] sm:$0xff] %v2295
        %2552 = vst [vmem:[#allocation2 + $0x20] sm:$0xff] %v2296
        %2553 = vst [vmem:[#allocation2 + $0x28] sm:$0xff] %v2297
        %2554 = vst [vmem:[#allocation2 + $0x30] sm:$0xff] %v2298
        %2555 = vst [vmem:[#allocation2 + $0x38] sm:$0xff] %v2299
        %2556 = vst [vmem:[#allocation2 + $0x40] sm:$0xff] %v2300
        %2557 = vst [vmem:[#allocation2 + $0x48] sm:$0xff] %v2301
        %2558 = vst [vmem:[#allocation2 + $0x50] sm:$0xff] %v2302
        %2559 = vst [vmem:[#allocation2 + $0x58] sm:$0xff] %v2303
        %2560 = vst [vmem:[#allocation2 + $0x60] sm:$0xff] %v2304
        %2561 = vst [vmem:[#allocation2 + $0x68] sm:$0xff] %v2305
        %2562 = vst [vmem:[#allocation2 + $0x70] sm:$0xff] %v2306
        %2563 = vst [vmem:[#allocation2 + $0x78] sm:$0xff] %v2307
        %2564 = vst [vmem:[#allocation2 + $0x80] sm:$0xff] %v2308
        %2565 = vst [vmem:[#allocation2 + $0x88] sm:$0xff] %v2309
        %2566 = vst [vmem:[#allocation2 + $0x90] sm:$0xff] %v2310
        %2567 = vst [vmem:[#allocation2 + $0x98] sm:$0xff] %v2311
        %2568 = vst [vmem:[#allocation2 + $0xa0] sm:$0xff] %v2312
        %2569 = vst [vmem:[#allocation2 + $0xa8] sm:$0xff] %v2313
        %2570 = vst [vmem:[#allocation2 + $0xb0] sm:$0xff] %v2314
        %2571 = vst [vmem:[#allocation2 + $0xb8] sm:$0xff] %v2315
        %2572 = vst [vmem:[#allocation2 + $0xc0] sm:$0xff] %v2316
        %2573 = vst [vmem:[#allocation2 + $0xc8] sm:$0xff] %v2317
        %2574 = vst [vmem:[#allocation2 + $0xd0] sm:$0xff] %v2318
        %2575 = vst [vmem:[#allocation2 + $0xd8] sm:$0xff] %v2319
        %2576 = vst [vmem:[#allocation2 + $0xe0] sm:$0xff] %v2320
        %2577 = vst [vmem:[#allocation2 + $0xe8] sm:$0xff] %v2321
        %2578 = vst [vmem:[#allocation2 + $0xf0] sm:$0xff] %v2322
        %2579 = vst [vmem:[#allocation2 + $0xf8] sm:$0xff] %v2323
        %2580 = vst [vmem:[#allocation2 + $0x100] sm:$0xff] %v2324
        %2581 = vst [vmem:[#allocation2 + $0x108] sm:$0xff] %v2325
        %2582 = vst [vmem:[#allocation2 + $0x110] sm:$0xff] %v2326
        %2583 = vst [vmem:[#allocation2 + $0x118] sm:$0xff] %v2327
        %2584 = vst [vmem:[#allocation2 + $0x120] sm:$0xff] %v2328
        %2585 = vst [vmem:[#allocation2 + $0x128] sm:$0xff] %v2329
        %2586 = vst [vmem:[#allocation2 + $0x130] sm:$0xff] %v2330
        %2587 = vst [vmem:[#allocation2 + $0x138] sm:$0xff] %v2331
        %2588 = vst [vmem:[#allocation2 + $0x140] sm:$0xff] %v2332
        %2589 = vst [vmem:[#allocation2 + $0x148] sm:$0xff] %v2333
        %2590 = vst [vmem:[#allocation2 + $0x150] sm:$0xff] %v2334
        %2591 = vst [vmem:[#allocation2 + $0x158] sm:$0xff] %v2335
        %2592 = vst [vmem:[#allocation2 + $0x160] sm:$0xff] %v2336
        %2593 = vst [vmem:[#allocation2 + $0x168] sm:$0xff] %v2337
        %2594 = vst [vmem:[#allocation2 + $0x170] sm:$0xff] %v2338
        %2595 = vst [vmem:[#allocation2 + $0x178] sm:$0xff] %v2339
        %2596 = vst [vmem:[#allocation2 + $0x180] sm:$0xff] %v2340
        %2597 = vst [vmem:[#allocation2 + $0x188] sm:$0xff] %v2341
        %2598 = vst [vmem:[#allocation2 + $0x190] sm:$0xff] %v2342
        %2599 = vst [vmem:[#allocation2 + $0x198] sm:$0xff] %v2343
        %2600 = vst [vmem:[#allocation2 + $0x1a0] sm:$0xff] %v2344
        %2601 = vst [vmem:[#allocation2 + $0x1a8] sm:$0xff] %v2345
        %2602 = vst [vmem:[#allocation2 + $0x1b0] sm:$0xff] %v2346
        %2603 = vst [vmem:[#allocation2 + $0x1b8] sm:$0xff] %v2347
        %2604 = vst [vmem:[#allocation2 + $0x1c0] sm:$0xff] %v2348
        %2605 = vst [vmem:[#allocation2 + $0x1c8] sm:$0xff] %v2349
        %2606 = vst [vmem:[#allocation2 + $0x1d0] sm:$0xff] %v2350
        %2607 = vst [vmem:[#allocation2 + $0x1d8] sm:$0xff] %v2351
        %2608 = vst [vmem:[#allocation2 + $0x1e0] sm:$0xff] %v2352
        %2609 = vst [vmem:[#allocation2 + $0x1e8] sm:$0xff] %v2353
        %2610 = vst [vmem:[#allocation2 + $0x1f0] sm:$0xff] %v2354
        %2611 = vst [vmem:[#allocation2 + $0x1f8] sm:$0xff] %v2355
        %2612 = vst [vmem:[#allocation2 + $0x200] sm:$0xff] %v2356
        %2613 = vst [vmem:[#allocation2 + $0x208] sm:$0xff] %v2357
        %2614 = vst [vmem:[#allocation2 + $0x210] sm:$0xff] %v2358
        %2615 = vst [vmem:[#allocation2 + $0x218] sm:$0xff] %v2359
        %2616 = vst [vmem:[#allocation2 + $0x220] sm:$0xff] %v2360
        %2617 = vst [vmem:[#allocation2 + $0x228] sm:$0xff] %v2361
        %2618 = vst [vmem:[#allocation2 + $0x230] sm:$0xff] %v2362
        %2619 = vst [vmem:[#allocation2 + $0x238] sm:$0xff] %v2363
        %2620 = vst [vmem:[#allocation2 + $0x240] sm:$0xff] %v2364
        %2621 = vst [vmem:[#allocation2 + $0x248] sm:$0xff] %v2365
        %2622 = vst [vmem:[#allocation2 + $0x250] sm:$0xff] %v2366
        %2623 = vst [vmem:[#allocation2 + $0x258] sm:$0xff] %v2367
        %2624 = vst [vmem:[#allocation2 + $0x260] sm:$0xff] %v2368
        %2625 = vst [vmem:[#allocation2 + $0x268] sm:$0xff] %v2369
        %2626 = vst [vmem:[#allocation2 + $0x270] sm:$0xff] %v2370
        %2627 = vst [vmem:[#allocation2 + $0x278] sm:$0xff] %v2371
        %2628 = vst [vmem:[#allocation2 + $0x280] sm:$0xff] %v2372
        %2629 = vst [vmem:[#allocation2 + $0x288] sm:$0xff] %v2373
        %2630 = vst [vmem:[#allocation2 + $0x290] sm:$0xff] %v2374
        %2631 = vst [vmem:[#allocation2 + $0x298] sm:$0xff] %v2375
        %2632 = vst [vmem:[#allocation2 + $0x2a0] sm:$0xff] %v2376
        %2633 = vst [vmem:[#allocation2 + $0x2a8] sm:$0xff] %v2377
        %2634 = vst [vmem:[#allocation2 + $0x2b0] sm:$0xff] %v2378
        %2635 = vst [vmem:[#allocation2 + $0x2b8] sm:$0xff] %v2379
        %2636 = vst [vmem:[#allocation2 + $0x2c0] sm:$0xff] %v2380
        %2637 = vst [vmem:[#allocation2 + $0x2c8] sm:$0xff] %v2381
        %2638 = vst [vmem:[#allocation2 + $0x2d0] sm:$0xff] %v2382
        %2639 = vst [vmem:[#allocation2 + $0x2d8] sm:$0xff] %v2383
        %2640 = vst [vmem:[#allocation2 + $0x2e0] sm:$0xff] %v2384
        %2641 = vst [vmem:[#allocation2 + $0x2e8] sm:$0xff] %v2385
        %2642 = vst [vmem:[#allocation2 + $0x2f0] sm:$0xff] %v2386
        %2643 = vst [vmem:[#allocation2 + $0x2f8] sm:$0xff] %v2387
        %2644 = vst [vmem:[#allocation2 + $0x300] sm:$0xff] %v2388
        %2645 = vst [vmem:[#allocation2 + $0x308] sm:$0xff] %v2389
        %2646 = vst [vmem:[#allocation2 + $0x310] sm:$0xff] %v2390
        %2647 = vst [vmem:[#allocation2 + $0x318] sm:$0xff] %v2391
        %2648 = vst [vmem:[#allocation2 + $0x320] sm:$0xff] %v2392
        %2649 = vst [vmem:[#allocation2 + $0x328] sm:$0xff] %v2393
        %2650 = vst [vmem:[#allocation2 + $0x330] sm:$0xff] %v2394
        %2651 = vst [vmem:[#allocation2 + $0x338] sm:$0xff] %v2395
        %2652 = vst [vmem:[#allocation2 + $0x340] sm:$0xff] %v2396
        %2653 = vst [vmem:[#allocation2 + $0x348] sm:$0xff] %v2397
        %2654 = vst [vmem:[#allocation2 + $0x350] sm:$0xff] %v2398
        %2655 = vst [vmem:[#allocation2 + $0x358] sm:$0xff] %v2399
        %2656 = vst [vmem:[#allocation2 + $0x360] sm:$0xff] %v2400
        %2657 = vst [vmem:[#allocation2 + $0x368] sm:$0xff] %v2401
        %2658 = vst [vmem:[#allocation2 + $0x370] sm:$0xff] %v2402
        %2659 = vst [vmem:[#allocation2 + $0x378] sm:$0xff] %v2403
        %2660 = vst [vmem:[#allocation2 + $0x380] sm:$0xff] %v2404
        %2661 = vst [vmem:[#allocation2 + $0x388] sm:$0xff] %v2405
        %2662 = vst [vmem:[#allocation2 + $0x390] sm:$0xff] %v2406
        %2663 = vst [vmem:[#allocation2 + $0x398] sm:$0xff] %v2407
        %2664 = vst [vmem:[#allocation2 + $0x3a0] sm:$0xff] %v2408
        %2665 = vst [vmem:[#allocation2 + $0x3a8] sm:$0xff] %v2409
        %2666 = vst [vmem:[#allocation2 + $0x3b0] sm:$0xff] %v2410
        %2667 = vst [vmem:[#allocation2 + $0x3b8] sm:$0xff] %v2411
        %2668 = vst [vmem:[#allocation2 + $0x3c0] sm:$0xff] %v2412
        %2669 = vst [vmem:[#allocation2 + $0x3c8] sm:$0xff] %v2413
        %2670 = vst [vmem:[#allocation2 + $0x3d0] sm:$0xff] %v2414
        %2671 = vst [vmem:[#allocation2 + $0x3d8] sm:$0xff] %v2415
        %2672 = vst [vmem:[#allocation2 + $0x3e0] sm:$0xff] %v2416
        %2673 = vst [vmem:[#allocation2 + $0x3e8] sm:$0xff] %v2417
        %2674 = vst [vmem:[#allocation2 + $0x3f0] sm:$0xff] %v2418
        %2675 = vst [vmem:[#allocation2 + $0x3f8] sm:$0xff] %v2419
        %2676 = vst [vmem:[#allocation2 + $0x400] sm:$0xff] %v2420
        %2677 = vst [vmem:[#allocation2 + $0x408] sm:$0xff] %v2421
        %2678 = vst [vmem:[#allocation2 + $0x410] sm:$0xff] %v2422
        %2679 = vst [vmem:[#allocation2 + $0x418] sm:$0xff] %v2423
        %2680 = vst [vmem:[#allocation2 + $0x420] sm:$0xff] %v2424
        %2681 = vst [vmem:[#allocation2 + $0x428] sm:$0xff] %v2425
        %2682 = vst [vmem:[#allocation2 + $0x430] sm:$0xff] %v2426
        %2683 = vst [vmem:[#allocation2 + $0x438] sm:$0xff] %v2427
        %2684 = vst [vmem:[#allocation2 + $0x440] sm:$0xff] %v2428
        %2685 = vst [vmem:[#allocation2 + $0x448] sm:$0xff] %v2429
        %2686 = vst [vmem:[#allocation2 + $0x450] sm:$0xff] %v2430
        %2687 = vst [vmem:[#allocation2 + $0x458] sm:$0xff] %v2431
        %2688 = vst [vmem:[#allocation2 + $0x460] sm:$0xff] %v2432
        %2689 = vst [vmem:[#allocation2 + $0x468] sm:$0xff] %v2433
        %2690 = vst [vmem:[#allocation2 + $0x470] sm:$0xff] %v2434
        %2691 = vst [vmem:[#allocation2 + $0x478] sm:$0xff] %v2435
        %2692 = vst [vmem:[#allocation2 + $0x480] sm:$0xff] %v2436
        %2693 = vst [vmem:[#allocation2 + $0x488] sm:$0xff] %v2437
        %2694 = vst [vmem:[#allocation2 + $0x490] sm:$0xff] %v2438
        %2695 = vst [vmem:[#allocation2 + $0x498] sm:$0xff] %v2439
        %2696 = vst [vmem:[#allocation2 + $0x4a0] sm:$0xff] %v2440
        %2697 = vst [vmem:[#allocation2 + $0x4a8] sm:$0xff] %v2441
        %2698 = vst [vmem:[#allocation2 + $0x4b0] sm:$0xff] %v2442
        %2699 = vst [vmem:[#allocation2 + $0x4b8] sm:$0xff] %v2443
        %2700 = vst [vmem:[#allocation2 + $0x4c0] sm:$0xff] %v2444
        %2701 = vst [vmem:[#allocation2 + $0x4c8] sm:$0xff] %v2445
        %2702 = vst [vmem:[#allocation2 + $0x4d0] sm:$0xff] %v2446
        %2703 = vst [vmem:[#allocation2 + $0x4d8] sm:$0xff] %v2447
        %2704 = vst [vmem:[#allocation2 + $0x4e0] sm:$0xff] %v2448
        %2705 = vst [vmem:[#allocation2 + $0x4e8] sm:$0xff] %v2449
        %2706 = vst [vmem:[#allocation2 + $0x4f0] sm:$0xff] %v2450
        %2707 = vst [vmem:[#allocation2 + $0x4f8] sm:$0xff] %v2451
        %2708 = vst [vmem:[#allocation2 + $0x500] sm:$0xff] %v2452
        %2709 = vst [vmem:[#allocation2 + $0x508] sm:$0xff] %v2453
        %2710 = vst [vmem:[#allocation2 + $0x510] sm:$0xff] %v2454
        %2711 = vst [vmem:[#allocation2 + $0x518] sm:$0xff] %v2455
        %2712 = vst [vmem:[#allocation2 + $0x520] sm:$0xff] %v2456
        %2713 = vst [vmem:[#allocation2 + $0x528] sm:$0xff] %v2457
        %2714 = vst [vmem:[#allocation2 + $0x530] sm:$0xff] %v2458
        %2715 = vst [vmem:[#allocation2 + $0x538] sm:$0xff] %v2459
        %2716 = vst [vmem:[#allocation2 + $0x540] sm:$0xff] %v2460
        %2717 = vst [vmem:[#allocation2 + $0x548] sm:$0xff] %v2461
        %2718 = vst [vmem:[#allocation2 + $0x550] sm:$0xff] %v2462
        %2719 = vst [vmem:[#allocation2 + $0x558] sm:$0xff] %v2463
        %2720 = vst [vmem:[#allocation2 + $0x560] sm:$0xff] %v2464
        %2721 = vst [vmem:[#allocation2 + $0x568] sm:$0xff] %v2465
        %2722 = vst [vmem:[#allocation2 + $0x570] sm:$0xff] %v2466
        %2723 = vst [vmem:[#allocation2 + $0x578] sm:$0xff] %v2467
        %2724 = vst [vmem:[#allocation2 + $0x580] sm:$0xff] %v2468
        %2725 = vst [vmem:[#allocation2 + $0x588] sm:$0xff] %v2469
        %2726 = vst [vmem:[#allocation2 + $0x590] sm:$0xff] %v2470
        %2727 = vst [vmem:[#allocation2 + $0x598] sm:$0xff] %v2471
        %2728 = vst [vmem:[#allocation2 + $0x5a0] sm:$0xff] %v2472
        %2729 = vst [vmem:[#allocation2 + $0x5a8] sm:$0xff] %v2473
        %2730 = vst [vmem:[#allocation2 + $0x5b0] sm:$0xff] %v2474
        %2731 = vst [vmem:[#allocation2 + $0x5b8] sm:$0xff] %v2475
        %2732 = vst [vmem:[#allocation2 + $0x5c0] sm:$0xff] %v2476
        %2733 = vst [vmem:[#allocation2 + $0x5c8] sm:$0xff] %v2477
        %2734 = vst [vmem:[#allocation2 + $0x5d0] sm:$0xff] %v2478
        %2735 = vst [vmem:[#allocation2 + $0x5d8] sm:$0xff] %v2479
        %2736 = vst [vmem:[#allocation2 + $0x5e0] sm:$0xff] %v2480
        %2737 = vst [vmem:[#allocation2 + $0x5e8] sm:$0xff] %v2481
        %2738 = vst [vmem:[#allocation2 + $0x5f0] sm:$0xff] %v2482
        %2739 = vst [vmem:[#allocation2 + $0x5f8] sm:$0xff] %v2483
        %2740 = vst [vmem:[#allocation2 + $0x600] sm:$0xff] %v2484
        %2741 = vst [vmem:[#allocation2 + $0x608] sm:$0xff] %v2485
        %2742 = vst [vmem:[#allocation2 + $0x610] sm:$0xff] %v2486
        %2743 = vst [vmem:[#allocation2 + $0x618] sm:$0xff] %v2487
        %2744 = vst [vmem:[#allocation2 + $0x620] sm:$0xff] %v2488
        %2745 = vst [vmem:[#allocation2 + $0x628] sm:$0xff] %v2489
        %2746 = vst [vmem:[#allocation2 + $0x630] sm:$0xff] %v2490
        %2747 = vst [vmem:[#allocation2 + $0x638] sm:$0xff] %v2491
        %2748 = vst [vmem:[#allocation2 + $0x640] sm:$0xff] %v2492
        %2749 = vst [vmem:[#allocation2 + $0x648] sm:$0xff] %v2493
        %2750 = vst [vmem:[#allocation2 + $0x650] sm:$0xff] %v2494
        %2751 = vst [vmem:[#allocation2 + $0x658] sm:$0xff] %v2495
        %2752 = vst [vmem:[#allocation2 + $0x660] sm:$0xff] %v2496
        %2753 = vst [vmem:[#allocation2 + $0x668] sm:$0xff] %v2497
        %2754 = vst [vmem:[#allocation2 + $0x670] sm:$0xff] %v2498
        %2755 = vst [vmem:[#allocation2 + $0x678] sm:$0xff] %v2499
        %2756 = vst [vmem:[#allocation2 + $0x680] sm:$0xff] %v2500
        %2757 = vst [vmem:[#allocation2 + $0x688] sm:$0xff] %v2501
        %2758 = vst [vmem:[#allocation2 + $0x690] sm:$0xff] %v2502
        %2759 = vst [vmem:[#allocation2 + $0x698] sm:$0xff] %v2503
        %2760 = vst [vmem:[#allocation2 + $0x6a0] sm:$0xff] %v2504
        %2761 = vst [vmem:[#allocation2 + $0x6a8] sm:$0xff] %v2505
        %2762 = vst [vmem:[#allocation2 + $0x6b0] sm:$0xff] %v2506
        %2763 = vst [vmem:[#allocation2 + $0x6b8] sm:$0xff] %v2507
        %2764 = vst [vmem:[#allocation2 + $0x6c0] sm:$0xff] %v2508
        %2765 = vst [vmem:[#allocation2 + $0x6c8] sm:$0xff] %v2509
        %2766 = vst [vmem:[#allocation2 + $0x6d0] sm:$0xff] %v2510
        %2767 = vst [vmem:[#allocation2 + $0x6d8] sm:$0xff] %v2511
        %2768 = vst [vmem:[#allocation2 + $0x6e0] sm:$0xff] %v2512
        %2769 = vst [vmem:[#allocation2 + $0x6e8] sm:$0xff] %v2513
        %2770 = vst [vmem:[#allocation2 + $0x6f0] sm:$0xff] %v2514
        %2771 = vst [vmem:[#allocation2 + $0x6f8] sm:$0xff] %v2515
        %2772 = vst [vmem:[#allocation2 + $0x700] sm:$0xff] %v2516
        %2773 = vst [vmem:[#allocation2 + $0x708] sm:$0xff] %v2517
        %2774 = vst [vmem:[#allocation2 + $0x710] sm:$0xff] %v2518
        %2775 = vst [vmem:[#allocation2 + $0x718] sm:$0xff] %v2519
        %2776 = vst [vmem:[#allocation2 + $0x720] sm:$0xff] %v2520
        %2777 = vst [vmem:[#allocation2 + $0x728] sm:$0xff] %v2521
        %2778 = vst [vmem:[#allocation2 + $0x730] sm:$0xff] %v2522
        %2779 = vst [vmem:[#allocation2 + $0x738] sm:$0xff] %v2523
        %2780 = vst [vmem:[#allocation2 + $0x740] sm:$0xff] %v2524
        %2781 = vst [vmem:[#allocation2 + $0x748] sm:$0xff] %v2525
        %2782 = vst [vmem:[#allocation2 + $0x750] sm:$0xff] %v2526
        %2783 = vst [vmem:[#allocation2 + $0x758] sm:$0xff] %v2527
        %2784 = vst [vmem:[#allocation2 + $0x760] sm:$0xff] %v2528
        %2785 = vst [vmem:[#allocation2 + $0x768] sm:$0xff] %v2529
        %2786 = vst [vmem:[#allocation2 + $0x770] sm:$0xff] %v2530
        %2787 = vst [vmem:[#allocation2 + $0x778] sm:$0xff] %v2531
        %2788 = vst [vmem:[#allocation2 + $0x780] sm:$0xff] %v2532
        %2789 = vst [vmem:[#allocation2 + $0x788] sm:$0xff] %v2533
        %2790 = vst [vmem:[#allocation2 + $0x790] sm:$0xff] %v2534
        %2791 = vst [vmem:[#allocation2 + $0x798] sm:$0xff] %v2535
        %2792 = vst [vmem:[#allocation2 + $0x7a0] sm:$0xff] %v2536
        %2793 = vst [vmem:[#allocation2 + $0x7a8] sm:$0xff] %v2537
        %2794 = vst [vmem:[#allocation2 + $0x7b0] sm:$0xff] %v2538
        %2795 = vst [vmem:[#allocation2 + $0x7b8] sm:$0xff] %v2539
        %2796 = vst [vmem:[#allocation2 + $0x7c0] sm:$0xff] %v2540
        %2797 = vst [vmem:[#allocation2 + $0x7c8] sm:$0xff] %v2541
        %2798 = vst [vmem:[#allocation2 + $0x7d0] sm:$0xff] %v2542
        %2799 = vst [vmem:[#allocation2 + $0x7d8] sm:$0xff] %v2543
        %2800 = vst [vmem:[#allocation2 + $0x7e0] sm:$0xff] %v2544
        %2801 = vst [vmem:[#allocation2 + $0x7e8] sm:$0xff] %v2545
        %2802 = vst [vmem:[#allocation2 + $0x7f0] sm:$0xff] %v2546
        %2803 = vst [vmem:[#allocation2 + $0x7f8] sm:$0xff] %v2547
        // Predicated region
        $region49: #{tpu_custom_call.1} parent=31 // pred_check
          %p2804 = pneg %p302
        $region50: #{tpu_custom_call.1} parent=31 // pred_check_branch
          %2806 = sbr.rel (%p2804) target = $region52
        $region51: #{tpu_custom_call.1} parent=31 // pred_region
          %v2807 = vld [vmem:[#allocation2] sm:$0xff]
          %v2808 = vld [vmem:[#allocation2 + $0x8] sm:$0xff]
          %v2809 = vld [vmem:[#allocation2 + $0x10] sm:$0xff]
          %v2810 = vld [vmem:[#allocation2 + $0x18] sm:$0xff]
          %v2811 = vld [vmem:[#allocation2 + $0x20] sm:$0xff]
          %v2812 = vld [vmem:[#allocation2 + $0x28] sm:$0xff]
          %v2813 = vld [vmem:[#allocation2 + $0x30] sm:$0xff]
          %v2814 = vld [vmem:[#allocation2 + $0x38] sm:$0xff]
          %v2815 = vld [vmem:[#allocation2 + $0x40] sm:$0xff]
          %v2816 = vld [vmem:[#allocation2 + $0x48] sm:$0xff]
          %v2817 = vld [vmem:[#allocation2 + $0x50] sm:$0xff]
          %v2818 = vld [vmem:[#allocation2 + $0x58] sm:$0xff]
          %v2819 = vld [vmem:[#allocation2 + $0x60] sm:$0xff]
          %v2820 = vld [vmem:[#allocation2 + $0x68] sm:$0xff]
          %v2821 = vld [vmem:[#allocation2 + $0x70] sm:$0xff]
          %v2822 = vld [vmem:[#allocation2 + $0x78] sm:$0xff]
          %v2823 = vld [vmem:[#allocation2 + $0x80] sm:$0xff]
          %v2824 = vld [vmem:[#allocation2 + $0x88] sm:$0xff]
          %v2825 = vld [vmem:[#allocation2 + $0x90] sm:$0xff]
          %v2826 = vld [vmem:[#allocation2 + $0x98] sm:$0xff]
          %v2827 = vld [vmem:[#allocation2 + $0xa0] sm:$0xff]
          %v2828 = vld [vmem:[#allocation2 + $0xa8] sm:$0xff]
          %v2829 = vld [vmem:[#allocation2 + $0xb0] sm:$0xff]
          %v2830 = vld [vmem:[#allocation2 + $0xb8] sm:$0xff]
          %v2831 = vld [vmem:[#allocation2 + $0xc0] sm:$0xff]
          %v2832 = vld [vmem:[#allocation2 + $0xc8] sm:$0xff]
          %v2833 = vld [vmem:[#allocation2 + $0xd0] sm:$0xff]
          %v2834 = vld [vmem:[#allocation2 + $0xd8] sm:$0xff]
          %v2835 = vld [vmem:[#allocation2 + $0xe0] sm:$0xff]
          %v2836 = vld [vmem:[#allocation2 + $0xe8] sm:$0xff]
          %v2837 = vld [vmem:[#allocation2 + $0xf0] sm:$0xff]
          %v2838 = vld [vmem:[#allocation2 + $0xf8] sm:$0xff]
          %v2839 = vld [vmem:[#allocation2 + $0x100] sm:$0xff]
          %v2840 = vld [vmem:[#allocation2 + $0x108] sm:$0xff]
          %v2841 = vld [vmem:[#allocation2 + $0x110] sm:$0xff]
          %v2842 = vld [vmem:[#allocation2 + $0x118] sm:$0xff]
          %v2843 = vld [vmem:[#allocation2 + $0x120] sm:$0xff]
          %v2844 = vld [vmem:[#allocation2 + $0x128] sm:$0xff]
          %v2845 = vld [vmem:[#allocation2 + $0x130] sm:$0xff]
          %v2846 = vld [vmem:[#allocation2 + $0x138] sm:$0xff]
          %v2847 = vld [vmem:[#allocation2 + $0x140] sm:$0xff]
          %v2848 = vld [vmem:[#allocation2 + $0x148] sm:$0xff]
          %v2849 = vld [vmem:[#allocation2 + $0x150] sm:$0xff]
          %v2850 = vld [vmem:[#allocation2 + $0x158] sm:$0xff]
          %v2851 = vld [vmem:[#allocation2 + $0x160] sm:$0xff]
          %v2852 = vld [vmem:[#allocation2 + $0x168] sm:$0xff]
          %v2853 = vld [vmem:[#allocation2 + $0x170] sm:$0xff]
          %v2854 = vld [vmem:[#allocation2 + $0x178] sm:$0xff]
          %v2855 = vld [vmem:[#allocation2 + $0x180] sm:$0xff]
          %v2856 = vld [vmem:[#allocation2 + $0x188] sm:$0xff]
          %v2857 = vld [vmem:[#allocation2 + $0x190] sm:$0xff]
          %v2858 = vld [vmem:[#allocation2 + $0x198] sm:$0xff]
          %v2859 = vld [vmem:[#allocation2 + $0x1a0] sm:$0xff]
          %v2860 = vld [vmem:[#allocation2 + $0x1a8] sm:$0xff]
          %v2861 = vld [vmem:[#allocation2 + $0x1b0] sm:$0xff]
          %v2862 = vld [vmem:[#allocation2 + $0x1b8] sm:$0xff]
          %v2863 = vld [vmem:[#allocation2 + $0x1c0] sm:$0xff]
          %v2864 = vld [vmem:[#allocation2 + $0x1c8] sm:$0xff]
          %v2865 = vld [vmem:[#allocation2 + $0x1d0] sm:$0xff]
          %v2866 = vld [vmem:[#allocation2 + $0x1d8] sm:$0xff]
          %v2867 = vld [vmem:[#allocation2 + $0x1e0] sm:$0xff]
          %v2868 = vld [vmem:[#allocation2 + $0x1e8] sm:$0xff]
          %v2869 = vld [vmem:[#allocation2 + $0x1f0] sm:$0xff]
          %v2870 = vld [vmem:[#allocation2 + $0x1f8] sm:$0xff]
          %v2871 = vld [vmem:[#allocation2 + $0x200] sm:$0xff]
          %v2872 = vld [vmem:[#allocation2 + $0x208] sm:$0xff]
          %v2873 = vld [vmem:[#allocation2 + $0x210] sm:$0xff]
          %v2874 = vld [vmem:[#allocation2 + $0x218] sm:$0xff]
          %v2875 = vld [vmem:[#allocation2 + $0x220] sm:$0xff]
          %v2876 = vld [vmem:[#allocation2 + $0x228] sm:$0xff]
          %v2877 = vld [vmem:[#allocation2 + $0x230] sm:$0xff]
          %v2878 = vld [vmem:[#allocation2 + $0x238] sm:$0xff]
          %v2879 = vld [vmem:[#allocation2 + $0x240] sm:$0xff]
          %v2880 = vld [vmem:[#allocation2 + $0x248] sm:$0xff]
          %v2881 = vld [vmem:[#allocation2 + $0x250] sm:$0xff]
          %v2882 = vld [vmem:[#allocation2 + $0x258] sm:$0xff]
          %v2883 = vld [vmem:[#allocation2 + $0x260] sm:$0xff]
          %v2884 = vld [vmem:[#allocation2 + $0x268] sm:$0xff]
          %v2885 = vld [vmem:[#allocation2 + $0x270] sm:$0xff]
          %v2886 = vld [vmem:[#allocation2 + $0x278] sm:$0xff]
          %v2887 = vld [vmem:[#allocation2 + $0x280] sm:$0xff]
          %v2888 = vld [vmem:[#allocation2 + $0x288] sm:$0xff]
          %v2889 = vld [vmem:[#allocation2 + $0x290] sm:$0xff]
          %v2890 = vld [vmem:[#allocation2 + $0x298] sm:$0xff]
          %v2891 = vld [vmem:[#allocation2 + $0x2a0] sm:$0xff]
          %v2892 = vld [vmem:[#allocation2 + $0x2a8] sm:$0xff]
          %v2893 = vld [vmem:[#allocation2 + $0x2b0] sm:$0xff]
          %v2894 = vld [vmem:[#allocation2 + $0x2b8] sm:$0xff]
          %v2895 = vld [vmem:[#allocation2 + $0x2c0] sm:$0xff]
          %v2896 = vld [vmem:[#allocation2 + $0x2c8] sm:$0xff]
          %v2897 = vld [vmem:[#allocation2 + $0x2d0] sm:$0xff]
          %v2898 = vld [vmem:[#allocation2 + $0x2d8] sm:$0xff]
          %v2899 = vld [vmem:[#allocation2 + $0x2e0] sm:$0xff]
          %v2900 = vld [vmem:[#allocation2 + $0x2e8] sm:$0xff]
          %v2901 = vld [vmem:[#allocation2 + $0x2f0] sm:$0xff]
          %v2902 = vld [vmem:[#allocation2 + $0x2f8] sm:$0xff]
          %v2903 = vld [vmem:[#allocation2 + $0x300] sm:$0xff]
          %v2904 = vld [vmem:[#allocation2 + $0x308] sm:$0xff]
          %v2905 = vld [vmem:[#allocation2 + $0x310] sm:$0xff]
          %v2906 = vld [vmem:[#allocation2 + $0x318] sm:$0xff]
          %v2907 = vld [vmem:[#allocation2 + $0x320] sm:$0xff]
          %v2908 = vld [vmem:[#allocation2 + $0x328] sm:$0xff]
          %v2909 = vld [vmem:[#allocation2 + $0x330] sm:$0xff]
          %v2910 = vld [vmem:[#allocation2 + $0x338] sm:$0xff]
          %v2911 = vld [vmem:[#allocation2 + $0x340] sm:$0xff]
          %v2912 = vld [vmem:[#allocation2 + $0x348] sm:$0xff]
          %v2913 = vld [vmem:[#allocation2 + $0x350] sm:$0xff]
          %v2914 = vld [vmem:[#allocation2 + $0x358] sm:$0xff]
          %v2915 = vld [vmem:[#allocation2 + $0x360] sm:$0xff]
          %v2916 = vld [vmem:[#allocation2 + $0x368] sm:$0xff]
          %v2917 = vld [vmem:[#allocation2 + $0x370] sm:$0xff]
          %v2918 = vld [vmem:[#allocation2 + $0x378] sm:$0xff]
          %v2919 = vld [vmem:[#allocation2 + $0x380] sm:$0xff]
          %v2920 = vld [vmem:[#allocation2 + $0x388] sm:$0xff]
          %v2921 = vld [vmem:[#allocation2 + $0x390] sm:$0xff]
          %v2922 = vld [vmem:[#allocation2 + $0x398] sm:$0xff]
          %v2923 = vld [vmem:[#allocation2 + $0x3a0] sm:$0xff]
          %v2924 = vld [vmem:[#allocation2 + $0x3a8] sm:$0xff]
          %v2925 = vld [vmem:[#allocation2 + $0x3b0] sm:$0xff]
          %v2926 = vld [vmem:[#allocation2 + $0x3b8] sm:$0xff]
          %v2927 = vld [vmem:[#allocation2 + $0x3c0] sm:$0xff]
          %v2928 = vld [vmem:[#allocation2 + $0x3c8] sm:$0xff]
          %v2929 = vld [vmem:[#allocation2 + $0x3d0] sm:$0xff]
          %v2930 = vld [vmem:[#allocation2 + $0x3d8] sm:$0xff]
          %v2931 = vld [vmem:[#allocation2 + $0x3e0] sm:$0xff]
          %v2932 = vld [vmem:[#allocation2 + $0x3e8] sm:$0xff]
          %v2933 = vld [vmem:[#allocation2 + $0x3f0] sm:$0xff]
          %v2934 = vld [vmem:[#allocation2 + $0x3f8] sm:$0xff]
          %v2935 = vld [vmem:[#allocation2 + $0x400] sm:$0xff]
          %v2936 = vld [vmem:[#allocation2 + $0x408] sm:$0xff]
          %v2937 = vld [vmem:[#allocation2 + $0x410] sm:$0xff]
          %v2938 = vld [vmem:[#allocation2 + $0x418] sm:$0xff]
          %v2939 = vld [vmem:[#allocation2 + $0x420] sm:$0xff]
          %v2940 = vld [vmem:[#allocation2 + $0x428] sm:$0xff]
          %v2941 = vld [vmem:[#allocation2 + $0x430] sm:$0xff]
          %v2942 = vld [vmem:[#allocation2 + $0x438] sm:$0xff]
          %v2943 = vld [vmem:[#allocation2 + $0x440] sm:$0xff]
          %v2944 = vld [vmem:[#allocation2 + $0x448] sm:$0xff]
          %v2945 = vld [vmem:[#allocation2 + $0x450] sm:$0xff]
          %v2946 = vld [vmem:[#allocation2 + $0x458] sm:$0xff]
          %v2947 = vld [vmem:[#allocation2 + $0x460] sm:$0xff]
          %v2948 = vld [vmem:[#allocation2 + $0x468] sm:$0xff]
          %v2949 = vld [vmem:[#allocation2 + $0x470] sm:$0xff]
          %v2950 = vld [vmem:[#allocation2 + $0x478] sm:$0xff]
          %v2951 = vld [vmem:[#allocation2 + $0x480] sm:$0xff]
          %v2952 = vld [vmem:[#allocation2 + $0x488] sm:$0xff]
          %v2953 = vld [vmem:[#allocation2 + $0x490] sm:$0xff]
          %v2954 = vld [vmem:[#allocation2 + $0x498] sm:$0xff]
          %v2955 = vld [vmem:[#allocation2 + $0x4a0] sm:$0xff]
          %v2956 = vld [vmem:[#allocation2 + $0x4a8] sm:$0xff]
          %v2957 = vld [vmem:[#allocation2 + $0x4b0] sm:$0xff]
          %v2958 = vld [vmem:[#allocation2 + $0x4b8] sm:$0xff]
          %v2959 = vld [vmem:[#allocation2 + $0x4c0] sm:$0xff]
          %v2960 = vld [vmem:[#allocation2 + $0x4c8] sm:$0xff]
          %v2961 = vld [vmem:[#allocation2 + $0x4d0] sm:$0xff]
          %v2962 = vld [vmem:[#allocation2 + $0x4d8] sm:$0xff]
          %v2963 = vld [vmem:[#allocation2 + $0x4e0] sm:$0xff]
          %v2964 = vld [vmem:[#allocation2 + $0x4e8] sm:$0xff]
          %v2965 = vld [vmem:[#allocation2 + $0x4f0] sm:$0xff]
          %v2966 = vld [vmem:[#allocation2 + $0x4f8] sm:$0xff]
          %v2967 = vld [vmem:[#allocation2 + $0x500] sm:$0xff]
          %v2968 = vld [vmem:[#allocation2 + $0x508] sm:$0xff]
          %v2969 = vld [vmem:[#allocation2 + $0x510] sm:$0xff]
          %v2970 = vld [vmem:[#allocation2 + $0x518] sm:$0xff]
          %v2971 = vld [vmem:[#allocation2 + $0x520] sm:$0xff]
          %v2972 = vld [vmem:[#allocation2 + $0x528] sm:$0xff]
          %v2973 = vld [vmem:[#allocation2 + $0x530] sm:$0xff]
          %v2974 = vld [vmem:[#allocation2 + $0x538] sm:$0xff]
          %v2975 = vld [vmem:[#allocation2 + $0x540] sm:$0xff]
          %v2976 = vld [vmem:[#allocation2 + $0x548] sm:$0xff]
          %v2977 = vld [vmem:[#allocation2 + $0x550] sm:$0xff]
          %v2978 = vld [vmem:[#allocation2 + $0x558] sm:$0xff]
          %v2979 = vld [vmem:[#allocation2 + $0x560] sm:$0xff]
          %v2980 = vld [vmem:[#allocation2 + $0x568] sm:$0xff]
          %v2981 = vld [vmem:[#allocation2 + $0x570] sm:$0xff]
          %v2982 = vld [vmem:[#allocation2 + $0x578] sm:$0xff]
          %v2983 = vld [vmem:[#allocation2 + $0x580] sm:$0xff]
          %v2984 = vld [vmem:[#allocation2 + $0x588] sm:$0xff]
          %v2985 = vld [vmem:[#allocation2 + $0x590] sm:$0xff]
          %v2986 = vld [vmem:[#allocation2 + $0x598] sm:$0xff]
          %v2987 = vld [vmem:[#allocation2 + $0x5a0] sm:$0xff]
          %v2988 = vld [vmem:[#allocation2 + $0x5a8] sm:$0xff]
          %v2989 = vld [vmem:[#allocation2 + $0x5b0] sm:$0xff]
          %v2990 = vld [vmem:[#allocation2 + $0x5b8] sm:$0xff]
          %v2991 = vld [vmem:[#allocation2 + $0x5c0] sm:$0xff]
          %v2992 = vld [vmem:[#allocation2 + $0x5c8] sm:$0xff]
          %v2993 = vld [vmem:[#allocation2 + $0x5d0] sm:$0xff]
          %v2994 = vld [vmem:[#allocation2 + $0x5d8] sm:$0xff]
          %v2995 = vld [vmem:[#allocation2 + $0x5e0] sm:$0xff]
          %v2996 = vld [vmem:[#allocation2 + $0x5e8] sm:$0xff]
          %v2997 = vld [vmem:[#allocation2 + $0x5f0] sm:$0xff]
          %v2998 = vld [vmem:[#allocation2 + $0x5f8] sm:$0xff]
          %v2999 = vld [vmem:[#allocation2 + $0x600] sm:$0xff]
          %v3000 = vld [vmem:[#allocation2 + $0x608] sm:$0xff]
          %v3001 = vld [vmem:[#allocation2 + $0x610] sm:$0xff]
          %v3002 = vld [vmem:[#allocation2 + $0x618] sm:$0xff]
          %v3003 = vld [vmem:[#allocation2 + $0x620] sm:$0xff]
          %v3004 = vld [vmem:[#allocation2 + $0x628] sm:$0xff]
          %v3005 = vld [vmem:[#allocation2 + $0x630] sm:$0xff]
          %v3006 = vld [vmem:[#allocation2 + $0x638] sm:$0xff]
          %v3007 = vld [vmem:[#allocation2 + $0x640] sm:$0xff]
          %v3008 = vld [vmem:[#allocation2 + $0x648] sm:$0xff]
          %v3009 = vld [vmem:[#allocation2 + $0x650] sm:$0xff]
          %v3010 = vld [vmem:[#allocation2 + $0x658] sm:$0xff]
          %v3011 = vld [vmem:[#allocation2 + $0x660] sm:$0xff]
          %v3012 = vld [vmem:[#allocation2 + $0x668] sm:$0xff]
          %v3013 = vld [vmem:[#allocation2 + $0x670] sm:$0xff]
          %v3014 = vld [vmem:[#allocation2 + $0x678] sm:$0xff]
          %v3015 = vld [vmem:[#allocation2 + $0x680] sm:$0xff]
          %v3016 = vld [vmem:[#allocation2 + $0x688] sm:$0xff]
          %v3017 = vld [vmem:[#allocation2 + $0x690] sm:$0xff]
          %v3018 = vld [vmem:[#allocation2 + $0x698] sm:$0xff]
          %v3019 = vld [vmem:[#allocation2 + $0x6a0] sm:$0xff]
          %v3020 = vld [vmem:[#allocation2 + $0x6a8] sm:$0xff]
          %v3021 = vld [vmem:[#allocation2 + $0x6b0] sm:$0xff]
          %v3022 = vld [vmem:[#allocation2 + $0x6b8] sm:$0xff]
          %v3023 = vld [vmem:[#allocation2 + $0x6c0] sm:$0xff]
          %v3024 = vld [vmem:[#allocation2 + $0x6c8] sm:$0xff]
          %v3025 = vld [vmem:[#allocation2 + $0x6d0] sm:$0xff]
          %v3026 = vld [vmem:[#allocation2 + $0x6d8] sm:$0xff]
          %v3027 = vld [vmem:[#allocation2 + $0x6e0] sm:$0xff]
          %v3028 = vld [vmem:[#allocation2 + $0x6e8] sm:$0xff]
          %v3029 = vld [vmem:[#allocation2 + $0x6f0] sm:$0xff]
          %v3030 = vld [vmem:[#allocation2 + $0x6f8] sm:$0xff]
          %v3031 = vld [vmem:[#allocation2 + $0x700] sm:$0xff]
          %v3032 = vld [vmem:[#allocation2 + $0x708] sm:$0xff]
          %v3033 = vld [vmem:[#allocation2 + $0x710] sm:$0xff]
          %v3034 = vld [vmem:[#allocation2 + $0x718] sm:$0xff]
          %v3035 = vld [vmem:[#allocation2 + $0x720] sm:$0xff]
          %v3036 = vld [vmem:[#allocation2 + $0x728] sm:$0xff]
          %v3037 = vld [vmem:[#allocation2 + $0x730] sm:$0xff]
          %v3038 = vld [vmem:[#allocation2 + $0x738] sm:$0xff]
          %v3039 = vld [vmem:[#allocation2 + $0x740] sm:$0xff]
          %v3040 = vld [vmem:[#allocation2 + $0x748] sm:$0xff]
          %v3041 = vld [vmem:[#allocation2 + $0x750] sm:$0xff]
          %v3042 = vld [vmem:[#allocation2 + $0x758] sm:$0xff]
          %v3043 = vld [vmem:[#allocation2 + $0x760] sm:$0xff]
          %v3044 = vld [vmem:[#allocation2 + $0x768] sm:$0xff]
          %v3045 = vld [vmem:[#allocation2 + $0x770] sm:$0xff]
          %v3046 = vld [vmem:[#allocation2 + $0x778] sm:$0xff]
          %v3047 = vld [vmem:[#allocation2 + $0x780] sm:$0xff]
          %v3048 = vld [vmem:[#allocation2 + $0x788] sm:$0xff]
          %v3049 = vld [vmem:[#allocation2 + $0x790] sm:$0xff]
          %v3050 = vld [vmem:[#allocation2 + $0x798] sm:$0xff]
          %v3051 = vld [vmem:[#allocation2 + $0x7a0] sm:$0xff]
          %v3052 = vld [vmem:[#allocation2 + $0x7a8] sm:$0xff]
          %v3053 = vld [vmem:[#allocation2 + $0x7b0] sm:$0xff]
          %v3054 = vld [vmem:[#allocation2 + $0x7b8] sm:$0xff]
          %v3055 = vld [vmem:[#allocation2 + $0x7c0] sm:$0xff]
          %v3056 = vld [vmem:[#allocation2 + $0x7c8] sm:$0xff]
          %v3057 = vld [vmem:[#allocation2 + $0x7d0] sm:$0xff]
          %v3058 = vld [vmem:[#allocation2 + $0x7d8] sm:$0xff]
          %v3059 = vld [vmem:[#allocation2 + $0x7e0] sm:$0xff]
          %v3060 = vld [vmem:[#allocation2 + $0x7e8] sm:$0xff]
          %v3061 = vld [vmem:[#allocation2 + $0x7f0] sm:$0xff]
          %v3062 = vld [vmem:[#allocation2 + $0x7f8] sm:$0xff]
          %v3063 = vld [vmem:[%s262] sm:$0xf]
          %v3065 = vlaneseq
          %v3066 = vshrl.u32 %v3065, 7
          %v3067 = vsub.s32 0, %v3066
          %v3068 = vrot.slane %v3063, %v3067
          %v3069 = vlaneseq
          %v3070 = vshrl.u32 %v3069, 7
          %v3071 = vsub.s32 1, %v3070
          %v3072 = vrot.slane %v3063, %v3071
          %v3073 = vlaneseq
          %v3074 = vshrl.u32 %v3073, 7
          %v3075 = vsub.s32 2, %v3074
          %v3076 = vrot.slane %v3063, %v3075
          %v3077 = vlaneseq
          %v3078 = vshrl.u32 %v3077, 7
          %v3079 = vsub.s32 3, %v3078
          %v3080 = vrot.slane %v3063, %v3079
          %v3085 = vadd.f32 %v2807, %v3068
          %v3086 = vadd.f32 %v2808, %v3072
          %v3087 = vadd.f32 %v2809, %v3076
          %v3088 = vadd.f32 %v2810, %v3080
          %v3089 = vadd.f32 %v2811, %v3068
          %v3090 = vadd.f32 %v2812, %v3072
          %v3091 = vadd.f32 %v2813, %v3076
          %v3092 = vadd.f32 %v2814, %v3080
          %v3093 = vadd.f32 %v2815, %v3068
          %v3094 = vadd.f32 %v2816, %v3072
          %v3095 = vadd.f32 %v2817, %v3076
          %v3096 = vadd.f32 %v2818, %v3080
          %v3097 = vadd.f32 %v2819, %v3068
          %v3098 = vadd.f32 %v2820, %v3072
          %v3099 = vadd.f32 %v2821, %v3076
          %v3100 = vadd.f32 %v2822, %v3080
          %v3101 = vadd.f32 %v2823, %v3068
          %v3102 = vadd.f32 %v2824, %v3072
          %v3103 = vadd.f32 %v2825, %v3076
          %v3104 = vadd.f32 %v2826, %v3080
          %v3105 = vadd.f32 %v2827, %v3068
          %v3106 = vadd.f32 %v2828, %v3072
          %v3107 = vadd.f32 %v2829, %v3076
          %v3108 = vadd.f32 %v2830, %v3080
          %v3109 = vadd.f32 %v2831, %v3068
          %v3110 = vadd.f32 %v2832, %v3072
          %v3111 = vadd.f32 %v2833, %v3076
          %v3112 = vadd.f32 %v2834, %v3080
          %v3113 = vadd.f32 %v2835, %v3068
          %v3114 = vadd.f32 %v2836, %v3072
          %v3115 = vadd.f32 %v2837, %v3076
          %v3116 = vadd.f32 %v2838, %v3080
          %v3117 = vadd.f32 %v2839, %v3068
          %v3118 = vadd.f32 %v2840, %v3072
          %v3119 = vadd.f32 %v2841, %v3076
          %v3120 = vadd.f32 %v2842, %v3080
          %v3121 = vadd.f32 %v2843, %v3068
          %v3122 = vadd.f32 %v2844, %v3072
          %v3123 = vadd.f32 %v2845, %v3076
          %v3124 = vadd.f32 %v2846, %v3080
          %v3125 = vadd.f32 %v2847, %v3068
          %v3126 = vadd.f32 %v2848, %v3072
          %v3127 = vadd.f32 %v2849, %v3076
          %v3128 = vadd.f32 %v2850, %v3080
          %v3129 = vadd.f32 %v2851, %v3068
          %v3130 = vadd.f32 %v2852, %v3072
          %v3131 = vadd.f32 %v2853, %v3076
          %v3132 = vadd.f32 %v2854, %v3080
          %v3133 = vadd.f32 %v2855, %v3068
          %v3134 = vadd.f32 %v2856, %v3072
          %v3135 = vadd.f32 %v2857, %v3076
          %v3136 = vadd.f32 %v2858, %v3080
          %v3137 = vadd.f32 %v2859, %v3068
          %v3138 = vadd.f32 %v2860, %v3072
          %v3139 = vadd.f32 %v2861, %v3076
          %v3140 = vadd.f32 %v2862, %v3080
          %v3141 = vadd.f32 %v2863, %v3068
          %v3142 = vadd.f32 %v2864, %v3072
          %v3143 = vadd.f32 %v2865, %v3076
          %v3144 = vadd.f32 %v2866, %v3080
          %v3145 = vadd.f32 %v2867, %v3068
          %v3146 = vadd.f32 %v2868, %v3072
          %v3147 = vadd.f32 %v2869, %v3076
          %v3148 = vadd.f32 %v2870, %v3080
          %v3149 = vadd.f32 %v2871, %v3068
          %v3150 = vadd.f32 %v2872, %v3072
          %v3151 = vadd.f32 %v2873, %v3076
          %v3152 = vadd.f32 %v2874, %v3080
          %v3153 = vadd.f32 %v2875, %v3068
          %v3154 = vadd.f32 %v2876, %v3072
          %v3155 = vadd.f32 %v2877, %v3076
          %v3156 = vadd.f32 %v2878, %v3080
          %v3157 = vadd.f32 %v2879, %v3068
          %v3158 = vadd.f32 %v2880, %v3072
          %v3159 = vadd.f32 %v2881, %v3076
          %v3160 = vadd.f32 %v2882, %v3080
          %v3161 = vadd.f32 %v2883, %v3068
          %v3162 = vadd.f32 %v2884, %v3072
          %v3163 = vadd.f32 %v2885, %v3076
          %v3164 = vadd.f32 %v2886, %v3080
          %v3165 = vadd.f32 %v2887, %v3068
          %v3166 = vadd.f32 %v2888, %v3072
          %v3167 = vadd.f32 %v2889, %v3076
          %v3168 = vadd.f32 %v2890, %v3080
          %v3169 = vadd.f32 %v2891, %v3068
          %v3170 = vadd.f32 %v2892, %v3072
          %v3171 = vadd.f32 %v2893, %v3076
          %v3172 = vadd.f32 %v2894, %v3080
          %v3173 = vadd.f32 %v2895, %v3068
          %v3174 = vadd.f32 %v2896, %v3072
          %v3175 = vadd.f32 %v2897, %v3076
          %v3176 = vadd.f32 %v2898, %v3080
          %v3177 = vadd.f32 %v2899, %v3068
          %v3178 = vadd.f32 %v2900, %v3072
          %v3179 = vadd.f32 %v2901, %v3076
          %v3180 = vadd.f32 %v2902, %v3080
          %v3181 = vadd.f32 %v2903, %v3068
          %v3182 = vadd.f32 %v2904, %v3072
          %v3183 = vadd.f32 %v2905, %v3076
          %v3184 = vadd.f32 %v2906, %v3080
          %v3185 = vadd.f32 %v2907, %v3068
          %v3186 = vadd.f32 %v2908, %v3072
          %v3187 = vadd.f32 %v2909, %v3076
          %v3188 = vadd.f32 %v2910, %v3080
          %v3189 = vadd.f32 %v2911, %v3068
          %v3190 = vadd.f32 %v2912, %v3072
          %v3191 = vadd.f32 %v2913, %v3076
          %v3192 = vadd.f32 %v2914, %v3080
          %v3193 = vadd.f32 %v2915, %v3068
          %v3194 = vadd.f32 %v2916, %v3072
          %v3195 = vadd.f32 %v2917, %v3076
          %v3196 = vadd.f32 %v2918, %v3080
          %v3197 = vadd.f32 %v2919, %v3068
          %v3198 = vadd.f32 %v2920, %v3072
          %v3199 = vadd.f32 %v2921, %v3076
          %v3200 = vadd.f32 %v2922, %v3080
          %v3201 = vadd.f32 %v2923, %v3068
          %v3202 = vadd.f32 %v2924, %v3072
          %v3203 = vadd.f32 %v2925, %v3076
          %v3204 = vadd.f32 %v2926, %v3080
          %v3205 = vadd.f32 %v2927, %v3068
          %v3206 = vadd.f32 %v2928, %v3072
          %v3207 = vadd.f32 %v2929, %v3076
          %v3208 = vadd.f32 %v2930, %v3080
          %v3209 = vadd.f32 %v2931, %v3068
          %v3210 = vadd.f32 %v2932, %v3072
          %v3211 = vadd.f32 %v2933, %v3076
          %v3212 = vadd.f32 %v2934, %v3080
          %v3213 = vadd.f32 %v2935, %v3068
          %v3214 = vadd.f32 %v2936, %v3072
          %v3215 = vadd.f32 %v2937, %v3076
          %v3216 = vadd.f32 %v2938, %v3080
          %v3217 = vadd.f32 %v2939, %v3068
          %v3218 = vadd.f32 %v2940, %v3072
          %v3219 = vadd.f32 %v2941, %v3076
          %v3220 = vadd.f32 %v2942, %v3080
          %v3221 = vadd.f32 %v2943, %v3068
          %v3222 = vadd.f32 %v2944, %v3072
          %v3223 = vadd.f32 %v2945, %v3076
          %v3224 = vadd.f32 %v2946, %v3080
          %v3225 = vadd.f32 %v2947, %v3068
          %v3226 = vadd.f32 %v2948, %v3072
          %v3227 = vadd.f32 %v2949, %v3076
          %v3228 = vadd.f32 %v2950, %v3080
          %v3229 = vadd.f32 %v2951, %v3068
          %v3230 = vadd.f32 %v2952, %v3072
          %v3231 = vadd.f32 %v2953, %v3076
          %v3232 = vadd.f32 %v2954, %v3080
          %v3233 = vadd.f32 %v2955, %v3068
          %v3234 = vadd.f32 %v2956, %v3072
          %v3235 = vadd.f32 %v2957, %v3076
          %v3236 = vadd.f32 %v2958, %v3080
          %v3237 = vadd.f32 %v2959, %v3068
          %v3238 = vadd.f32 %v2960, %v3072
          %v3239 = vadd.f32 %v2961, %v3076
          %v3240 = vadd.f32 %v2962, %v3080
          %v3241 = vadd.f32 %v2963, %v3068
          %v3242 = vadd.f32 %v2964, %v3072
          %v3243 = vadd.f32 %v2965, %v3076
          %v3244 = vadd.f32 %v2966, %v3080
          %v3245 = vadd.f32 %v2967, %v3068
          %v3246 = vadd.f32 %v2968, %v3072
          %v3247 = vadd.f32 %v2969, %v3076
          %v3248 = vadd.f32 %v2970, %v3080
          %v3249 = vadd.f32 %v2971, %v3068
          %v3250 = vadd.f32 %v2972, %v3072
          %v3251 = vadd.f32 %v2973, %v3076
          %v3252 = vadd.f32 %v2974, %v3080
          %v3253 = vadd.f32 %v2975, %v3068
          %v3254 = vadd.f32 %v2976, %v3072
          %v3255 = vadd.f32 %v2977, %v3076
          %v3256 = vadd.f32 %v2978, %v3080
          %v3257 = vadd.f32 %v2979, %v3068
          %v3258 = vadd.f32 %v2980, %v3072
          %v3259 = vadd.f32 %v2981, %v3076
          %v3260 = vadd.f32 %v2982, %v3080
          %v3261 = vadd.f32 %v2983, %v3068
          %v3262 = vadd.f32 %v2984, %v3072
          %v3263 = vadd.f32 %v2985, %v3076
          %v3264 = vadd.f32 %v2986, %v3080
          %v3265 = vadd.f32 %v2987, %v3068
          %v3266 = vadd.f32 %v2988, %v3072
          %v3267 = vadd.f32 %v2989, %v3076
          %v3268 = vadd.f32 %v2990, %v3080
          %v3269 = vadd.f32 %v2991, %v3068
          %v3270 = vadd.f32 %v2992, %v3072
          %v3271 = vadd.f32 %v2993, %v3076
          %v3272 = vadd.f32 %v2994, %v3080
          %v3273 = vadd.f32 %v2995, %v3068
          %v3274 = vadd.f32 %v2996, %v3072
          %v3275 = vadd.f32 %v2997, %v3076
          %v3276 = vadd.f32 %v2998, %v3080
          %v3277 = vadd.f32 %v2999, %v3068
          %v3278 = vadd.f32 %v3000, %v3072
          %v3279 = vadd.f32 %v3001, %v3076
          %v3280 = vadd.f32 %v3002, %v3080
          %v3281 = vadd.f32 %v3003, %v3068
          %v3282 = vadd.f32 %v3004, %v3072
          %v3283 = vadd.f32 %v3005, %v3076
          %v3284 = vadd.f32 %v3006, %v3080
          %v3285 = vadd.f32 %v3007, %v3068
          %v3286 = vadd.f32 %v3008, %v3072
          %v3287 = vadd.f32 %v3009, %v3076
          %v3288 = vadd.f32 %v3010, %v3080
          %v3289 = vadd.f32 %v3011, %v3068
          %v3290 = vadd.f32 %v3012, %v3072
          %v3291 = vadd.f32 %v3013, %v3076
          %v3292 = vadd.f32 %v3014, %v3080
          %v3293 = vadd.f32 %v3015, %v3068
          %v3294 = vadd.f32 %v3016, %v3072
          %v3295 = vadd.f32 %v3017, %v3076
          %v3296 = vadd.f32 %v3018, %v3080
          %v3297 = vadd.f32 %v3019, %v3068
          %v3298 = vadd.f32 %v3020, %v3072
          %v3299 = vadd.f32 %v3021, %v3076
          %v3300 = vadd.f32 %v3022, %v3080
          %v3301 = vadd.f32 %v3023, %v3068
          %v3302 = vadd.f32 %v3024, %v3072
          %v3303 = vadd.f32 %v3025, %v3076
          %v3304 = vadd.f32 %v3026, %v3080
          %v3305 = vadd.f32 %v3027, %v3068
          %v3306 = vadd.f32 %v3028, %v3072
          %v3307 = vadd.f32 %v3029, %v3076
          %v3308 = vadd.f32 %v3030, %v3080
          %v3309 = vadd.f32 %v3031, %v3068
          %v3310 = vadd.f32 %v3032, %v3072
          %v3311 = vadd.f32 %v3033, %v3076
          %v3312 = vadd.f32 %v3034, %v3080
          %v3313 = vadd.f32 %v3035, %v3068
          %v3314 = vadd.f32 %v3036, %v3072
          %v3315 = vadd.f32 %v3037, %v3076
          %v3316 = vadd.f32 %v3038, %v3080
          %v3317 = vadd.f32 %v3039, %v3068
          %v3318 = vadd.f32 %v3040, %v3072
          %v3319 = vadd.f32 %v3041, %v3076
          %v3320 = vadd.f32 %v3042, %v3080
          %v3321 = vadd.f32 %v3043, %v3068
          %v3322 = vadd.f32 %v3044, %v3072
          %v3323 = vadd.f32 %v3045, %v3076
          %v3324 = vadd.f32 %v3046, %v3080
          %v3325 = vadd.f32 %v3047, %v3068
          %v3326 = vadd.f32 %v3048, %v3072
          %v3327 = vadd.f32 %v3049, %v3076
          %v3328 = vadd.f32 %v3050, %v3080
          %v3329 = vadd.f32 %v3051, %v3068
          %v3330 = vadd.f32 %v3052, %v3072
          %v3331 = vadd.f32 %v3053, %v3076
          %v3332 = vadd.f32 %v3054, %v3080
          %v3333 = vadd.f32 %v3055, %v3068
          %v3334 = vadd.f32 %v3056, %v3072
          %v3335 = vadd.f32 %v3057, %v3076
          %v3336 = vadd.f32 %v3058, %v3080
          %v3337 = vadd.f32 %v3059, %v3068
          %v3338 = vadd.f32 %v3060, %v3072
          %v3339 = vadd.f32 %v3061, %v3076
          %v3340 = vadd.f32 %v3062, %v3080
          %v3341 = vpack.c.bf16 %v3089, %v3085
          %v3342 = vpack.c.bf16 %v3090, %v3086
          %v3343 = vpack.c.bf16 %v3091, %v3087
          %v3344 = vpack.c.bf16 %v3092, %v3088
          %v3345 = vpack.c.bf16 %v3097, %v3093
          %v3346 = vpack.c.bf16 %v3098, %v3094
          %v3347 = vpack.c.bf16 %v3099, %v3095
          %v3348 = vpack.c.bf16 %v3100, %v3096
          %v3349 = vpack.c.bf16 %v3105, %v3101
          %v3350 = vpack.c.bf16 %v3106, %v3102
          %v3351 = vpack.c.bf16 %v3107, %v3103
          %v3352 = vpack.c.bf16 %v3108, %v3104
          %v3353 = vpack.c.bf16 %v3113, %v3109
          %v3354 = vpack.c.bf16 %v3114, %v3110
          %v3355 = vpack.c.bf16 %v3115, %v3111
          %v3356 = vpack.c.bf16 %v3116, %v3112
          %v3357 = vpack.c.bf16 %v3121, %v3117
          %v3358 = vpack.c.bf16 %v3122, %v3118
          %v3359 = vpack.c.bf16 %v3123, %v3119
          %v3360 = vpack.c.bf16 %v3124, %v3120
          %v3361 = vpack.c.bf16 %v3129, %v3125
          %v3362 = vpack.c.bf16 %v3130, %v3126
          %v3363 = vpack.c.bf16 %v3131, %v3127
          %v3364 = vpack.c.bf16 %v3132, %v3128
          %v3365 = vpack.c.bf16 %v3137, %v3133
          %v3366 = vpack.c.bf16 %v3138, %v3134
          %v3367 = vpack.c.bf16 %v3139, %v3135
          %v3368 = vpack.c.bf16 %v3140, %v3136
          %v3369 = vpack.c.bf16 %v3145, %v3141
          %v3370 = vpack.c.bf16 %v3146, %v3142
          %v3371 = vpack.c.bf16 %v3147, %v3143
          %v3372 = vpack.c.bf16 %v3148, %v3144
          %v3373 = vpack.c.bf16 %v3153, %v3149
          %v3374 = vpack.c.bf16 %v3154, %v3150
          %v3375 = vpack.c.bf16 %v3155, %v3151
          %v3376 = vpack.c.bf16 %v3156, %v3152
          %v3377 = vpack.c.bf16 %v3161, %v3157
          %v3378 = vpack.c.bf16 %v3162, %v3158
          %v3379 = vpack.c.bf16 %v3163, %v3159
          %v3380 = vpack.c.bf16 %v3164, %v3160
          %v3381 = vpack.c.bf16 %v3169, %v3165
          %v3382 = vpack.c.bf16 %v3170, %v3166
          %v3383 = vpack.c.bf16 %v3171, %v3167
          %v3384 = vpack.c.bf16 %v3172, %v3168
          %v3385 = vpack.c.bf16 %v3177, %v3173
          %v3386 = vpack.c.bf16 %v3178, %v3174
          %v3387 = vpack.c.bf16 %v3179, %v3175
          %v3388 = vpack.c.bf16 %v3180, %v3176
          %v3389 = vpack.c.bf16 %v3185, %v3181
          %v3390 = vpack.c.bf16 %v3186, %v3182
          %v3391 = vpack.c.bf16 %v3187, %v3183
          %v3392 = vpack.c.bf16 %v3188, %v3184
          %v3393 = vpack.c.bf16 %v3193, %v3189
          %v3394 = vpack.c.bf16 %v3194, %v3190
          %v3395 = vpack.c.bf16 %v3195, %v3191
          %v3396 = vpack.c.bf16 %v3196, %v3192
          %v3397 = vpack.c.bf16 %v3201, %v3197
          %v3398 = vpack.c.bf16 %v3202, %v3198
          %v3399 = vpack.c.bf16 %v3203, %v3199
          %v3400 = vpack.c.bf16 %v3204, %v3200
          %v3401 = vpack.c.bf16 %v3209, %v3205
          %v3402 = vpack.c.bf16 %v3210, %v3206
          %v3403 = vpack.c.bf16 %v3211, %v3207
          %v3404 = vpack.c.bf16 %v3212, %v3208
          %v3405 = vpack.c.bf16 %v3217, %v3213
          %v3406 = vpack.c.bf16 %v3218, %v3214
          %v3407 = vpack.c.bf16 %v3219, %v3215
          %v3408 = vpack.c.bf16 %v3220, %v3216
          %v3409 = vpack.c.bf16 %v3225, %v3221
          %v3410 = vpack.c.bf16 %v3226, %v3222
          %v3411 = vpack.c.bf16 %v3227, %v3223
          %v3412 = vpack.c.bf16 %v3228, %v3224
          %v3413 = vpack.c.bf16 %v3233, %v3229
          %v3414 = vpack.c.bf16 %v3234, %v3230
          %v3415 = vpack.c.bf16 %v3235, %v3231
          %v3416 = vpack.c.bf16 %v3236, %v3232
          %v3417 = vpack.c.bf16 %v3241, %v3237
          %v3418 = vpack.c.bf16 %v3242, %v3238
          %v3419 = vpack.c.bf16 %v3243, %v3239
          %v3420 = vpack.c.bf16 %v3244, %v3240
          %v3421 = vpack.c.bf16 %v3249, %v3245
          %v3422 = vpack.c.bf16 %v3250, %v3246
          %v3423 = vpack.c.bf16 %v3251, %v3247
          %v3424 = vpack.c.bf16 %v3252, %v3248
          %v3425 = vpack.c.bf16 %v3257, %v3253
          %v3426 = vpack.c.bf16 %v3258, %v3254
          %v3427 = vpack.c.bf16 %v3259, %v3255
          %v3428 = vpack.c.bf16 %v3260, %v3256
          %v3429 = vpack.c.bf16 %v3265, %v3261
          %v3430 = vpack.c.bf16 %v3266, %v3262
          %v3431 = vpack.c.bf16 %v3267, %v3263
          %v3432 = vpack.c.bf16 %v3268, %v3264
          %v3433 = vpack.c.bf16 %v3273, %v3269
          %v3434 = vpack.c.bf16 %v3274, %v3270
          %v3435 = vpack.c.bf16 %v3275, %v3271
          %v3436 = vpack.c.bf16 %v3276, %v3272
          %v3437 = vpack.c.bf16 %v3281, %v3277
          %v3438 = vpack.c.bf16 %v3282, %v3278
          %v3439 = vpack.c.bf16 %v3283, %v3279
          %v3440 = vpack.c.bf16 %v3284, %v3280
          %v3441 = vpack.c.bf16 %v3289, %v3285
          %v3442 = vpack.c.bf16 %v3290, %v3286
          %v3443 = vpack.c.bf16 %v3291, %v3287
          %v3444 = vpack.c.bf16 %v3292, %v3288
          %v3445 = vpack.c.bf16 %v3297, %v3293
          %v3446 = vpack.c.bf16 %v3298, %v3294
          %v3447 = vpack.c.bf16 %v3299, %v3295
          %v3448 = vpack.c.bf16 %v3300, %v3296
          %v3449 = vpack.c.bf16 %v3305, %v3301
          %v3450 = vpack.c.bf16 %v3306, %v3302
          %v3451 = vpack.c.bf16 %v3307, %v3303
          %v3452 = vpack.c.bf16 %v3308, %v3304
          %v3453 = vpack.c.bf16 %v3313, %v3309
          %v3454 = vpack.c.bf16 %v3314, %v3310
          %v3455 = vpack.c.bf16 %v3315, %v3311
          %v3456 = vpack.c.bf16 %v3316, %v3312
          %v3457 = vpack.c.bf16 %v3321, %v3317
          %v3458 = vpack.c.bf16 %v3322, %v3318
          %v3459 = vpack.c.bf16 %v3323, %v3319
          %v3460 = vpack.c.bf16 %v3324, %v3320
          %v3461 = vpack.c.bf16 %v3329, %v3325
          %v3462 = vpack.c.bf16 %v3330, %v3326
          %v3463 = vpack.c.bf16 %v3331, %v3327
          %v3464 = vpack.c.bf16 %v3332, %v3328
          %v3465 = vpack.c.bf16 %v3337, %v3333
          %v3466 = vpack.c.bf16 %v3338, %v3334
          %v3467 = vpack.c.bf16 %v3339, %v3335
          %v3468 = vpack.c.bf16 %v3340, %v3336
          %v3597 = vunpack.c.l.b16 %v3341
          %v3598 = vunpack.c.l.b16 %v3342
          %v3599 = vunpack.c.l.b16 %v3343
          %v3600 = vunpack.c.l.b16 %v3344
          %v3601 = vunpack.c.h.b16 %v3341
          %v3602 = vunpack.c.h.b16 %v3342
          %v3603 = vunpack.c.h.b16 %v3343
          %v3604 = vunpack.c.h.b16 %v3344
          %v3605 = vunpack.c.l.b16 %v3345
          %v3606 = vunpack.c.l.b16 %v3346
          %v3607 = vunpack.c.l.b16 %v3347
          %v3608 = vunpack.c.l.b16 %v3348
          %v3609 = vunpack.c.h.b16 %v3345
          %v3610 = vunpack.c.h.b16 %v3346
          %v3611 = vunpack.c.h.b16 %v3347
          %v3612 = vunpack.c.h.b16 %v3348
          %v3613 = vunpack.c.l.b16 %v3349
          %v3614 = vunpack.c.l.b16 %v3350
          %v3615 = vunpack.c.l.b16 %v3351
          %v3616 = vunpack.c.l.b16 %v3352
          %v3617 = vunpack.c.h.b16 %v3349
          %v3618 = vunpack.c.h.b16 %v3350
          %v3619 = vunpack.c.h.b16 %v3351
          %v3620 = vunpack.c.h.b16 %v3352
          %v3621 = vunpack.c.l.b16 %v3353
          %v3622 = vunpack.c.l.b16 %v3354
          %v3623 = vunpack.c.l.b16 %v3355
          %v3624 = vunpack.c.l.b16 %v3356
          %v3625 = vunpack.c.h.b16 %v3353
          %v3626 = vunpack.c.h.b16 %v3354
          %v3627 = vunpack.c.h.b16 %v3355
          %v3628 = vunpack.c.h.b16 %v3356
          %v3629 = vunpack.c.l.b16 %v3357
          %v3630 = vunpack.c.l.b16 %v3358
          %v3631 = vunpack.c.l.b16 %v3359
          %v3632 = vunpack.c.l.b16 %v3360
          %v3633 = vunpack.c.h.b16 %v3357
          %v3634 = vunpack.c.h.b16 %v3358
          %v3635 = vunpack.c.h.b16 %v3359
          %v3636 = vunpack.c.h.b16 %v3360
          %v3637 = vunpack.c.l.b16 %v3361
          %v3638 = vunpack.c.l.b16 %v3362
          %v3639 = vunpack.c.l.b16 %v3363
          %v3640 = vunpack.c.l.b16 %v3364
          %v3641 = vunpack.c.h.b16 %v3361
          %v3642 = vunpack.c.h.b16 %v3362
          %v3643 = vunpack.c.h.b16 %v3363
          %v3644 = vunpack.c.h.b16 %v3364
          %v3645 = vunpack.c.l.b16 %v3365
          %v3646 = vunpack.c.l.b16 %v3366
          %v3647 = vunpack.c.l.b16 %v3367
          %v3648 = vunpack.c.l.b16 %v3368
          %v3649 = vunpack.c.h.b16 %v3365
          %v3650 = vunpack.c.h.b16 %v3366
          %v3651 = vunpack.c.h.b16 %v3367
          %v3652 = vunpack.c.h.b16 %v3368
          %v3653 = vunpack.c.l.b16 %v3369
          %v3654 = vunpack.c.l.b16 %v3370
          %v3655 = vunpack.c.l.b16 %v3371
          %v3656 = vunpack.c.l.b16 %v3372
          %v3657 = vunpack.c.h.b16 %v3369
          %v3658 = vunpack.c.h.b16 %v3370
          %v3659 = vunpack.c.h.b16 %v3371
          %v3660 = vunpack.c.h.b16 %v3372
          %v3661 = vunpack.c.l.b16 %v3373
          %v3662 = vunpack.c.l.b16 %v3374
          %v3663 = vunpack.c.l.b16 %v3375
          %v3664 = vunpack.c.l.b16 %v3376
          %v3665 = vunpack.c.h.b16 %v3373
          %v3666 = vunpack.c.h.b16 %v3374
          %v3667 = vunpack.c.h.b16 %v3375
          %v3668 = vunpack.c.h.b16 %v3376
          %v3669 = vunpack.c.l.b16 %v3377
          %v3670 = vunpack.c.l.b16 %v3378
          %v3671 = vunpack.c.l.b16 %v3379
          %v3672 = vunpack.c.l.b16 %v3380
          %v3673 = vunpack.c.h.b16 %v3377
          %v3674 = vunpack.c.h.b16 %v3378
          %v3675 = vunpack.c.h.b16 %v3379
          %v3676 = vunpack.c.h.b16 %v3380
          %v3677 = vunpack.c.l.b16 %v3381
          %v3678 = vunpack.c.l.b16 %v3382
          %v3679 = vunpack.c.l.b16 %v3383
          %v3680 = vunpack.c.l.b16 %v3384
          %v3681 = vunpack.c.h.b16 %v3381
          %v3682 = vunpack.c.h.b16 %v3382
          %v3683 = vunpack.c.h.b16 %v3383
          %v3684 = vunpack.c.h.b16 %v3384
          %v3685 = vunpack.c.l.b16 %v3385
          %v3686 = vunpack.c.l.b16 %v3386
          %v3687 = vunpack.c.l.b16 %v3387
          %v3688 = vunpack.c.l.b16 %v3388
          %v3689 = vunpack.c.h.b16 %v3385
          %v3690 = vunpack.c.h.b16 %v3386
          %v3691 = vunpack.c.h.b16 %v3387
          %v3692 = vunpack.c.h.b16 %v3388
          %v3693 = vunpack.c.l.b16 %v3389
          %v3694 = vunpack.c.l.b16 %v3390
          %v3695 = vunpack.c.l.b16 %v3391
          %v3696 = vunpack.c.l.b16 %v3392
          %v3697 = vunpack.c.h.b16 %v3389
          %v3698 = vunpack.c.h.b16 %v3390
          %v3699 = vunpack.c.h.b16 %v3391
          %v3700 = vunpack.c.h.b16 %v3392
          %v3701 = vunpack.c.l.b16 %v3393
          %v3702 = vunpack.c.l.b16 %v3394
          %v3703 = vunpack.c.l.b16 %v3395
          %v3704 = vunpack.c.l.b16 %v3396
          %v3705 = vunpack.c.h.b16 %v3393
          %v3706 = vunpack.c.h.b16 %v3394
          %v3707 = vunpack.c.h.b16 %v3395
          %v3708 = vunpack.c.h.b16 %v3396
          %v3709 = vunpack.c.l.b16 %v3397
          %v3710 = vunpack.c.l.b16 %v3398
          %v3711 = vunpack.c.l.b16 %v3399
          %v3712 = vunpack.c.l.b16 %v3400
          %v3713 = vunpack.c.h.b16 %v3397
          %v3714 = vunpack.c.h.b16 %v3398
          %v3715 = vunpack.c.h.b16 %v3399
          %v3716 = vunpack.c.h.b16 %v3400
          %v3717 = vunpack.c.l.b16 %v3401
          %v3718 = vunpack.c.l.b16 %v3402
          %v3719 = vunpack.c.l.b16 %v3403
          %v3720 = vunpack.c.l.b16 %v3404
          %v3721 = vunpack.c.h.b16 %v3401
          %v3722 = vunpack.c.h.b16 %v3402
          %v3723 = vunpack.c.h.b16 %v3403
          %v3724 = vunpack.c.h.b16 %v3404
          %v3725 = vunpack.c.l.b16 %v3405
          %v3726 = vunpack.c.l.b16 %v3406
          %v3727 = vunpack.c.l.b16 %v3407
          %v3728 = vunpack.c.l.b16 %v3408
          %v3729 = vunpack.c.h.b16 %v3405
          %v3730 = vunpack.c.h.b16 %v3406
          %v3731 = vunpack.c.h.b16 %v3407
          %v3732 = vunpack.c.h.b16 %v3408
          %v3733 = vunpack.c.l.b16 %v3409
          %v3734 = vunpack.c.l.b16 %v3410
          %v3735 = vunpack.c.l.b16 %v3411
          %v3736 = vunpack.c.l.b16 %v3412
          %v3737 = vunpack.c.h.b16 %v3409
          %v3738 = vunpack.c.h.b16 %v3410
          %v3739 = vunpack.c.h.b16 %v3411
          %v3740 = vunpack.c.h.b16 %v3412
          %v3741 = vunpack.c.l.b16 %v3413
          %v3742 = vunpack.c.l.b16 %v3414
          %v3743 = vunpack.c.l.b16 %v3415
          %v3744 = vunpack.c.l.b16 %v3416
          %v3745 = vunpack.c.h.b16 %v3413
          %v3746 = vunpack.c.h.b16 %v3414
          %v3747 = vunpack.c.h.b16 %v3415
          %v3748 = vunpack.c.h.b16 %v3416
          %v3749 = vunpack.c.l.b16 %v3417
          %v3750 = vunpack.c.l.b16 %v3418
          %v3751 = vunpack.c.l.b16 %v3419
          %v3752 = vunpack.c.l.b16 %v3420
          %v3753 = vunpack.c.h.b16 %v3417
          %v3754 = vunpack.c.h.b16 %v3418
          %v3755 = vunpack.c.h.b16 %v3419
          %v3756 = vunpack.c.h.b16 %v3420
          %v3757 = vunpack.c.l.b16 %v3421
          %v3758 = vunpack.c.l.b16 %v3422
          %v3759 = vunpack.c.l.b16 %v3423
          %v3760 = vunpack.c.l.b16 %v3424
          %v3761 = vunpack.c.h.b16 %v3421
          %v3762 = vunpack.c.h.b16 %v3422
          %v3763 = vunpack.c.h.b16 %v3423
          %v3764 = vunpack.c.h.b16 %v3424
          %v3765 = vunpack.c.l.b16 %v3425
          %v3766 = vunpack.c.l.b16 %v3426
          %v3767 = vunpack.c.l.b16 %v3427
          %v3768 = vunpack.c.l.b16 %v3428
          %v3769 = vunpack.c.h.b16 %v3425
          %v3770 = vunpack.c.h.b16 %v3426
          %v3771 = vunpack.c.h.b16 %v3427
          %v3772 = vunpack.c.h.b16 %v3428
          %v3773 = vunpack.c.l.b16 %v3429
          %v3774 = vunpack.c.l.b16 %v3430
          %v3775 = vunpack.c.l.b16 %v3431
          %v3776 = vunpack.c.l.b16 %v3432
          %v3777 = vunpack.c.h.b16 %v3429
          %v3778 = vunpack.c.h.b16 %v3430
          %v3779 = vunpack.c.h.b16 %v3431
          %v3780 = vunpack.c.h.b16 %v3432
          %v3781 = vunpack.c.l.b16 %v3433
          %v3782 = vunpack.c.l.b16 %v3434
          %v3783 = vunpack.c.l.b16 %v3435
          %v3784 = vunpack.c.l.b16 %v3436
          %v3785 = vunpack.c.h.b16 %v3433
          %v3786 = vunpack.c.h.b16 %v3434
          %v3787 = vunpack.c.h.b16 %v3435
          %v3788 = vunpack.c.h.b16 %v3436
          %v3789 = vunpack.c.l.b16 %v3437
          %v3790 = vunpack.c.l.b16 %v3438
          %v3791 = vunpack.c.l.b16 %v3439
          %v3792 = vunpack.c.l.b16 %v3440
          %v3793 = vunpack.c.h.b16 %v3437
          %v3794 = vunpack.c.h.b16 %v3438
          %v3795 = vunpack.c.h.b16 %v3439
          %v3796 = vunpack.c.h.b16 %v3440
          %v3797 = vunpack.c.l.b16 %v3441
          %v3798 = vunpack.c.l.b16 %v3442
          %v3799 = vunpack.c.l.b16 %v3443
          %v3800 = vunpack.c.l.b16 %v3444
          %v3801 = vunpack.c.h.b16 %v3441
          %v3802 = vunpack.c.h.b16 %v3442
          %v3803 = vunpack.c.h.b16 %v3443
          %v3804 = vunpack.c.h.b16 %v3444
          %v3805 = vunpack.c.l.b16 %v3445
          %v3806 = vunpack.c.l.b16 %v3446
          %v3807 = vunpack.c.l.b16 %v3447
          %v3808 = vunpack.c.l.b16 %v3448
          %v3809 = vunpack.c.h.b16 %v3445
          %v3810 = vunpack.c.h.b16 %v3446
          %v3811 = vunpack.c.h.b16 %v3447
          %v3812 = vunpack.c.h.b16 %v3448
          %v3813 = vunpack.c.l.b16 %v3449
          %v3814 = vunpack.c.l.b16 %v3450
          %v3815 = vunpack.c.l.b16 %v3451
          %v3816 = vunpack.c.l.b16 %v3452
          %v3817 = vunpack.c.h.b16 %v3449
          %v3818 = vunpack.c.h.b16 %v3450
          %v3819 = vunpack.c.h.b16 %v3451
          %v3820 = vunpack.c.h.b16 %v3452
          %v3821 = vunpack.c.l.b16 %v3453
          %v3822 = vunpack.c.l.b16 %v3454
          %v3823 = vunpack.c.l.b16 %v3455
          %v3824 = vunpack.c.l.b16 %v3456
          %v3825 = vunpack.c.h.b16 %v3453
          %v3826 = vunpack.c.h.b16 %v3454
          %v3827 = vunpack.c.h.b16 %v3455
          %v3828 = vunpack.c.h.b16 %v3456
          %v3829 = vunpack.c.l.b16 %v3457
          %v3830 = vunpack.c.l.b16 %v3458
          %v3831 = vunpack.c.l.b16 %v3459
          %v3832 = vunpack.c.l.b16 %v3460
          %v3833 = vunpack.c.h.b16 %v3457
          %v3834 = vunpack.c.h.b16 %v3458
          %v3835 = vunpack.c.h.b16 %v3459
          %v3836 = vunpack.c.h.b16 %v3460
          %v3837 = vunpack.c.l.b16 %v3461
          %v3838 = vunpack.c.l.b16 %v3462
          %v3839 = vunpack.c.l.b16 %v3463
          %v3840 = vunpack.c.l.b16 %v3464
          %v3841 = vunpack.c.h.b16 %v3461
          %v3842 = vunpack.c.h.b16 %v3462
          %v3843 = vunpack.c.h.b16 %v3463
          %v3844 = vunpack.c.h.b16 %v3464
          %v3845 = vunpack.c.l.b16 %v3465
          %v3846 = vunpack.c.l.b16 %v3466
          %v3847 = vunpack.c.l.b16 %v3467
          %v3848 = vunpack.c.l.b16 %v3468
          %v3849 = vunpack.c.h.b16 %v3465
          %v3850 = vunpack.c.h.b16 %v3466
          %v3851 = vunpack.c.h.b16 %v3467
          %v3852 = vunpack.c.h.b16 %v3468
          %v3853 = vpack.c.b16 %v3598, %v3597
          %v3854 = vpack.c.b16 %v3600, %v3599
          %v3855 = vpack.c.b16 %v3602, %v3601
          %v3856 = vpack.c.b16 %v3604, %v3603
          %v3857 = vpack.c.b16 %v3606, %v3605
          %v3858 = vpack.c.b16 %v3608, %v3607
          %v3859 = vpack.c.b16 %v3610, %v3609
          %v3860 = vpack.c.b16 %v3612, %v3611
          %v3861 = vpack.c.b16 %v3614, %v3613
          %v3862 = vpack.c.b16 %v3616, %v3615
          %v3863 = vpack.c.b16 %v3618, %v3617
          %v3864 = vpack.c.b16 %v3620, %v3619
          %v3865 = vpack.c.b16 %v3622, %v3621
          %v3866 = vpack.c.b16 %v3624, %v3623
          %v3867 = vpack.c.b16 %v3626, %v3625
          %v3868 = vpack.c.b16 %v3628, %v3627
          %v3869 = vpack.c.b16 %v3630, %v3629
          %v3870 = vpack.c.b16 %v3632, %v3631
          %v3871 = vpack.c.b16 %v3634, %v3633
          %v3872 = vpack.c.b16 %v3636, %v3635
          %v3873 = vpack.c.b16 %v3638, %v3637
          %v3874 = vpack.c.b16 %v3640, %v3639
          %v3875 = vpack.c.b16 %v3642, %v3641
          %v3876 = vpack.c.b16 %v3644, %v3643
          %v3877 = vpack.c.b16 %v3646, %v3645
          %v3878 = vpack.c.b16 %v3648, %v3647
          %v3879 = vpack.c.b16 %v3650, %v3649
          %v3880 = vpack.c.b16 %v3652, %v3651
          %v3881 = vpack.c.b16 %v3654, %v3653
          %v3882 = vpack.c.b16 %v3656, %v3655
          %v3883 = vpack.c.b16 %v3658, %v3657
          %v3884 = vpack.c.b16 %v3660, %v3659
          %v3885 = vpack.c.b16 %v3662, %v3661
          %v3886 = vpack.c.b16 %v3664, %v3663
          %v3887 = vpack.c.b16 %v3666, %v3665
          %v3888 = vpack.c.b16 %v3668, %v3667
          %v3889 = vpack.c.b16 %v3670, %v3669
          %v3890 = vpack.c.b16 %v3672, %v3671
          %v3891 = vpack.c.b16 %v3674, %v3673
          %v3892 = vpack.c.b16 %v3676, %v3675
          %v3893 = vpack.c.b16 %v3678, %v3677
          %v3894 = vpack.c.b16 %v3680, %v3679
          %v3895 = vpack.c.b16 %v3682, %v3681
          %v3896 = vpack.c.b16 %v3684, %v3683
          %v3897 = vpack.c.b16 %v3686, %v3685
          %v3898 = vpack.c.b16 %v3688, %v3687
          %v3899 = vpack.c.b16 %v3690, %v3689
          %v3900 = vpack.c.b16 %v3692, %v3691
          %v3901 = vpack.c.b16 %v3694, %v3693
          %v3902 = vpack.c.b16 %v3696, %v3695
          %v3903 = vpack.c.b16 %v3698, %v3697
          %v3904 = vpack.c.b16 %v3700, %v3699
          %v3905 = vpack.c.b16 %v3702, %v3701
          %v3906 = vpack.c.b16 %v3704, %v3703
          %v3907 = vpack.c.b16 %v3706, %v3705
          %v3908 = vpack.c.b16 %v3708, %v3707
          %v3909 = vpack.c.b16 %v3710, %v3709
          %v3910 = vpack.c.b16 %v3712, %v3711
          %v3911 = vpack.c.b16 %v3714, %v3713
          %v3912 = vpack.c.b16 %v3716, %v3715
          %v3913 = vpack.c.b16 %v3718, %v3717
          %v3914 = vpack.c.b16 %v3720, %v3719
          %v3915 = vpack.c.b16 %v3722, %v3721
          %v3916 = vpack.c.b16 %v3724, %v3723
          %v3917 = vpack.c.b16 %v3726, %v3725
          %v3918 = vpack.c.b16 %v3728, %v3727
          %v3919 = vpack.c.b16 %v3730, %v3729
          %v3920 = vpack.c.b16 %v3732, %v3731
          %v3921 = vpack.c.b16 %v3734, %v3733
          %v3922 = vpack.c.b16 %v3736, %v3735
          %v3923 = vpack.c.b16 %v3738, %v3737
          %v3924 = vpack.c.b16 %v3740, %v3739
          %v3925 = vpack.c.b16 %v3742, %v3741
          %v3926 = vpack.c.b16 %v3744, %v3743
          %v3927 = vpack.c.b16 %v3746, %v3745
          %v3928 = vpack.c.b16 %v3748, %v3747
          %v3929 = vpack.c.b16 %v3750, %v3749
          %v3930 = vpack.c.b16 %v3752, %v3751
          %v3931 = vpack.c.b16 %v3754, %v3753
          %v3932 = vpack.c.b16 %v3756, %v3755
          %v3933 = vpack.c.b16 %v3758, %v3757
          %v3934 = vpack.c.b16 %v3760, %v3759
          %v3935 = vpack.c.b16 %v3762, %v3761
          %v3936 = vpack.c.b16 %v3764, %v3763
          %v3937 = vpack.c.b16 %v3766, %v3765
          %v3938 = vpack.c.b16 %v3768, %v3767
          %v3939 = vpack.c.b16 %v3770, %v3769
          %v3940 = vpack.c.b16 %v3772, %v3771
          %v3941 = vpack.c.b16 %v3774, %v3773
          %v3942 = vpack.c.b16 %v3776, %v3775
          %v3943 = vpack.c.b16 %v3778, %v3777
          %v3944 = vpack.c.b16 %v3780, %v3779
          %v3945 = vpack.c.b16 %v3782, %v3781
          %v3946 = vpack.c.b16 %v3784, %v3783
          %v3947 = vpack.c.b16 %v3786, %v3785
          %v3948 = vpack.c.b16 %v3788, %v3787
          %v3949 = vpack.c.b16 %v3790, %v3789
          %v3950 = vpack.c.b16 %v3792, %v3791
          %v3951 = vpack.c.b16 %v3794, %v3793
          %v3952 = vpack.c.b16 %v3796, %v3795
          %v3953 = vpack.c.b16 %v3798, %v3797
          %v3954 = vpack.c.b16 %v3800, %v3799
          %v3955 = vpack.c.b16 %v3802, %v3801
          %v3956 = vpack.c.b16 %v3804, %v3803
          %v3957 = vpack.c.b16 %v3806, %v3805
          %v3958 = vpack.c.b16 %v3808, %v3807
          %v3959 = vpack.c.b16 %v3810, %v3809
          %v3960 = vpack.c.b16 %v3812, %v3811
          %v3961 = vpack.c.b16 %v3814, %v3813
          %v3962 = vpack.c.b16 %v3816, %v3815
          %v3963 = vpack.c.b16 %v3818, %v3817
          %v3964 = vpack.c.b16 %v3820, %v3819
          %v3965 = vpack.c.b16 %v3822, %v3821
          %v3966 = vpack.c.b16 %v3824, %v3823
          %v3967 = vpack.c.b16 %v3826, %v3825
          %v3968 = vpack.c.b16 %v3828, %v3827
          %v3969 = vpack.c.b16 %v3830, %v3829
          %v3970 = vpack.c.b16 %v3832, %v3831
          %v3971 = vpack.c.b16 %v3834, %v3833
          %v3972 = vpack.c.b16 %v3836, %v3835
          %v3973 = vpack.c.b16 %v3838, %v3837
          %v3974 = vpack.c.b16 %v3840, %v3839
          %v3975 = vpack.c.b16 %v3842, %v3841
          %v3976 = vpack.c.b16 %v3844, %v3843
          %v3977 = vpack.c.b16 %v3846, %v3845
          %v3978 = vpack.c.b16 %v3848, %v3847
          %v3979 = vpack.c.b16 %v3850, %v3849
          %v3980 = vpack.c.b16 %v3852, %v3851
          %4109 = vst [vmem:[%s294] sm:$0xff] %v3853
          %4110 = vst [vmem:[%s294 + $0x8] sm:$0xff] %v3854
          %4111 = vst [vmem:[%s294 + $0x10] sm:$0xff] %v3855
          %4112 = vst [vmem:[%s294 + $0x18] sm:$0xff] %v3856
          %4113 = vst [vmem:[%s294 + $0x20] sm:$0xff] %v3857
          %4114 = vst [vmem:[%s294 + $0x28] sm:$0xff] %v3858
          %4115 = vst [vmem:[%s294 + $0x30] sm:$0xff] %v3859
          %4116 = vst [vmem:[%s294 + $0x38] sm:$0xff] %v3860
          %4117 = vst [vmem:[%s294 + $0x40] sm:$0xff] %v3861
          %4118 = vst [vmem:[%s294 + $0x48] sm:$0xff] %v3862
          %4119 = vst [vmem:[%s294 + $0x50] sm:$0xff] %v3863
          %4120 = vst [vmem:[%s294 + $0x58] sm:$0xff] %v3864
          %4121 = vst [vmem:[%s294 + $0x60] sm:$0xff] %v3865
          %4122 = vst [vmem:[%s294 + $0x68] sm:$0xff] %v3866
          %4123 = vst [vmem:[%s294 + $0x70] sm:$0xff] %v3867
          %4124 = vst [vmem:[%s294 + $0x78] sm:$0xff] %v3868
          %4125 = vst [vmem:[%s294 + $0x80] sm:$0xff] %v3869
          %4126 = vst [vmem:[%s294 + $0x88] sm:$0xff] %v3870
          %4127 = vst [vmem:[%s294 + $0x90] sm:$0xff] %v3871
          %4128 = vst [vmem:[%s294 + $0x98] sm:$0xff] %v3872
          %4129 = vst [vmem:[%s294 + $0xa0] sm:$0xff] %v3873
          %4130 = vst [vmem:[%s294 + $0xa8] sm:$0xff] %v3874
          %4131 = vst [vmem:[%s294 + $0xb0] sm:$0xff] %v3875
          %4132 = vst [vmem:[%s294 + $0xb8] sm:$0xff] %v3876
          %4133 = vst [vmem:[%s294 + $0xc0] sm:$0xff] %v3877
          %4134 = vst [vmem:[%s294 + $0xc8] sm:$0xff] %v3878
          %4135 = vst [vmem:[%s294 + $0xd0] sm:$0xff] %v3879
          %4136 = vst [vmem:[%s294 + $0xd8] sm:$0xff] %v3880
          %4137 = vst [vmem:[%s294 + $0xe0] sm:$0xff] %v3881
          %4138 = vst [vmem:[%s294 + $0xe8] sm:$0xff] %v3882
          %4139 = vst [vmem:[%s294 + $0xf0] sm:$0xff] %v3883
          %4140 = vst [vmem:[%s294 + $0xf8] sm:$0xff] %v3884
          %4141 = vst [vmem:[%s294 + $0x100] sm:$0xff] %v3885
          %4142 = vst [vmem:[%s294 + $0x108] sm:$0xff] %v3886
          %4143 = vst [vmem:[%s294 + $0x110] sm:$0xff] %v3887
          %4144 = vst [vmem:[%s294 + $0x118] sm:$0xff] %v3888
          %4145 = vst [vmem:[%s294 + $0x120] sm:$0xff] %v3889
          %4146 = vst [vmem:[%s294 + $0x128] sm:$0xff] %v3890
          %4147 = vst [vmem:[%s294 + $0x130] sm:$0xff] %v3891
          %4148 = vst [vmem:[%s294 + $0x138] sm:$0xff] %v3892
          %4149 = vst [vmem:[%s294 + $0x140] sm:$0xff] %v3893
          %4150 = vst [vmem:[%s294 + $0x148] sm:$0xff] %v3894
          %4151 = vst [vmem:[%s294 + $0x150] sm:$0xff] %v3895
          %4152 = vst [vmem:[%s294 + $0x158] sm:$0xff] %v3896
          %4153 = vst [vmem:[%s294 + $0x160] sm:$0xff] %v3897
          %4154 = vst [vmem:[%s294 + $0x168] sm:$0xff] %v3898
          %4155 = vst [vmem:[%s294 + $0x170] sm:$0xff] %v3899
          %4156 = vst [vmem:[%s294 + $0x178] sm:$0xff] %v3900
          %4157 = vst [vmem:[%s294 + $0x180] sm:$0xff] %v3901
          %4158 = vst [vmem:[%s294 + $0x188] sm:$0xff] %v3902
          %4159 = vst [vmem:[%s294 + $0x190] sm:$0xff] %v3903
          %4160 = vst [vmem:[%s294 + $0x198] sm:$0xff] %v3904
          %4161 = vst [vmem:[%s294 + $0x1a0] sm:$0xff] %v3905
          %4162 = vst [vmem:[%s294 + $0x1a8] sm:$0xff] %v3906
          %4163 = vst [vmem:[%s294 + $0x1b0] sm:$0xff] %v3907
          %4164 = vst [vmem:[%s294 + $0x1b8] sm:$0xff] %v3908
          %4165 = vst [vmem:[%s294 + $0x1c0] sm:$0xff] %v3909
          %4166 = vst [vmem:[%s294 + $0x1c8] sm:$0xff] %v3910
          %4167 = vst [vmem:[%s294 + $0x1d0] sm:$0xff] %v3911
          %4168 = vst [vmem:[%s294 + $0x1d8] sm:$0xff] %v3912
          %4169 = vst [vmem:[%s294 + $0x1e0] sm:$0xff] %v3913
          %4170 = vst [vmem:[%s294 + $0x1e8] sm:$0xff] %v3914
          %4171 = vst [vmem:[%s294 + $0x1f0] sm:$0xff] %v3915
          %4172 = vst [vmem:[%s294 + $0x1f8] sm:$0xff] %v3916
          %4173 = vst [vmem:[%s294 + $0x200] sm:$0xff] %v3917
          %4174 = vst [vmem:[%s294 + $0x208] sm:$0xff] %v3918
          %4175 = vst [vmem:[%s294 + $0x210] sm:$0xff] %v3919
          %4176 = vst [vmem:[%s294 + $0x218] sm:$0xff] %v3920
          %4177 = vst [vmem:[%s294 + $0x220] sm:$0xff] %v3921
          %4178 = vst [vmem:[%s294 + $0x228] sm:$0xff] %v3922
          %4179 = vst [vmem:[%s294 + $0x230] sm:$0xff] %v3923
          %4180 = vst [vmem:[%s294 + $0x238] sm:$0xff] %v3924
          %4181 = vst [vmem:[%s294 + $0x240] sm:$0xff] %v3925
          %4182 = vst [vmem:[%s294 + $0x248] sm:$0xff] %v3926
          %4183 = vst [vmem:[%s294 + $0x250] sm:$0xff] %v3927
          %4184 = vst [vmem:[%s294 + $0x258] sm:$0xff] %v3928
          %4185 = vst [vmem:[%s294 + $0x260] sm:$0xff] %v3929
          %4186 = vst [vmem:[%s294 + $0x268] sm:$0xff] %v3930
          %4187 = vst [vmem:[%s294 + $0x270] sm:$0xff] %v3931
          %4188 = vst [vmem:[%s294 + $0x278] sm:$0xff] %v3932
          %4189 = vst [vmem:[%s294 + $0x280] sm:$0xff] %v3933
          %4190 = vst [vmem:[%s294 + $0x288] sm:$0xff] %v3934
          %4191 = vst [vmem:[%s294 + $0x290] sm:$0xff] %v3935
          %4192 = vst [vmem:[%s294 + $0x298] sm:$0xff] %v3936
          %4193 = vst [vmem:[%s294 + $0x2a0] sm:$0xff] %v3937
          %4194 = vst [vmem:[%s294 + $0x2a8] sm:$0xff] %v3938
          %4195 = vst [vmem:[%s294 + $0x2b0] sm:$0xff] %v3939
          %4196 = vst [vmem:[%s294 + $0x2b8] sm:$0xff] %v3940
          %4197 = vst [vmem:[%s294 + $0x2c0] sm:$0xff] %v3941
          %4198 = vst [vmem:[%s294 + $0x2c8] sm:$0xff] %v3942
          %4199 = vst [vmem:[%s294 + $0x2d0] sm:$0xff] %v3943
          %4200 = vst [vmem:[%s294 + $0x2d8] sm:$0xff] %v3944
          %4201 = vst [vmem:[%s294 + $0x2e0] sm:$0xff] %v3945
          %4202 = vst [vmem:[%s294 + $0x2e8] sm:$0xff] %v3946
          %4203 = vst [vmem:[%s294 + $0x2f0] sm:$0xff] %v3947
          %4204 = vst [vmem:[%s294 + $0x2f8] sm:$0xff] %v3948
          %4205 = vst [vmem:[%s294 + $0x300] sm:$0xff] %v3949
          %4206 = vst [vmem:[%s294 + $0x308] sm:$0xff] %v3950
          %4207 = vst [vmem:[%s294 + $0x310] sm:$0xff] %v3951
          %4208 = vst [vmem:[%s294 + $0x318] sm:$0xff] %v3952
          %4209 = vst [vmem:[%s294 + $0x320] sm:$0xff] %v3953
          %4210 = vst [vmem:[%s294 + $0x328] sm:$0xff] %v3954
          %4211 = vst [vmem:[%s294 + $0x330] sm:$0xff] %v3955
          %4212 = vst [vmem:[%s294 + $0x338] sm:$0xff] %v3956
          %4213 = vst [vmem:[%s294 + $0x340] sm:$0xff] %v3957
          %4214 = vst [vmem:[%s294 + $0x348] sm:$0xff] %v3958
          %4215 = vst [vmem:[%s294 + $0x350] sm:$0xff] %v3959
          %4216 = vst [vmem:[%s294 + $0x358] sm:$0xff] %v3960
          %4217 = vst [vmem:[%s294 + $0x360] sm:$0xff] %v3961
          %4218 = vst [vmem:[%s294 + $0x368] sm:$0xff] %v3962
          %4219 = vst [vmem:[%s294 + $0x370] sm:$0xff] %v3963
          %4220 = vst [vmem:[%s294 + $0x378] sm:$0xff] %v3964
          %4221 = vst [vmem:[%s294 + $0x380] sm:$0xff] %v3965
          %4222 = vst [vmem:[%s294 + $0x388] sm:$0xff] %v3966
          %4223 = vst [vmem:[%s294 + $0x390] sm:$0xff] %v3967
          %4224 = vst [vmem:[%s294 + $0x398] sm:$0xff] %v3968
          %4225 = vst [vmem:[%s294 + $0x3a0] sm:$0xff] %v3969
          %4226 = vst [vmem:[%s294 + $0x3a8] sm:$0xff] %v3970
          %4227 = vst [vmem:[%s294 + $0x3b0] sm:$0xff] %v3971
          %4228 = vst [vmem:[%s294 + $0x3b8] sm:$0xff] %v3972
          %4229 = vst [vmem:[%s294 + $0x3c0] sm:$0xff] %v3973
          %4230 = vst [vmem:[%s294 + $0x3c8] sm:$0xff] %v3974
          %4231 = vst [vmem:[%s294 + $0x3d0] sm:$0xff] %v3975
          %4232 = vst [vmem:[%s294 + $0x3d8] sm:$0xff] %v3976
          %4233 = vst [vmem:[%s294 + $0x3e0] sm:$0xff] %v3977
          %4234 = vst [vmem:[%s294 + $0x3e8] sm:$0xff] %v3978
          %4235 = vst [vmem:[%s294 + $0x3f0] sm:$0xff] %v3979
          %4236 = vst [vmem:[%s294 + $0x3f8] sm:$0xff] %v3980
        $region52: #{tpu_custom_call.1} parent=31 // pred_fallthru
          _
        %s4237 = sand.u32 %s134, 1
        %s4238 = scalar_lea.sflag [#allocation5], %s4237
        %s4239 = sand.u32 %s134, 1
        %s4240 = smul.addr %s4239, 1024
        %s4241 = scalar_lea.vmem [#allocation9], %s4240
        // Predicated region
        $region53: #{tpu_custom_call.1} parent=31 // pred_check
          %p4242 = pneg %p144
        $region54: #{tpu_custom_call.1} parent=31 // pred_check_branch
          %4244 = sbr.rel (%p4242) target = $region56
        $region55: #{tpu_custom_call.1} parent=31 // pred_region
          %s4245 = smul.u32 64, %s28
          %s4246 = smul.u32 4, %s29
          %s4248 = ssub.s32 16384, 16384
          %4249 = vsyncadd %s4238, %s4248
          %s4250 = smul.addr %s4245, 8
          %s4251 = sadd.s32 %s4246, %s4250
          %s4252 = smul.addr %s4251, 64
          %s4253 = scalar_lea.hbm %s3, %s4252
          %s4254 = sshll.u32 %s4241, 4
          %s4255 = int_to_ptr.vmem [resolvable:$true] %s4254
          %4260 = dma.vmem_to_hbm [thread:$0]  %s4255, 16384, %s4253, %s4238, 256, 512, 16
        $region56: #{tpu_custom_call.1} parent=31 // pred_fallthru
          _
      $region32: #{tpu_custom_call.1} parent=5 // pred_fallthru
        _
      %p4261 = scmp.le.s32.totalorder 2, %s18
      // Predicated region
      $region57: #{tpu_custom_call.1} parent=5 // pred_check
        %p4262 = pneg %p4261
      $region58: #{tpu_custom_call.1} parent=5 // pred_check_branch
        %4264 = sbr.rel (%p4262) target = $region60
      $region59: #{tpu_custom_call.1} parent=5 // pred_region
        %s4265 = ssub.s32 %s18, 2
        // Predicated region
        $region61: #{tpu_custom_call.1} parent=59 // pred_check
          %p4266 = pneg %p150
        $region62: #{tpu_custom_call.1} parent=59 // pred_check_branch
          %4268 = sbr.rel (%p4266) target = $region64
        $region63: #{tpu_custom_call.1} parent=59 // pred_region
          %s4269 = sand.u32 %s135, 1
          %s4270 = scalar_lea.sflag [#allocation5], %s4269
          %s4271 = sand.u32 %s135, 1
          %s4272 = smul.addr %s4271, 1024
          %s4273 = scalar_lea.vmem [#allocation9], %s4272
          %4274 = dma.done %s4270, 16384
        $region64: #{tpu_custom_call.1} parent=59 // pred_fallthru
          _
      $region60: #{tpu_custom_call.1} parent=5 // pred_fallthru
        _
    $region6: #{tpu_custom_call.1} parent=1 // loop_footer
      %s22 = sadd.s32 1, %s18
    $region7: #{tpu_custom_call.1} parent=1 // loop_footer_branch
      %17 = sbr.rel target = $region3
    $region8: #{tpu_custom_call.1} parent=1 // loop_exit
      _
    %4275 = vsyncpa [#allocation4], 1
    %s4276 = scalar_lea.sflag [#allocation4], 1
    %4277 = vsyncpa %s4276, 1
    %4278 = vsyncpa [#allocation7], 1
    %s4279 = scalar_lea.sflag [#allocation7], 1
    %4280 = vsyncpa %s4279, 1
    %4281 = vsyncpa [#allocation5], 1
    %s4282 = scalar_lea.sflag [#allocation5], 1
    %4283 = vsyncpa %s4282, 1

</llo_original>
